<compile_context>
chip_gen: v5e
topology: v5e:2x2
jax: 0.10.0
libtpu: 0.0.40
codegen_flags: <defaults>
</compile_context>

<pallas_src>
import jax
import jax.numpy as jnp
from jax import lax
from jax.experimental import pallas as pl
from jax.experimental.pallas import tpu as pltpu

K = 4  # ConvTranspose2d kernel size


def _upsample_kernel(xr_ref, wa_ref, wb_ref, b_ref, o_ref):
    # xr_ref: (1, C, H+2, 2W+4) column-duplicated, replication-padded input
    #         xr[0, ic, iy, j] = xpad[ic, iy, j // 2]
    # wa_ref: (C_out, C_in, K, 2W)  wa[oc, ic, ky, ox] = w_t[ic, oc, ky, 3 - ox % 2]
    # wb_ref: (C_out, C_in, K, 2W)  wb[oc, ic, ky, ox] = w_t[ic, oc, ky, 1 - ox % 2]
    # b_ref : (C_out,) in SMEM
    # o_ref : (1, C, TM, 4W) -- coarse row m holds output rows (2m | 2m+1)
    C = o_ref.shape[1]
    TM = o_ref.shape[2]
    OW = o_ref.shape[3] // 2            # final output width 2W
    t = pl.program_id(1)
    m0 = pl.multiple_of(t * TM, TM)     # first coarse (input) row of this tile

    # Hoist the input row tiles once: rows m0+r (r in 0..2), lane shifts +1, +3.
    x1 = [[xr_ref[0, ic, pl.ds(m0 + r, TM), pl.ds(1, OW)] for ic in range(C)]
          for r in range(3)]
    x3 = [[xr_ref[0, ic, pl.ds(m0 + r, TM), pl.ds(3, OW)] for ic in range(C)]
          for r in range(3)]

    for oc in range(C):                          # static unroll, C is small
        bias = b_ref[oc]
        for py in range(2):                      # output row parity
            acc = jnp.zeros((TM, OW), jnp.float32)
            for ic in range(C):
                for dy in range(2):              # the 2 contributing input rows
                    r = py + dy
                    ky = 3 - py - 2 * dy
                    wa = wa_ref[oc, ic, ky:ky + 1, :]      # (1, 2W)
                    wb = wb_ref[oc, ic, ky:ky + 1, :]      # (1, 2W)
                    acc = acc + x1[r][ic] * wa + x3[r][ic] * wb
            o_ref[0, oc, :, pl.ds(py * OW, OW)] = (acc + bias).astype(o_ref.dtype)


def upsample(x, w_t, bias, *, tm=8):
    """ReplicationPad2d(1) + ConvTranspose2d(C, C, 4, stride=2, padding=3).

    x    : (N, C, H, W) float32, NCHW (PyTorch convention)
    w_t  : (C, C, 4, 4) PyTorch ConvTranspose2d weight (in, out, kh, kw)
    bias : (C,)
    returns (N, C, 2H, 2W)
    """
    N, C, H, W = x.shape
    TM = tm if H % tm == 0 else H      # coarse output-row tile (2*TM output rows)
    OW = 2 * W

    # --- cheap wrapper glue (XLA): replication pad + column duplication -----
    xp = jnp.pad(x, ((0, 0), (0, 0), (1, 1), (1, 1)), mode="edge")   # (N,C,H+2,W+2)
    xr = jnp.repeat(xp, 2, axis=3)                                   # (N,C,H+2,2W+4)

    # --- parity-alternating weight rows (tiny, built once) ------------------
    # Output column ox (parity px = ox % 2) reads input columns xr[..., ox+1]
    # and xr[..., ox+3] with kernel taps kx = 3-px and kx = 1-px respectively.
    wt_oc = jnp.transpose(w_t, (1, 0, 2, 3))        # (C_out, C_in, K, K)
    par = jnp.arange(OW) % 2                        # (2W,)
    WA = wt_oc[:, :, :, 3 - par]                    # (C_out, C_in, K, 2W)
    WB = wt_oc[:, :, :, 1 - par]                    # (C_out, C_in, K, 2W)

    out4 = pl.pallas_call(
        _upsample_kernel,
        out_shape=jax.ShapeDtypeStruct((N, C, H, 2 * OW), x.dtype),
        grid_spec=pltpu.PrefetchScalarGridSpec(
            num_scalar_prefetch=0,
            grid=(N, H // TM),
            in_specs=[
                # whole (small) padded input stays resident across the row-tile
                # axis (same block index -> no re-DMA per tile)
                pl.BlockSpec((1, C, H + 2, OW + 4), lambda n, t: (n, 0, 0, 0)),
                pl.BlockSpec((C, C, K, OW), lambda n, t: (0, 0, 0, 0)),
                pl.BlockSpec((C, C, K, OW), lambda n, t: (0, 0, 0, 0)),
                pl.BlockSpec(memory_space=pltpu.MemorySpace.SMEM),
            ],
            out_specs=pl.BlockSpec((1, C, TM, 2 * OW), lambda n, t: (n, 0, t, 0)),
        ),
        compiler_params=pltpu.CompilerParams(
            dimension_semantics=("parallel", "parallel")),
    )(xr, WA, WB, bias)

    # (N, C, H, 4W) -> (N, C, 2H, 2W): contiguous reshape, free (no HBM pass).
    return out4.reshape(N, C, 2 * H, OW)


def upsample_ref(x, w_t, bias):
    """Pure-JAX reference (same semantics as the PyTorch module)."""
    N, C, H, W = x.shape
    xp = jnp.pad(x, ((0, 0), (0, 0), (1, 1), (1, 1)), mode="edge")
    # regular conv kernel: (oc, ic, kh, kw), spatially flipped
    w_conv = jnp.transpose(w_t[:, :, ::-1, ::-1], (1, 0, 2, 3))
    out = lax.conv_general_dilated(
        xp, w_conv,
        window_strides=(1, 1),
        padding=((0, 0), (0, 0)),
        lhs_dilation=(2, 2),
        rhs_dilation=(1, 1),
        dimension_numbers=("NCHW", "OIHW", "NCHW"))
    return out + bias.reshape(1, C, 1, 1)


if __name__ == "__main__":
    N, C, H, W = 2, 4, 16, 16

    key = jax.random.PRNGKey(0)
    kx, kw, kb = jax.random.split(key, 3)

    x = jax.random.normal(kx, (N, C, H, W), dtype=jnp.float32)
    # Deterministic synthetic parameters (PyTorch shapes: weight (Cin, Cout, 4, 4), bias (Cout,))
    fan = C * K * K
    bound = 1.0 / jnp.sqrt(fan)
    w_t = jax.random.uniform(kw, (C, C, K, K), jnp.float32, -bound, bound)
    bias = jax.random.uniform(kb, (C,), jnp.float32, -bound, bound)

    out = jax.block_until_ready(upsample(x, w_t, bias))
    ref = jax.block_until_ready(upsample_ref(x, w_t, bias))

    assert out.shape == (N, C, 2 * H, 2 * W), out.shape
    err = float(jnp.max(jnp.abs(out - ref)))
    assert jnp.allclose(out, ref, atol=1e-4, rtol=1e-4), err

    print("KERNEL_OK")
</pallas_src>

<mosaic_0001>
module attributes {stable_mosaic.version = 11 : i64} {
  func.func @_upsample_kernel(%arg0: i32, %arg1: i32, %arg2: memref<1x4x18x36xf32, #tpu.memory_space<vmem>>, %arg3: memref<4x4x4x32xf32, #tpu.memory_space<vmem>>, %arg4: memref<4x4x4x32xf32, #tpu.memory_space<vmem>>, %arg5: memref<4xf32, #tpu.memory_space<smem>>, %arg6: memref<1x4x8x64xf32, #tpu.memory_space<vmem>>) attributes {dimension_semantics = [#tpu.dimension_semantics<parallel>, #tpu.dimension_semantics<parallel>], iteration_bounds = array<i64: 2, 2>, scalar_prefetch = 0 : i64, scratch_operands = 0 : i64, tpu.core_type = #tpu.core_type<tc>, window_params = [{transform_indices = @transform_0, window_bounds = array<i64: 1, 4, 18, 36>}, {pipeline_mode = #tpu.pipeline_mode<synchronous>, transform_indices = @transform_1, window_bounds = array<i64: 4, 4, 4, 32>}, {pipeline_mode = #tpu.pipeline_mode<synchronous>, transform_indices = @transform_2, window_bounds = array<i64: 4, 4, 4, 32>}, {transform_indices = @transform_3, window_bounds = array<i64: 4>}, {transform_indices = @transform_4, window_bounds = array<i64: 1, 4, 8, 64>}]} {
    %c8_i32 = arith.constant 8 : i32
    %0 = arith.muli %arg1, %c8_i32 : i32
    %1 = tpu.assume_multiple %0, 8 : i32
    %c0_i32 = arith.constant 0 : i32
    %2 = arith.addi %1, %c0_i32 : i32
    %c0 = arith.constant 0 : index
    %c0_0 = arith.constant 0 : index
    %3 = arith.index_cast %2 : i32 to index
    %c1 = arith.constant 1 : index
    %4 = vector.load %arg2[%c0, %c0_0, %3, %c1] : memref<1x4x18x36xf32, #tpu.memory_space<vmem>>, vector<1x1x8x32xf32>
    %5 = vector.shape_cast %4 : vector<1x1x8x32xf32> to vector<8x32xf32>
    %c0_i32_1 = arith.constant 0 : i32
    %6 = arith.addi %1, %c0_i32_1 : i32
    %c0_2 = arith.constant 0 : index
    %c1_3 = arith.constant 1 : index
    %7 = arith.index_cast %6 : i32 to index
    %c1_4 = arith.constant 1 : index
    %8 = vector.load %arg2[%c0_2, %c1_3, %7, %c1_4] : memref<1x4x18x36xf32, #tpu.memory_space<vmem>>, vector<1x1x8x32xf32>
    %9 = vector.shape_cast %8 : vector<1x1x8x32xf32> to vector<8x32xf32>
    %c0_i32_5 = arith.constant 0 : i32
    %10 = arith.addi %1, %c0_i32_5 : i32
    %c0_6 = arith.constant 0 : index
    %c2 = arith.constant 2 : index
    %11 = arith.index_cast %10 : i32 to index
    %c1_7 = arith.constant 1 : index
    %12 = vector.load %arg2[%c0_6, %c2, %11, %c1_7] : memref<1x4x18x36xf32, #tpu.memory_space<vmem>>, vector<1x1x8x32xf32>
    %13 = vector.shape_cast %12 : vector<1x1x8x32xf32> to vector<8x32xf32>
    %c0_i32_8 = arith.constant 0 : i32
    %14 = arith.addi %1, %c0_i32_8 : i32
    %c0_9 = arith.constant 0 : index
    %c3 = arith.constant 3 : index
    %15 = arith.index_cast %14 : i32 to index
    %c1_10 = arith.constant 1 : index
    %16 = vector.load %arg2[%c0_9, %c3, %15, %c1_10] : memref<1x4x18x36xf32, #tpu.memory_space<vmem>>, vector<1x1x8x32xf32>
    %17 = vector.shape_cast %16 : vector<1x1x8x32xf32> to vector<8x32xf32>
    %c1_i32 = arith.constant 1 : i32
    %18 = arith.addi %1, %c1_i32 : i32
    %c0_11 = arith.constant 0 : index
    %c0_12 = arith.constant 0 : index
    %19 = arith.index_cast %18 : i32 to index
    %c1_13 = arith.constant 1 : index
    %20 = vector.load %arg2[%c0_11, %c0_12, %19, %c1_13] : memref<1x4x18x36xf32, #tpu.memory_space<vmem>>, vector<1x1x8x32xf32>
    %21 = vector.shape_cast %20 : vector<1x1x8x32xf32> to vector<8x32xf32>
    %c1_i32_14 = arith.constant 1 : i32
    %22 = arith.addi %1, %c1_i32_14 : i32
    %c0_15 = arith.constant 0 : index
    %c1_16 = arith.constant 1 : index
    %23 = arith.index_cast %22 : i32 to index
    %c1_17 = arith.constant 1 : index
    %24 = vector.load %arg2[%c0_15, %c1_16, %23, %c1_17] : memref<1x4x18x36xf32, #tpu.memory_space<vmem>>, vector<1x1x8x32xf32>
    %25 = vector.shape_cast %24 : vector<1x1x8x32xf32> to vector<8x32xf32>
    %c1_i32_18 = arith.constant 1 : i32
    %26 = arith.addi %1, %c1_i32_18 : i32
    %c0_19 = arith.constant 0 : index
    %c2_20 = arith.constant 2 : index
    %27 = arith.index_cast %26 : i32 to index
    %c1_21 = arith.constant 1 : index
    %28 = vector.load %arg2[%c0_19, %c2_20, %27, %c1_21] : memref<1x4x18x36xf32, #tpu.memory_space<vmem>>, vector<1x1x8x32xf32>
    %29 = vector.shape_cast %28 : vector<1x1x8x32xf32> to vector<8x32xf32>
    %c1_i32_22 = arith.constant 1 : i32
    %30 = arith.addi %1, %c1_i32_22 : i32
    %c0_23 = arith.constant 0 : index
    %c3_24 = arith.constant 3 : index
    %31 = arith.index_cast %30 : i32 to index
    %c1_25 = arith.constant 1 : index
    %32 = vector.load %arg2[%c0_23, %c3_24, %31, %c1_25] : memref<1x4x18x36xf32, #tpu.memory_space<vmem>>, vector<1x1x8x32xf32>
    %33 = vector.shape_cast %32 : vector<1x1x8x32xf32> to vector<8x32xf32>
    %c2_i32 = arith.constant 2 : i32
    %34 = arith.addi %1, %c2_i32 : i32
    %c0_26 = arith.constant 0 : index
    %c0_27 = arith.constant 0 : index
    %35 = arith.index_cast %34 : i32 to index
    %c1_28 = arith.constant 1 : index
    %36 = vector.load %arg2[%c0_26, %c0_27, %35, %c1_28] : memref<1x4x18x36xf32, #tpu.memory_space<vmem>>, vector<1x1x8x32xf32>
    %37 = vector.shape_cast %36 : vector<1x1x8x32xf32> to vector<8x32xf32>
    %c2_i32_29 = arith.constant 2 : i32
    %38 = arith.addi %1, %c2_i32_29 : i32
    %c0_30 = arith.constant 0 : index
    %c1_31 = arith.constant 1 : index
    %39 = arith.index_cast %38 : i32 to index
    %c1_32 = arith.constant 1 : index
    %40 = vector.load %arg2[%c0_30, %c1_31, %39, %c1_32] : memref<1x4x18x36xf32, #tpu.memory_space<vmem>>, vector<1x1x8x32xf32>
    %41 = vector.shape_cast %40 : vector<1x1x8x32xf32> to vector<8x32xf32>
    %c2_i32_33 = arith.constant 2 : i32
    %42 = arith.addi %1, %c2_i32_33 : i32
    %c0_34 = arith.constant 0 : index
    %c2_35 = arith.constant 2 : index
    %43 = arith.index_cast %42 : i32 to index
    %c1_36 = arith.constant 1 : index
    %44 = vector.load %arg2[%c0_34, %c2_35, %43, %c1_36] : memref<1x4x18x36xf32, #tpu.memory_space<vmem>>, vector<1x1x8x32xf32>
    %45 = vector.shape_cast %44 : vector<1x1x8x32xf32> to vector<8x32xf32>
    %c2_i32_37 = arith.constant 2 : i32
    %46 = arith.addi %1, %c2_i32_37 : i32
    %c0_38 = arith.constant 0 : index
    %c3_39 = arith.constant 3 : index
    %47 = arith.index_cast %46 : i32 to index
    %c1_40 = arith.constant 1 : index
    %48 = vector.load %arg2[%c0_38, %c3_39, %47, %c1_40] : memref<1x4x18x36xf32, #tpu.memory_space<vmem>>, vector<1x1x8x32xf32>
    %49 = vector.shape_cast %48 : vector<1x1x8x32xf32> to vector<8x32xf32>
    %c0_i32_41 = arith.constant 0 : i32
    %50 = arith.addi %1, %c0_i32_41 : i32
    %c0_42 = arith.constant 0 : index
    %c0_43 = arith.constant 0 : index
    %51 = arith.index_cast %50 : i32 to index
    %c3_44 = arith.constant 3 : index
    %52 = vector.load %arg2[%c0_42, %c0_43, %51, %c3_44] : memref<1x4x18x36xf32, #tpu.memory_space<vmem>>, vector<1x1x8x32xf32>
    %53 = vector.shape_cast %52 : vector<1x1x8x32xf32> to vector<8x32xf32>
    %c0_i32_45 = arith.constant 0 : i32
    %54 = arith.addi %1, %c0_i32_45 : i32
    %c0_46 = arith.constant 0 : index
    %c1_47 = arith.constant 1 : index
    %55 = arith.index_cast %54 : i32 to index
    %c3_48 = arith.constant 3 : index
    %56 = vector.load %arg2[%c0_46, %c1_47, %55, %c3_48] : memref<1x4x18x36xf32, #tpu.memory_space<vmem>>, vector<1x1x8x32xf32>
    %57 = vector.shape_cast %56 : vector<1x1x8x32xf32> to vector<8x32xf32>
    %c0_i32_49 = arith.constant 0 : i32
    %58 = arith.addi %1, %c0_i32_49 : i32
    %c0_50 = arith.constant 0 : index
    %c2_51 = arith.constant 2 : index
    %59 = arith.index_cast %58 : i32 to index
    %c3_52 = arith.constant 3 : index
    %60 = vector.load %arg2[%c0_50, %c2_51, %59, %c3_52] : memref<1x4x18x36xf32, #tpu.memory_space<vmem>>, vector<1x1x8x32xf32>
    %61 = vector.shape_cast %60 : vector<1x1x8x32xf32> to vector<8x32xf32>
    %c0_i32_53 = arith.constant 0 : i32
    %62 = arith.addi %1, %c0_i32_53 : i32
    %c0_54 = arith.constant 0 : index
    %c3_55 = arith.constant 3 : index
    %63 = arith.index_cast %62 : i32 to index
    %c3_56 = arith.constant 3 : index
    %64 = vector.load %arg2[%c0_54, %c3_55, %63, %c3_56] : memref<1x4x18x36xf32, #tpu.memory_space<vmem>>, vector<1x1x8x32xf32>
    %65 = vector.shape_cast %64 : vector<1x1x8x32xf32> to vector<8x32xf32>
    %c1_i32_57 = arith.constant 1 : i32
    %66 = arith.addi %1, %c1_i32_57 : i32
    %c0_58 = arith.constant 0 : index
    %c0_59 = arith.constant 0 : index
    %67 = arith.index_cast %66 : i32 to index
    %c3_60 = arith.constant 3 : index
    %68 = vector.load %arg2[%c0_58, %c0_59, %67, %c3_60] : memref<1x4x18x36xf32, #tpu.memory_space<vmem>>, vector<1x1x8x32xf32>
    %69 = vector.shape_cast %68 : vector<1x1x8x32xf32> to vector<8x32xf32>
    %c1_i32_61 = arith.constant 1 : i32
    %70 = arith.addi %1, %c1_i32_61 : i32
    %c0_62 = arith.constant 0 : index
    %c1_63 = arith.constant 1 : index
    %71 = arith.index_cast %70 : i32 to index
    %c3_64 = arith.constant 3 : index
    %72 = vector.load %arg2[%c0_62, %c1_63, %71, %c3_64] : memref<1x4x18x36xf32, #tpu.memory_space<vmem>>, vector<1x1x8x32xf32>
    %73 = vector.shape_cast %72 : vector<1x1x8x32xf32> to vector<8x32xf32>
    %c1_i32_65 = arith.constant 1 : i32
    %74 = arith.addi %1, %c1_i32_65 : i32
    %c0_66 = arith.constant 0 : index
    %c2_67 = arith.constant 2 : index
    %75 = arith.index_cast %74 : i32 to index
    %c3_68 = arith.constant 3 : index
    %76 = vector.load %arg2[%c0_66, %c2_67, %75, %c3_68] : memref<1x4x18x36xf32, #tpu.memory_space<vmem>>, vector<1x1x8x32xf32>
    %77 = vector.shape_cast %76 : vector<1x1x8x32xf32> to vector<8x32xf32>
    %c1_i32_69 = arith.constant 1 : i32
    %78 = arith.addi %1, %c1_i32_69 : i32
    %c0_70 = arith.constant 0 : index
    %c3_71 = arith.constant 3 : index
    %79 = arith.index_cast %78 : i32 to index
    %c3_72 = arith.constant 3 : index
    %80 = vector.load %arg2[%c0_70, %c3_71, %79, %c3_72] : memref<1x4x18x36xf32, #tpu.memory_space<vmem>>, vector<1x1x8x32xf32>
    %81 = vector.shape_cast %80 : vector<1x1x8x32xf32> to vector<8x32xf32>
    %c2_i32_73 = arith.constant 2 : i32
    %82 = arith.addi %1, %c2_i32_73 : i32
    %c0_74 = arith.constant 0 : index
    %c0_75 = arith.constant 0 : index
    %83 = arith.index_cast %82 : i32 to index
    %c3_76 = arith.constant 3 : index
    %84 = vector.load %arg2[%c0_74, %c0_75, %83, %c3_76] : memref<1x4x18x36xf32, #tpu.memory_space<vmem>>, vector<1x1x8x32xf32>
    %85 = vector.shape_cast %84 : vector<1x1x8x32xf32> to vector<8x32xf32>
    %c2_i32_77 = arith.constant 2 : i32
    %86 = arith.addi %1, %c2_i32_77 : i32
    %c0_78 = arith.constant 0 : index
    %c1_79 = arith.constant 1 : index
    %87 = arith.index_cast %86 : i32 to index
    %c3_80 = arith.constant 3 : index
    %88 = vector.load %arg2[%c0_78, %c1_79, %87, %c3_80] : memref<1x4x18x36xf32, #tpu.memory_space<vmem>>, vector<1x1x8x32xf32>
    %89 = vector.shape_cast %88 : vector<1x1x8x32xf32> to vector<8x32xf32>
    %c2_i32_81 = arith.constant 2 : i32
    %90 = arith.addi %1, %c2_i32_81 : i32
    %c0_82 = arith.constant 0 : index
    %c2_83 = arith.constant 2 : index
    %91 = arith.index_cast %90 : i32 to index
    %c3_84 = arith.constant 3 : index
    %92 = vector.load %arg2[%c0_82, %c2_83, %91, %c3_84] : memref<1x4x18x36xf32, #tpu.memory_space<vmem>>, vector<1x1x8x32xf32>
    %93 = vector.shape_cast %92 : vector<1x1x8x32xf32> to vector<8x32xf32>
    %c2_i32_85 = arith.constant 2 : i32
    %94 = arith.addi %1, %c2_i32_85 : i32
    %c0_86 = arith.constant 0 : index
    %c3_87 = arith.constant 3 : index
    %95 = arith.index_cast %94 : i32 to index
    %c3_88 = arith.constant 3 : index
    %96 = vector.load %arg2[%c0_86, %c3_87, %95, %c3_88] : memref<1x4x18x36xf32, #tpu.memory_space<vmem>>, vector<1x1x8x32xf32>
    %97 = vector.shape_cast %96 : vector<1x1x8x32xf32> to vector<8x32xf32>
    %c0_89 = arith.constant 0 : index
    %98 = memref.load %arg5[%c0_89] : memref<4xf32, #tpu.memory_space<smem>>
    %cst = arith.constant 0.000000e+00 : f32
    %99 = vector.broadcast %cst : f32 to vector<8x32xf32>
    %c0_90 = arith.constant 0 : index
    %c0_91 = arith.constant 0 : index
    %c3_92 = arith.constant 3 : index
    %c0_93 = arith.constant 0 : index
    %100 = vector.load %arg3[%c0_90, %c0_91, %c3_92, %c0_93] : memref<4x4x4x32xf32, #tpu.memory_space<vmem>>, vector<1x1x1x32xf32>
    %101 = vector.shape_cast %100 : vector<1x1x1x32xf32> to vector<1x32xf32>
    %c0_94 = arith.constant 0 : index
    %c0_95 = arith.constant 0 : index
    %c3_96 = arith.constant 3 : index
    %c0_97 = arith.constant 0 : index
    %102 = vector.load %arg4[%c0_94, %c0_95, %c3_96, %c0_97] : memref<4x4x4x32xf32, #tpu.memory_space<vmem>>, vector<1x1x1x32xf32>
    %103 = vector.shape_cast %102 : vector<1x1x1x32xf32> to vector<1x32xf32>
    %104 = vector.broadcast %101 : vector<1x32xf32> to vector<8x32xf32>
    %105 = arith.mulf %5, %104 : vector<8x32xf32>
    %106 = arith.addf %99, %105 : vector<8x32xf32>
    %107 = vector.broadcast %103 : vector<1x32xf32> to vector<8x32xf32>
    %108 = arith.mulf %53, %107 : vector<8x32xf32>
    %109 = arith.addf %106, %108 : vector<8x32xf32>
    %c0_98 = arith.constant 0 : index
    %c0_99 = arith.constant 0 : index
    %c1_100 = arith.constant 1 : index
    %c0_101 = arith.constant 0 : index
    %110 = vector.load %arg3[%c0_98, %c0_99, %c1_100, %c0_101] : memref<4x4x4x32xf32, #tpu.memory_space<vmem>>, vector<1x1x1x32xf32>
    %111 = vector.shape_cast %110 : vector<1x1x1x32xf32> to vector<1x32xf32>
    %c0_102 = arith.constant 0 : index
    %c0_103 = arith.constant 0 : index
    %c1_104 = arith.constant 1 : index
    %c0_105 = arith.constant 0 : index
    %112 = vector.load %arg4[%c0_102, %c0_103, %c1_104, %c0_105] : memref<4x4x4x32xf32, #tpu.memory_space<vmem>>, vector<1x1x1x32xf32>
    %113 = vector.shape_cast %112 : vector<1x1x1x32xf32> to vector<1x32xf32>
    %114 = vector.broadcast %111 : vector<1x32xf32> to vector<8x32xf32>
    %115 = arith.mulf %21, %114 : vector<8x32xf32>
    %116 = arith.addf %109, %115 : vector<8x32xf32>
    %117 = vector.broadcast %113 : vector<1x32xf32> to vector<8x32xf32>
    %118 = arith.mulf %69, %117 : vector<8x32xf32>
    %119 = arith.addf %116, %118 : vector<8x32xf32>
    %c0_106 = arith.constant 0 : index
    %c1_107 = arith.constant 1 : index
    %c3_108 = arith.constant 3 : index
    %c0_109 = arith.constant 0 : index
    %120 = vector.load %arg3[%c0_106, %c1_107, %c3_108, %c0_109] : memref<4x4x4x32xf32, #tpu.memory_space<vmem>>, vector<1x1x1x32xf32>
    %121 = vector.shape_cast %120 : vector<1x1x1x32xf32> to vector<1x32xf32>
    %c0_110 = arith.constant 0 : index
    %c1_111 = arith.constant 1 : index
    %c3_112 = arith.constant 3 : index
    %c0_113 = arith.constant 0 : index
    %122 = vector.load %arg4[%c0_110, %c1_111, %c3_112, %c0_113] : memref<4x4x4x32xf32, #tpu.memory_space<vmem>>, vector<1x1x1x32xf32>
    %123 = vector.shape_cast %122 : vector<1x1x1x32xf32> to vector<1x32xf32>
    %124 = vector.broadcast %121 : vector<1x32xf32> to vector<8x32xf32>
    %125 = arith.mulf %9, %124 : vector<8x32xf32>
    %126 = arith.addf %119, %125 : vector<8x32xf32>
    %127 = vector.broadcast %123 : vector<1x32xf32> to vector<8x32xf32>
    %128 = arith.mulf %57, %127 : vector<8x32xf32>
    %129 = arith.addf %126, %128 : vector<8x32xf32>
    %c0_114 = arith.constant 0 : index
    %c1_115 = arith.constant 1 : index
    %c1_116 = arith.constant 1 : index
    %c0_117 = arith.constant 0 : index
    %130 = vector.load %arg3[%c0_114, %c1_115, %c1_116, %c0_117] : memref<4x4x4x32xf32, #tpu.memory_space<vmem>>, vector<1x1x1x32xf32>
    %131 = vector.shape_cast %130 : vector<1x1x1x32xf32> to vector<1x32xf32>
    %c0_118 = arith.constant 0 : index
    %c1_119 = arith.constant 1 : index
    %c1_120 = arith.constant 1 : index
    %c0_121 = arith.constant 0 : index
    %132 = vector.load %arg4[%c0_118, %c1_119, %c1_120, %c0_121] : memref<4x4x4x32xf32, #tpu.memory_space<vmem>>, vector<1x1x1x32xf32>
    %133 = vector.shape_cast %132 : vector<1x1x1x32xf32> to vector<1x32xf32>
    %134 = vector.broadcast %131 : vector<1x32xf32> to vector<8x32xf32>
    %135 = arith.mulf %25, %134 : vector<8x32xf32>
    %136 = arith.addf %129, %135 : vector<8x32xf32>
    %137 = vector.broadcast %133 : vector<1x32xf32> to vector<8x32xf32>
    %138 = arith.mulf %73, %137 : vector<8x32xf32>
    %139 = arith.addf %136, %138 : vector<8x32xf32>
    %c0_122 = arith.constant 0 : index
    %c2_123 = arith.constant 2 : index
    %c3_124 = arith.constant 3 : index
    %c0_125 = arith.constant 0 : index
    %140 = vector.load %arg3[%c0_122, %c2_123, %c3_124, %c0_125] : memref<4x4x4x32xf32, #tpu.memory_space<vmem>>, vector<1x1x1x32xf32>
    %141 = vector.shape_cast %140 : vector<1x1x1x32xf32> to vector<1x32xf32>
    %c0_126 = arith.constant 0 : index
    %c2_127 = arith.constant 2 : index
    %c3_128 = arith.constant 3 : index
    %c0_129 = arith.constant 0 : index
    %142 = vector.load %arg4[%c0_126, %c2_127, %c3_128, %c0_129] : memref<4x4x4x32xf32, #tpu.memory_space<vmem>>, vector<1x1x1x32xf32>
    %143 = vector.shape_cast %142 : vector<1x1x1x32xf32> to vector<1x32xf32>
    %144 = vector.broadcast %141 : vector<1x32xf32> to vector<8x32xf32>
    %145 = arith.mulf %13, %144 : vector<8x32xf32>
    %146 = arith.addf %139, %145 : vector<8x32xf32>
    %147 = vector.broadcast %143 : vector<1x32xf32> to vector<8x32xf32>
    %148 = arith.mulf %61, %147 : vector<8x32xf32>
    %149 = arith.addf %146, %148 : vector<8x32xf32>
    %c0_130 = arith.constant 0 : index
    %c2_131 = arith.constant 2 : index
    %c1_132 = arith.constant 1 : index
    %c0_133 = arith.constant 0 : index
    %150 = vector.load %arg3[%c0_130, %c2_131, %c1_132, %c0_133] : memref<4x4x4x32xf32, #tpu.memory_space<vmem>>, vector<1x1x1x32xf32>
    %151 = vector.shape_cast %150 : vector<1x1x1x32xf32> to vector<1x32xf32>
    %c0_134 = arith.constant 0 : index
    %c2_135 = arith.constant 2 : index
    %c1_136 = arith.constant 1 : index
    %c0_137 = arith.constant 0 : index
    %152 = vector.load %arg4[%c0_134, %c2_135, %c1_136, %c0_137] : memref<4x4x4x32xf32, #tpu.memory_space<vmem>>, vector<1x1x1x32xf32>
    %153 = vector.shape_cast %152 : vector<1x1x1x32xf32> to vector<1x32xf32>
    %154 = vector.broadcast %151 : vector<1x32xf32> to vector<8x32xf32>
    %155 = arith.mulf %29, %154 : vector<8x32xf32>
    %156 = arith.addf %149, %155 : vector<8x32xf32>
    %157 = vector.broadcast %153 : vector<1x32xf32> to vector<8x32xf32>
    %158 = arith.mulf %77, %157 : vector<8x32xf32>
    %159 = arith.addf %156, %158 : vector<8x32xf32>
    %c0_138 = arith.constant 0 : index
    %c3_139 = arith.constant 3 : index
    %c3_140 = arith.constant 3 : index
    %c0_141 = arith.constant 0 : index
    %160 = vector.load %arg3[%c0_138, %c3_139, %c3_140, %c0_141] : memref<4x4x4x32xf32, #tpu.memory_space<vmem>>, vector<1x1x1x32xf32>
    %161 = vector.shape_cast %160 : vector<1x1x1x32xf32> to vector<1x32xf32>
    %c0_142 = arith.constant 0 : index
    %c3_143 = arith.constant 3 : index
    %c3_144 = arith.constant 3 : index
    %c0_145 = arith.constant 0 : index
    %162 = vector.load %arg4[%c0_142, %c3_143, %c3_144, %c0_145] : memref<4x4x4x32xf32, #tpu.memory_space<vmem>>, vector<1x1x1x32xf32>
    %163 = vector.shape_cast %162 : vector<1x1x1x32xf32> to vector<1x32xf32>
    %164 = vector.broadcast %161 : vector<1x32xf32> to vector<8x32xf32>
    %165 = arith.mulf %17, %164 : vector<8x32xf32>
    %166 = arith.addf %159, %165 : vector<8x32xf32>
    %167 = vector.broadcast %163 : vector<1x32xf32> to vector<8x32xf32>
    %168 = arith.mulf %65, %167 : vector<8x32xf32>
    %169 = arith.addf %166, %168 : vector<8x32xf32>
    %c0_146 = arith.constant 0 : index
    %c3_147 = arith.constant 3 : index
    %c1_148 = arith.constant 1 : index
    %c0_149 = arith.constant 0 : index
    %170 = vector.load %arg3[%c0_146, %c3_147, %c1_148, %c0_149] : memref<4x4x4x32xf32, #tpu.memory_space<vmem>>, vector<1x1x1x32xf32>
    %171 = vector.shape_cast %170 : vector<1x1x1x32xf32> to vector<1x32xf32>
    %c0_150 = arith.constant 0 : index
    %c3_151 = arith.constant 3 : index
    %c1_152 = arith.constant 1 : index
    %c0_153 = arith.constant 0 : index
    %172 = vector.load %arg4[%c0_150, %c3_151, %c1_152, %c0_153] : memref<4x4x4x32xf32, #tpu.memory_space<vmem>>, vector<1x1x1x32xf32>
    %173 = vector.shape_cast %172 : vector<1x1x1x32xf32> to vector<1x32xf32>
    %174 = vector.broadcast %171 : vector<1x32xf32> to vector<8x32xf32>
    %175 = arith.mulf %33, %174 : vector<8x32xf32>
    %176 = arith.addf %169, %175 : vector<8x32xf32>
    %177 = vector.broadcast %173 : vector<1x32xf32> to vector<8x32xf32>
    %178 = arith.mulf %81, %177 : vector<8x32xf32>
    %179 = arith.addf %176, %178 : vector<8x32xf32>
    %180 = vector.broadcast %98 : f32 to vector<8x32xf32>
    %181 = arith.addf %179, %180 : vector<8x32xf32>
    %c0_154 = arith.constant 0 : index
    %c0_155 = arith.constant 0 : index
    %c0_156 = arith.constant 0 : index
    %c0_157 = arith.constant 0 : index
    %182 = vector.load %arg6[%c0_154, %c0_155, %c0_156, %c0_157] : memref<1x4x8x64xf32, #tpu.memory_space<vmem>>, vector<1x1x8x32xf32>
    %183 = vector.shape_cast %182 : vector<1x1x8x32xf32> to vector<8x32xf32>
    %184 = vector.shape_cast %181 : vector<8x32xf32> to vector<1x1x8x32xf32>
    tpu.vector_store %arg6[%c0_154, %c0_155, %c0_156, %c0_157], %184 {strides = array<i32>} : memref<1x4x8x64xf32, #tpu.memory_space<vmem>>, vector<1x1x8x32xf32>,
    %cst_158 = arith.constant 0.000000e+00 : f32
    %185 = vector.broadcast %cst_158 : f32 to vector<8x32xf32>
    %c0_159 = arith.constant 0 : index
    %c0_160 = arith.constant 0 : index
    %c2_161 = arith.constant 2 : index
    %c0_162 = arith.constant 0 : index
    %186 = vector.load %arg3[%c0_159, %c0_160, %c2_161, %c0_162] : memref<4x4x4x32xf32, #tpu.memory_space<vmem>>, vector<1x1x1x32xf32>
    %187 = vector.shape_cast %186 : vector<1x1x1x32xf32> to vector<1x32xf32>
    %c0_163 = arith.constant 0 : index
    %c0_164 = arith.constant 0 : index
    %c2_165 = arith.constant 2 : index
    %c0_166 = arith.constant 0 : index
    %188 = vector.load %arg4[%c0_163, %c0_164, %c2_165, %c0_166] : memref<4x4x4x32xf32, #tpu.memory_space<vmem>>, vector<1x1x1x32xf32>
    %189 = vector.shape_cast %188 : vector<1x1x1x32xf32> to vector<1x32xf32>
    %190 = vector.broadcast %187 : vector<1x32xf32> to vector<8x32xf32>
    %191 = arith.mulf %21, %190 : vector<8x32xf32>
    %192 = arith.addf %185, %191 : vector<8x32xf32>
    %193 = vector.broadcast %189 : vector<1x32xf32> to vector<8x32xf32>
    %194 = arith.mulf %69, %193 : vector<8x32xf32>
    %195 = arith.addf %192, %194 : vector<8x32xf32>
    %c0_167 = arith.constant 0 : index
    %c0_168 = arith.constant 0 : index
    %c0_169 = arith.constant 0 : index
    %c0_170 = arith.constant 0 : index
    %196 = vector.load %arg3[%c0_167, %c0_168, %c0_169, %c0_170] : memref<4x4x4x32xf32, #tpu.memory_space<vmem>>, vector<1x1x1x32xf32>
    %197 = vector.shape_cast %196 : vector<1x1x1x32xf32> to vector<1x32xf32>
    %c0_171 = arith.constant 0 : index
    %c0_172 = arith.constant 0 : index
    %c0_173 = arith.constant 0 : index
    %c0_174 = arith.constant 0 : index
    %198 = vector.load %arg4[%c0_171, %c0_172, %c0_173, %c0_174] : memref<4x4x4x32xf32, #tpu.memory_space<vmem>>, vector<1x1x1x32xf32>
    %199 = vector.shape_cast %198 : vector<1x1x1x32xf32> to vector<1x32xf32>
    %200 = vector.broadcast %197 : vector<1x32xf32> to vector<8x32xf32>
    %201 = arith.mulf %37, %200 : vector<8x32xf32>
    %202 = arith.addf %195, %201 : vector<8x32xf32>
    %203 = vector.broadcast %199 : vector<1x32xf32> to vector<8x32xf32>
    %204 = arith.mulf %85, %203 : vector<8x32xf32>
    %205 = arith.addf %202, %204 : vector<8x32xf32>
    %c0_175 = arith.constant 0 : index
    %c1_176 = arith.constant 1 : index
    %c2_177 = arith.constant 2 : index
    %c0_178 = arith.constant 0 : index
    %206 = vector.load %arg3[%c0_175, %c1_176, %c2_177, %c0_178] : memref<4x4x4x32xf32, #tpu.memory_space<vmem>>, vector<1x1x1x32xf32>
    %207 = vector.shape_cast %206 : vector<1x1x1x32xf32> to vector<1x32xf32>
    %c0_179 = arith.constant 0 : index
    %c1_180 = arith.constant 1 : index
    %c2_181 = arith.constant 2 : index
    %c0_182 = arith.constant 0 : index
    %208 = vector.load %arg4[%c0_179, %c1_180, %c2_181, %c0_182] : memref<4x4x4x32xf32, #tpu.memory_space<vmem>>, vector<1x1x1x32xf32>
    %209 = vector.shape_cast %208 : vector<1x1x1x32xf32> to vector<1x32xf32>
    %210 = vector.broadcast %207 : vector<1x32xf32> to vector<8x32xf32>
    %211 = arith.mulf %25, %210 : vector<8x32xf32>
    %212 = arith.addf %205, %211 : vector<8x32xf32>
    %213 = vector.broadcast %209 : vector<1x32xf32> to vector<8x32xf32>
    %214 = arith.mulf %73, %213 : vector<8x32xf32>
    %215 = arith.addf %212, %214 : vector<8x32xf32>
    %c0_183 = arith.constant 0 : index
    %c1_184 = arith.constant 1 : index
    %c0_185 = arith.constant 0 : index
    %c0_186 = arith.constant 0 : index
    %216 = vector.load %arg3[%c0_183, %c1_184, %c0_185, %c0_186] : memref<4x4x4x32xf32, #tpu.memory_space<vmem>>, vector<1x1x1x32xf32>
    %217 = vector.shape_cast %216 : vector<1x1x1x32xf32> to vector<1x32xf32>
    %c0_187 = arith.constant 0 : index
    %c1_188 = arith.constant 1 : index
    %c0_189 = arith.constant 0 : index
    %c0_190 = arith.constant 0 : index
    %218 = vector.load %arg4[%c0_187, %c1_188, %c0_189, %c0_190] : memref<4x4x4x32xf32, #tpu.memory_space<vmem>>, vector<1x1x1x32xf32>
    %219 = vector.shape_cast %218 : vector<1x1x1x32xf32> to vector<1x32xf32>
    %220 = vector.broadcast %217 : vector<1x32xf32> to vector<8x32xf32>
    %221 = arith.mulf %41, %220 : vector<8x32xf32>
    %222 = arith.addf %215, %221 : vector<8x32xf32>
    %223 = vector.broadcast %219 : vector<1x32xf32> to vector<8x32xf32>
    %224 = arith.mulf %89, %223 : vector<8x32xf32>
    %225 = arith.addf %222, %224 : vector<8x32xf32>
    %c0_191 = arith.constant 0 : index
    %c2_192 = arith.constant 2 : index
    %c2_193 = arith.constant 2 : index
    %c0_194 = arith.constant 0 : index
    %226 = vector.load %arg3[%c0_191, %c2_192, %c2_193, %c0_194] : memref<4x4x4x32xf32, #tpu.memory_space<vmem>>, vector<1x1x1x32xf32>
    %227 = vector.shape_cast %226 : vector<1x1x1x32xf32> to vector<1x32xf32>
    %c0_195 = arith.constant 0 : index
    %c2_196 = arith.constant 2 : index
    %c2_197 = arith.constant 2 : index
    %c0_198 = arith.constant 0 : index
    %228 = vector.load %arg4[%c0_195, %c2_196, %c2_197, %c0_198] : memref<4x4x4x32xf32, #tpu.memory_space<vmem>>, vector<1x1x1x32xf32>
    %229 = vector.shape_cast %228 : vector<1x1x1x32xf32> to vector<1x32xf32>
    %230 = vector.broadcast %227 : vector<1x32xf32> to vector<8x32xf32>
    %231 = arith.mulf %29, %230 : vector<8x32xf32>
    %232 = arith.addf %225, %231 : vector<8x32xf32>
    %233 = vector.broadcast %229 : vector<1x32xf32> to vector<8x32xf32>
    %234 = arith.mulf %77, %233 : vector<8x32xf32>
    %235 = arith.addf %232, %234 : vector<8x32xf32>
    %c0_199 = arith.constant 0 : index
    %c2_200 = arith.constant 2 : index
    %c0_201 = arith.constant 0 : index
    %c0_202 = arith.constant 0 : index
    %236 = vector.load %arg3[%c0_199, %c2_200, %c0_201, %c0_202] : memref<4x4x4x32xf32, #tpu.memory_space<vmem>>, vector<1x1x1x32xf32>
    %237 = vector.shape_cast %236 : vector<1x1x1x32xf32> to vector<1x32xf32>
    %c0_203 = arith.constant 0 : index
    %c2_204 = arith.constant 2 : index
    %c0_205 = arith.constant 0 : index
    %c0_206 = arith.constant 0 : index
    %238 = vector.load %arg4[%c0_203, %c2_204, %c0_205, %c0_206] : memref<4x4x4x32xf32, #tpu.memory_space<vmem>>, vector<1x1x1x32xf32>
    %239 = vector.shape_cast %238 : vector<1x1x1x32xf32> to vector<1x32xf32>
    %240 = vector.broadcast %237 : vector<1x32xf32> to vector<8x32xf32>
    %241 = arith.mulf %45, %240 : vector<8x32xf32>
    %242 = arith.addf %235, %241 : vector<8x32xf32>
    %243 = vector.broadcast %239 : vector<1x32xf32> to vector<8x32xf32>
    %244 = arith.mulf %93, %243 : vector<8x32xf32>
    %245 = arith.addf %242, %244 : vector<8x32xf32>
    %c0_207 = arith.constant 0 : index
    %c3_208 = arith.constant 3 : index
    %c2_209 = arith.constant 2 : index
    %c0_210 = arith.constant 0 : index
    %246 = vector.load %arg3[%c0_207, %c3_208, %c2_209, %c0_210] : memref<4x4x4x32xf32, #tpu.memory_space<vmem>>, vector<1x1x1x32xf32>
    %247 = vector.shape_cast %246 : vector<1x1x1x32xf32> to vector<1x32xf32>
    %c0_211 = arith.constant 0 : index
    %c3_212 = arith.constant 3 : index
    %c2_213 = arith.constant 2 : index
    %c0_214 = arith.constant 0 : index
    %248 = vector.load %arg4[%c0_211, %c3_212, %c2_213, %c0_214] : memref<4x4x4x32xf32, #tpu.memory_space<vmem>>, vector<1x1x1x32xf32>
    %249 = vector.shape_cast %248 : vector<1x1x1x32xf32> to vector<1x32xf32>
    %250 = vector.broadcast %247 : vector<1x32xf32> to vector<8x32xf32>
    %251 = arith.mulf %33, %250 : vector<8x32xf32>
    %252 = arith.addf %245, %251 : vector<8x32xf32>
    %253 = vector.broadcast %249 : vector<1x32xf32> to vector<8x32xf32>
    %254 = arith.mulf %81, %253 : vector<8x32xf32>
    %255 = arith.addf %252, %254 : vector<8x32xf32>
    %c0_215 = arith.constant 0 : index
    %c3_216 = arith.constant 3 : index
    %c0_217 = arith.constant 0 : index
    %c0_218 = arith.constant 0 : index
    %256 = vector.load %arg3[%c0_215, %c3_216, %c0_217, %c0_218] : memref<4x4x4x32xf32, #tpu.memory_space<vmem>>, vector<1x1x1x32xf32>
    %257 = vector.shape_cast %256 : vector<1x1x1x32xf32> to vector<1x32xf32>
    %c0_219 = arith.constant 0 : index
    %c3_220 = arith.constant 3 : index
    %c0_221 = arith.constant 0 : index
    %c0_222 = arith.constant 0 : index
    %258 = vector.load %arg4[%c0_219, %c3_220, %c0_221, %c0_222] : memref<4x4x4x32xf32, #tpu.memory_space<vmem>>, vector<1x1x1x32xf32>
    %259 = vector.shape_cast %258 : vector<1x1x1x32xf32> to vector<1x32xf32>
    %260 = vector.broadcast %257 : vector<1x32xf32> to vector<8x32xf32>
    %261 = arith.mulf %49, %260 : vector<8x32xf32>
    %262 = arith.addf %255, %261 : vector<8x32xf32>
    %263 = vector.broadcast %259 : vector<1x32xf32> to vector<8x32xf32>
    %264 = arith.mulf %97, %263 : vector<8x32xf32>
    %265 = arith.addf %262, %264 : vector<8x32xf32>
    %266 = vector.broadcast %98 : f32 to vector<8x32xf32>
    %267 = arith.addf %265, %266 : vector<8x32xf32>
    %c0_223 = arith.constant 0 : index
    %c0_224 = arith.constant 0 : index
    %c0_225 = arith.constant 0 : index
    %c32 = arith.constant 32 : index
    %268 = vector.load %arg6[%c0_223, %c0_224, %c0_225, %c32] : memref<1x4x8x64xf32, #tpu.memory_space<vmem>>, vector<1x1x8x32xf32>
    %269 = vector.shape_cast %268 : vector<1x1x8x32xf32> to vector<8x32xf32>
    %270 = vector.shape_cast %267 : vector<8x32xf32> to vector<1x1x8x32xf32>
    tpu.vector_store %arg6[%c0_223, %c0_224, %c0_225, %c32], %270 {strides = array<i32>} : memref<1x4x8x64xf32, #tpu.memory_space<vmem>>, vector<1x1x8x32xf32>,
    %c1_226 = arith.constant 1 : index
    %271 = memref.load %arg5[%c1_226] : memref<4xf32, #tpu.memory_space<smem>>
    %cst_227 = arith.constant 0.000000e+00 : f32
    %272 = vector.broadcast %cst_227 : f32 to vector<8x32xf32>
    %c1_228 = arith.constant 1 : index
    %c0_229 = arith.constant 0 : index
    %c3_230 = arith.constant 3 : index
    %c0_231 = arith.constant 0 : index
    %273 = vector.load %arg3[%c1_228, %c0_229, %c3_230, %c0_231] : memref<4x4x4x32xf32, #tpu.memory_space<vmem>>, vector<1x1x1x32xf32>
    %274 = vector.shape_cast %273 : vector<1x1x1x32xf32> to vector<1x32xf32>
    %c1_232 = arith.constant 1 : index
    %c0_233 = arith.constant 0 : index
    %c3_234 = arith.constant 3 : index
    %c0_235 = arith.constant 0 : index
    %275 = vector.load %arg4[%c1_232, %c0_233, %c3_234, %c0_235] : memref<4x4x4x32xf32, #tpu.memory_space<vmem>>, vector<1x1x1x32xf32>
    %276 = vector.shape_cast %275 : vector<1x1x1x32xf32> to vector<1x32xf32>
    %277 = vector.broadcast %274 : vector<1x32xf32> to vector<8x32xf32>
    %278 = arith.mulf %5, %277 : vector<8x32xf32>
    %279 = arith.addf %272, %278 : vector<8x32xf32>
    %280 = vector.broadcast %276 : vector<1x32xf32> to vector<8x32xf32>
    %281 = arith.mulf %53, %280 : vector<8x32xf32>
    %282 = arith.addf %279, %281 : vector<8x32xf32>
    %c1_236 = arith.constant 1 : index
    %c0_237 = arith.constant 0 : index
    %c1_238 = arith.constant 1 : index
    %c0_239 = arith.constant 0 : index
    %283 = vector.load %arg3[%c1_236, %c0_237, %c1_238, %c0_239] : memref<4x4x4x32xf32, #tpu.memory_space<vmem>>, vector<1x1x1x32xf32>
    %284 = vector.shape_cast %283 : vector<1x1x1x32xf32> to vector<1x32xf32>
    %c1_240 = arith.constant 1 : index
    %c0_241 = arith.constant 0 : index
    %c1_242 = arith.constant 1 : index
    %c0_243 = arith.constant 0 : index
    %285 = vector.load %arg4[%c1_240, %c0_241, %c1_242, %c0_243] : memref<4x4x4x32xf32, #tpu.memory_space<vmem>>, vector<1x1x1x32xf32>
    %286 = vector.shape_cast %285 : vector<1x1x1x32xf32> to vector<1x32xf32>
    %287 = vector.broadcast %284 : vector<1x32xf32> to vector<8x32xf32>
    %288 = arith.mulf %21, %287 : vector<8x32xf32>
    %289 = arith.addf %282, %288 : vector<8x32xf32>
    %290 = vector.broadcast %286 : vector<1x32xf32> to vector<8x32xf32>
    %291 = arith.mulf %69, %290 : vector<8x32xf32>
    %292 = arith.addf %289, %291 : vector<8x32xf32>
    %c1_244 = arith.constant 1 : index
    %c1_245 = arith.constant 1 : index
    %c3_246 = arith.constant 3 : index
    %c0_247 = arith.constant 0 : index
    %293 = vector.load %arg3[%c1_244, %c1_245, %c3_246, %c0_247] : memref<4x4x4x32xf32, #tpu.memory_space<vmem>>, vector<1x1x1x32xf32>
    %294 = vector.shape_cast %293 : vector<1x1x1x32xf32> to vector<1x32xf32>
    %c1_248 = arith.constant 1 : index
    %c1_249 = arith.constant 1 : index
    %c3_250 = arith.constant 3 : index
    %c0_251 = arith.constant 0 : index
    %295 = vector.load %arg4[%c1_248, %c1_249, %c3_250, %c0_251] : memref<4x4x4x32xf32, #tpu.memory_space<vmem>>, vector<1x1x1x32xf32>
    %296 = vector.shape_cast %295 : vector<1x1x1x32xf32> to vector<1x32xf32>
    %297 = vector.broadcast %294 : vector<1x32xf32> to vector<8x32xf32>
    %298 = arith.mulf %9, %297 : vector<8x32xf32>
    %299 = arith.addf %292, %298 : vector<8x32xf32>
    %300 = vector.broadcast %296 : vector<1x32xf32> to vector<8x32xf32>
    %301 = arith.mulf %57, %300 : vector<8x32xf32>
    %302 = arith.addf %299, %301 : vector<8x32xf32>
    %c1_252 = arith.constant 1 : index
    %c1_253 = arith.constant 1 : index
    %c1_254 = arith.constant 1 : index
    %c0_255 = arith.constant 0 : index
    %303 = vector.load %arg3[%c1_252, %c1_253, %c1_254, %c0_255] : memref<4x4x4x32xf32, #tpu.memory_space<vmem>>, vector<1x1x1x32xf32>
    %304 = vector.shape_cast %303 : vector<1x1x1x32xf32> to vector<1x32xf32>
    %c1_256 = arith.constant 1 : index
    %c1_257 = arith.constant 1 : index
    %c1_258 = arith.constant 1 : index
    %c0_259 = arith.constant 0 : index
    %305 = vector.load %arg4[%c1_256, %c1_257, %c1_258, %c0_259] : memref<4x4x4x32xf32, #tpu.memory_space<vmem>>, vector<1x1x1x32xf32>
    %306 = vector.shape_cast %305 : vector<1x1x1x32xf32> to vector<1x32xf32>
    %307 = vector.broadcast %304 : vector<1x32xf32> to vector<8x32xf32>
    %308 = arith.mulf %25, %307 : vector<8x32xf32>
    %309 = arith.addf %302, %308 : vector<8x32xf32>
    %310 = vector.broadcast %306 : vector<1x32xf32> to vector<8x32xf32>
    %311 = arith.mulf %73, %310 : vector<8x32xf32>
    %312 = arith.addf %309, %311 : vector<8x32xf32>
    %c1_260 = arith.constant 1 : index
    %c2_261 = arith.constant 2 : index
    %c3_262 = arith.constant 3 : index
    %c0_263 = arith.constant 0 : index
    %313 = vector.load %arg3[%c1_260, %c2_261, %c3_262, %c0_263] : memref<4x4x4x32xf32, #tpu.memory_space<vmem>>, vector<1x1x1x32xf32>
    %314 = vector.shape_cast %313 : vector<1x1x1x32xf32> to vector<1x32xf32>
    %c1_264 = arith.constant 1 : index
    %c2_265 = arith.constant 2 : index
    %c3_266 = arith.constant 3 : index
    %c0_267 = arith.constant 0 : index
    %315 = vector.load %arg4[%c1_264, %c2_265, %c3_266, %c0_267] : memref<4x4x4x32xf32, #tpu.memory_space<vmem>>, vector<1x1x1x32xf32>
    %316 = vector.shape_cast %315 : vector<1x1x1x32xf32> to vector<1x32xf32>
    %317 = vector.broadcast %314 : vector<1x32xf32> to vector<8x32xf32>
    %318 = arith.mulf %13, %317 : vector<8x32xf32>
    %319 = arith.addf %312, %318 : vector<8x32xf32>
    %320 = vector.broadcast %316 : vector<1x32xf32> to vector<8x32xf32>
    %321 = arith.mulf %61, %320 : vector<8x32xf32>
    %322 = arith.addf %319, %321 : vector<8x32xf32>
    %c1_268 = arith.constant 1 : index
    %c2_269 = arith.constant 2 : index
    %c1_270 = arith.constant 1 : index
    %c0_271 = arith.constant 0 : index
    %323 = vector.load %arg3[%c1_268, %c2_269, %c1_270, %c0_271] : memref<4x4x4x32xf32, #tpu.memory_space<vmem>>, vector<1x1x1x32xf32>
    %324 = vector.shape_cast %323 : vector<1x1x1x32xf32> to vector<1x32xf32>
    %c1_272 = arith.constant 1 : index
    %c2_273 = arith.constant 2 : index
    %c1_274 = arith.constant 1 : index
    %c0_275 = arith.constant 0 : index
    %325 = vector.load %arg4[%c1_272, %c2_273, %c1_274, %c0_275] : memref<4x4x4x32xf32, #tpu.memory_space<vmem>>, vector<1x1x1x32xf32>
    %326 = vector.shape_cast %325 : vector<1x1x1x32xf32> to vector<1x32xf32>
    %327 = vector.broadcast %324 : vector<1x32xf32> to vector<8x32xf32>
    %328 = arith.mulf %29, %327 : vector<8x32xf32>
    %329 = arith.addf %322, %328 : vector<8x32xf32>
    %330 = vector.broadcast %326 : vector<1x32xf32> to vector<8x32xf32>
    %331 = arith.mulf %77, %330 : vector<8x32xf32>
    %332 = arith.addf %329, %331 : vector<8x32xf32>
    %c1_276 = arith.constant 1 : index
    %c3_277 = arith.constant 3 : index
    %c3_278 = arith.constant 3 : index
    %c0_279 = arith.constant 0 : index
    %333 = vector.load %arg3[%c1_276, %c3_277, %c3_278, %c0_279] : memref<4x4x4x32xf32, #tpu.memory_space<vmem>>, vector<1x1x1x32xf32>
    %334 = vector.shape_cast %333 : vector<1x1x1x32xf32> to vector<1x32xf32>
    %c1_280 = arith.constant 1 : index
    %c3_281 = arith.constant 3 : index
    %c3_282 = arith.constant 3 : index
    %c0_283 = arith.constant 0 : index
    %335 = vector.load %arg4[%c1_280, %c3_281, %c3_282, %c0_283] : memref<4x4x4x32xf32, #tpu.memory_space<vmem>>, vector<1x1x1x32xf32>
    %336 = vector.shape_cast %335 : vector<1x1x1x32xf32> to vector<1x32xf32>
    %337 = vector.broadcast %334 : vector<1x32xf32> to vector<8x32xf32>
    %338 = arith.mulf %17, %337 : vector<8x32xf32>
    %339 = arith.addf %332, %338 : vector<8x32xf32>
    %340 = vector.broadcast %336 : vector<1x32xf32> to vector<8x32xf32>
    %341 = arith.mulf %65, %340 : vector<8x32xf32>
    %342 = arith.addf %339, %341 : vector<8x32xf32>
    %c1_284 = arith.constant 1 : index
    %c3_285 = arith.constant 3 : index
    %c1_286 = arith.constant 1 : index
    %c0_287 = arith.constant 0 : index
    %343 = vector.load %arg3[%c1_284, %c3_285, %c1_286, %c0_287] : memref<4x4x4x32xf32, #tpu.memory_space<vmem>>, vector<1x1x1x32xf32>
    %344 = vector.shape_cast %343 : vector<1x1x1x32xf32> to vector<1x32xf32>
    %c1_288 = arith.constant 1 : index
    %c3_289 = arith.constant 3 : index
    %c1_290 = arith.constant 1 : index
    %c0_291 = arith.constant 0 : index
    %345 = vector.load %arg4[%c1_288, %c3_289, %c1_290, %c0_291] : memref<4x4x4x32xf32, #tpu.memory_space<vmem>>, vector<1x1x1x32xf32>
    %346 = vector.shape_cast %345 : vector<1x1x1x32xf32> to vector<1x32xf32>
    %347 = vector.broadcast %344 : vector<1x32xf32> to vector<8x32xf32>
    %348 = arith.mulf %33, %347 : vector<8x32xf32>
    %349 = arith.addf %342, %348 : vector<8x32xf32>
    %350 = vector.broadcast %346 : vector<1x32xf32> to vector<8x32xf32>
    %351 = arith.mulf %81, %350 : vector<8x32xf32>
    %352 = arith.addf %349, %351 : vector<8x32xf32>
    %353 = vector.broadcast %271 : f32 to vector<8x32xf32>
    %354 = arith.addf %352, %353 : vector<8x32xf32>
    %c0_292 = arith.constant 0 : index
    %c1_293 = arith.constant 1 : index
    %c0_294 = arith.constant 0 : index
    %c0_295 = arith.constant 0 : index
    %355 = vector.load %arg6[%c0_292, %c1_293, %c0_294, %c0_295] : memref<1x4x8x64xf32, #tpu.memory_space<vmem>>, vector<1x1x8x32xf32>
    %356 = vector.shape_cast %355 : vector<1x1x8x32xf32> to vector<8x32xf32>
    %357 = vector.shape_cast %354 : vector<8x32xf32> to vector<1x1x8x32xf32>
    tpu.vector_store %arg6[%c0_292, %c1_293, %c0_294, %c0_295], %357 {strides = array<i32>} : memref<1x4x8x64xf32, #tpu.memory_space<vmem>>, vector<1x1x8x32xf32>,
    %cst_296 = arith.constant 0.000000e+00 : f32
    %358 = vector.broadcast %cst_296 : f32 to vector<8x32xf32>
    %c1_297 = arith.constant 1 : index
    %c0_298 = arith.constant 0 : index
    %c2_299 = arith.constant 2 : index
    %c0_300 = arith.constant 0 : index
    %359 = vector.load %arg3[%c1_297, %c0_298, %c2_299, %c0_300] : memref<4x4x4x32xf32, #tpu.memory_space<vmem>>, vector<1x1x1x32xf32>
    %360 = vector.shape_cast %359 : vector<1x1x1x32xf32> to vector<1x32xf32>
    %c1_301 = arith.constant 1 : index
    %c0_302 = arith.constant 0 : index
    %c2_303 = arith.constant 2 : index
    %c0_304 = arith.constant 0 : index
    %361 = vector.load %arg4[%c1_301, %c0_302, %c2_303, %c0_304] : memref<4x4x4x32xf32, #tpu.memory_space<vmem>>, vector<1x1x1x32xf32>
    %362 = vector.shape_cast %361 : vector<1x1x1x32xf32> to vector<1x32xf32>
    %363 = vector.broadcast %360 : vector<1x32xf32> to vector<8x32xf32>
    %364 = arith.mulf %21, %363 : vector<8x32xf32>
    %365 = arith.addf %358, %364 : vector<8x32xf32>
    %366 = vector.broadcast %362 : vector<1x32xf32> to vector<8x32xf32>
    %367 = arith.mulf %69, %366 : vector<8x32xf32>
    %368 = arith.addf %365, %367 : vector<8x32xf32>
    %c1_305 = arith.constant 1 : index
    %c0_306 = arith.constant 0 : index
    %c0_307 = arith.constant 0 : index
    %c0_308 = arith.constant 0 : index
    %369 = vector.load %arg3[%c1_305, %c0_306, %c0_307, %c0_308] : memref<4x4x4x32xf32, #tpu.memory_space<vmem>>, vector<1x1x1x32xf32>
    %370 = vector.shape_cast %369 : vector<1x1x1x32xf32> to vector<1x32xf32>
    %c1_309 = arith.constant 1 : index
    %c0_310 = arith.constant 0 : index
    %c0_311 = arith.constant 0 : index
    %c0_312 = arith.constant 0 : index
    %371 = vector.load %arg4[%c1_309, %c0_310, %c0_311, %c0_312] : memref<4x4x4x32xf32, #tpu.memory_space<vmem>>, vector<1x1x1x32xf32>
    %372 = vector.shape_cast %371 : vector<1x1x1x32xf32> to vector<1x32xf32>
    %373 = vector.broadcast %370 : vector<1x32xf32> to vector<8x32xf32>
    %374 = arith.mulf %37, %373 : vector<8x32xf32>
    %375 = arith.addf %368, %374 : vector<8x32xf32>
    %376 = vector.broadcast %372 : vector<1x32xf32> to vector<8x32xf32>
    %377 = arith.mulf %85, %376 : vector<8x32xf32>
    %378 = arith.addf %375, %377 : vector<8x32xf32>
    %c1_313 = arith.constant 1 : index
    %c1_314 = arith.constant 1 : index
    %c2_315 = arith.constant 2 : index
    %c0_316 = arith.constant 0 : index
    %379 = vector.load %arg3[%c1_313, %c1_314, %c2_315, %c0_316] : memref<4x4x4x32xf32, #tpu.memory_space<vmem>>, vector<1x1x1x32xf32>
    %380 = vector.shape_cast %379 : vector<1x1x1x32xf32> to vector<1x32xf32>
    %c1_317 = arith.constant 1 : index
    %c1_318 = arith.constant 1 : index
    %c2_319 = arith.constant 2 : index
    %c0_320 = arith.constant 0 : index
    %381 = vector.load %arg4[%c1_317, %c1_318, %c2_319, %c0_320] : memref<4x4x4x32xf32, #tpu.memory_space<vmem>>, vector<1x1x1x32xf32>
    %382 = vector.shape_cast %381 : vector<1x1x1x32xf32> to vector<1x32xf32>
    %383 = vector.broadcast %380 : vector<1x32xf32> to vector<8x32xf32>
    %384 = arith.mulf %25, %383 : vector<8x32xf32>
    %385 = arith.addf %378, %384 : vector<8x32xf32>
    %386 = vector.broadcast %382 : vector<1x32xf32> to vector<8x32xf32>
    %387 = arith.mulf %73, %386 : vector<8x32xf32>
    %388 = arith.addf %385, %387 : vector<8x32xf32>
    %c1_321 = arith.constant 1 : index
    %c1_322 = arith.constant 1 : index
    %c0_323 = arith.constant 0 : index
    %c0_324 = arith.constant 0 : index
    %389 = vector.load %arg3[%c1_321, %c1_322, %c0_323, %c0_324] : memref<4x4x4x32xf32, #tpu.memory_space<vmem>>, vector<1x1x1x32xf32>
    %390 = vector.shape_cast %389 : vector<1x1x1x32xf32> to vector<1x32xf32>
    %c1_325 = arith.constant 1 : index
    %c1_326 = arith.constant 1 : index
    %c0_327 = arith.constant 0 : index
    %c0_328 = arith.constant 0 : index
    %391 = vector.load %arg4[%c1_325, %c1_326, %c0_327, %c0_328] : memref<4x4x4x32xf32, #tpu.memory_space<vmem>>, vector<1x1x1x32xf32>
    %392 = vector.shape_cast %391 : vector<1x1x1x32xf32> to vector<1x32xf32>
    %393 = vector.broadcast %390 : vector<1x32xf32> to vector<8x32xf32>
    %394 = arith.mulf %41, %393 : vector<8x32xf32>
    %395 = arith.addf %388, %394 : vector<8x32xf32>
    %396 = vector.broadcast %392 : vector<1x32xf32> to vector<8x32xf32>
    %397 = arith.mulf %89, %396 : vector<8x32xf32>
    %398 = arith.addf %395, %397 : vector<8x32xf32>
    %c1_329 = arith.constant 1 : index
    %c2_330 = arith.constant 2 : index
    %c2_331 = arith.constant 2 : index
    %c0_332 = arith.constant 0 : index
    %399 = vector.load %arg3[%c1_329, %c2_330, %c2_331, %c0_332] : memref<4x4x4x32xf32, #tpu.memory_space<vmem>>, vector<1x1x1x32xf32>
    %400 = vector.shape_cast %399 : vector<1x1x1x32xf32> to vector<1x32xf32>
    %c1_333 = arith.constant 1 : index
    %c2_334 = arith.constant 2 : index
    %c2_335 = arith.constant 2 : index
    %c0_336 = arith.constant 0 : index
    %401 = vector.load %arg4[%c1_333, %c2_334, %c2_335, %c0_336] : memref<4x4x4x32xf32, #tpu.memory_space<vmem>>, vector<1x1x1x32xf32>
    %402 = vector.shape_cast %401 : vector<1x1x1x32xf32> to vector<1x32xf32>
    %403 = vector.broadcast %400 : vector<1x32xf32> to vector<8x32xf32>
    %404 = arith.mulf %29, %403 : vector<8x32xf32>
    %405 = arith.addf %398, %404 : vector<8x32xf32>
    %406 = vector.broadcast %402 : vector<1x32xf32> to vector<8x32xf32>
    %407 = arith.mulf %77, %406 : vector<8x32xf32>
    %408 = arith.addf %405, %407 : vector<8x32xf32>
    %c1_337 = arith.constant 1 : index
    %c2_338 = arith.constant 2 : index
    %c0_339 = arith.constant 0 : index
    %c0_340 = arith.constant 0 : index
    %409 = vector.load %arg3[%c1_337, %c2_338, %c0_339, %c0_340] : memref<4x4x4x32xf32, #tpu.memory_space<vmem>>, vector<1x1x1x32xf32>
    %410 = vector.shape_cast %409 : vector<1x1x1x32xf32> to vector<1x32xf32>
    %c1_341 = arith.constant 1 : index
    %c2_342 = arith.constant 2 : index
    %c0_343 = arith.constant 0 : index
    %c0_344 = arith.constant 0 : index
    %411 = vector.load %arg4[%c1_341, %c2_342, %c0_343, %c0_344] : memref<4x4x4x32xf32, #tpu.memory_space<vmem>>, vector<1x1x1x32xf32>
    %412 = vector.shape_cast %411 : vector<1x1x1x32xf32> to vector<1x32xf32>
    %413 = vector.broadcast %410 : vector<1x32xf32> to vector<8x32xf32>
    %414 = arith.mulf %45, %413 : vector<8x32xf32>
    %415 = arith.addf %408, %414 : vector<8x32xf32>
    %416 = vector.broadcast %412 : vector<1x32xf32> to vector<8x32xf32>
    %417 = arith.mulf %93, %416 : vector<8x32xf32>
    %418 = arith.addf %415, %417 : vector<8x32xf32>
    %c1_345 = arith.constant 1 : index
    %c3_346 = arith.constant 3 : index
    %c2_347 = arith.constant 2 : index
    %c0_348 = arith.constant 0 : index
    %419 = vector.load %arg3[%c1_345, %c3_346, %c2_347, %c0_348] : memref<4x4x4x32xf32, #tpu.memory_space<vmem>>, vector<1x1x1x32xf32>
    %420 = vector.shape_cast %419 : vector<1x1x1x32xf32> to vector<1x32xf32>
    %c1_349 = arith.constant 1 : index
    %c3_350 = arith.constant 3 : index
    %c2_351 = arith.constant 2 : index
    %c0_352 = arith.constant 0 : index
    %421 = vector.load %arg4[%c1_349, %c3_350, %c2_351, %c0_352] : memref<4x4x4x32xf32, #tpu.memory_space<vmem>>, vector<1x1x1x32xf32>
    %422 = vector.shape_cast %421 : vector<1x1x1x32xf32> to vector<1x32xf32>
    %423 = vector.broadcast %420 : vector<1x32xf32> to vector<8x32xf32>
    %424 = arith.mulf %33, %423 : vector<8x32xf32>
    %425 = arith.addf %418, %424 : vector<8x32xf32>
    %426 = vector.broadcast %422 : vector<1x32xf32> to vector<8x32xf32>
    %427 = arith.mulf %81, %426 : vector<8x32xf32>
    %428 = arith.addf %425, %427 : vector<8x32xf32>
    %c1_353 = arith.constant 1 : index
    %c3_354 = arith.constant 3 : index
    %c0_355 = arith.constant 0 : index
    %c0_356 = arith.constant 0 : index
    %429 = vector.load %arg3[%c1_353, %c3_354, %c0_355, %c0_356] : memref<4x4x4x32xf32, #tpu.memory_space<vmem>>, vector<1x1x1x32xf32>
    %430 = vector.shape_cast %429 : vector<1x1x1x32xf32> to vector<1x32xf32>
    %c1_357 = arith.constant 1 : index
    %c3_358 = arith.constant 3 : index
    %c0_359 = arith.constant 0 : index
    %c0_360 = arith.constant 0 : index
    %431 = vector.load %arg4[%c1_357, %c3_358, %c0_359, %c0_360] : memref<4x4x4x32xf32, #tpu.memory_space<vmem>>, vector<1x1x1x32xf32>
    %432 = vector.shape_cast %431 : vector<1x1x1x32xf32> to vector<1x32xf32>
    %433 = vector.broadcast %430 : vector<1x32xf32> to vector<8x32xf32>
    %434 = arith.mulf %49, %433 : vector<8x32xf32>
    %435 = arith.addf %428, %434 : vector<8x32xf32>
    %436 = vector.broadcast %432 : vector<1x32xf32> to vector<8x32xf32>
    %437 = arith.mulf %97, %436 : vector<8x32xf32>
    %438 = arith.addf %435, %437 : vector<8x32xf32>
    %439 = vector.broadcast %271 : f32 to vector<8x32xf32>
    %440 = arith.addf %438, %439 : vector<8x32xf32>
    %c0_361 = arith.constant 0 : index
    %c1_362 = arith.constant 1 : index
    %c0_363 = arith.constant 0 : index
    %c32_364 = arith.constant 32 : index
    %441 = vector.load %arg6[%c0_361, %c1_362, %c0_363, %c32_364] : memref<1x4x8x64xf32, #tpu.memory_space<vmem>>, vector<1x1x8x32xf32>
    %442 = vector.shape_cast %441 : vector<1x1x8x32xf32> to vector<8x32xf32>
    %443 = vector.shape_cast %440 : vector<8x32xf32> to vector<1x1x8x32xf32>
    tpu.vector_store %arg6[%c0_361, %c1_362, %c0_363, %c32_364], %443 {strides = array<i32>} : memref<1x4x8x64xf32, #tpu.memory_space<vmem>>, vector<1x1x8x32xf32>,
    %c2_365 = arith.constant 2 : index
    %444 = memref.load %arg5[%c2_365] : memref<4xf32, #tpu.memory_space<smem>>
    %cst_366 = arith.constant 0.000000e+00 : f32
    %445 = vector.broadcast %cst_366 : f32 to vector<8x32xf32>
    %c2_367 = arith.constant 2 : index
    %c0_368 = arith.constant 0 : index
    %c3_369 = arith.constant 3 : index
    %c0_370 = arith.constant 0 : index
    %446 = vector.load %arg3[%c2_367, %c0_368, %c3_369, %c0_370] : memref<4x4x4x32xf32, #tpu.memory_space<vmem>>, vector<1x1x1x32xf32>
    %447 = vector.shape_cast %446 : vector<1x1x1x32xf32> to vector<1x32xf32>
    %c2_371 = arith.constant 2 : index
    %c0_372 = arith.constant 0 : index
    %c3_373 = arith.constant 3 : index
    %c0_374 = arith.constant 0 : index
    %448 = vector.load %arg4[%c2_371, %c0_372, %c3_373, %c0_374] : memref<4x4x4x32xf32, #tpu.memory_space<vmem>>, vector<1x1x1x32xf32>
    %449 = vector.shape_cast %448 : vector<1x1x1x32xf32> to vector<1x32xf32>
    %450 = vector.broadcast %447 : vector<1x32xf32> to vector<8x32xf32>
    %451 = arith.mulf %5, %450 : vector<8x32xf32>
    %452 = arith.addf %445, %451 : vector<8x32xf32>
    %453 = vector.broadcast %449 : vector<1x32xf32> to vector<8x32xf32>
    %454 = arith.mulf %53, %453 : vector<8x32xf32>
    %455 = arith.addf %452, %454 : vector<8x32xf32>
    %c2_375 = arith.constant 2 : index
    %c0_376 = arith.constant 0 : index
    %c1_377 = arith.constant 1 : index
    %c0_378 = arith.constant 0 : index
    %456 = vector.load %arg3[%c2_375, %c0_376, %c1_377, %c0_378] : memref<4x4x4x32xf32, #tpu.memory_space<vmem>>, vector<1x1x1x32xf32>
    %457 = vector.shape_cast %456 : vector<1x1x1x32xf32> to vector<1x32xf32>
    %c2_379 = arith.constant 2 : index
    %c0_380 = arith.constant 0 : index
    %c1_381 = arith.constant 1 : index
    %c0_382 = arith.constant 0 : index
    %458 = vector.load %arg4[%c2_379, %c0_380, %c1_381, %c0_382] : memref<4x4x4x32xf32, #tpu.memory_space<vmem>>, vector<1x1x1x32xf32>
    %459 = vector.shape_cast %458 : vector<1x1x1x32xf32> to vector<1x32xf32>
    %460 = vector.broadcast %457 : vector<1x32xf32> to vector<8x32xf32>
    %461 = arith.mulf %21, %460 : vector<8x32xf32>
    %462 = arith.addf %455, %461 : vector<8x32xf32>
    %463 = vector.broadcast %459 : vector<1x32xf32> to vector<8x32xf32>
    %464 = arith.mulf %69, %463 : vector<8x32xf32>
    %465 = arith.addf %462, %464 : vector<8x32xf32>
    %c2_383 = arith.constant 2 : index
    %c1_384 = arith.constant 1 : index
    %c3_385 = arith.constant 3 : index
    %c0_386 = arith.constant 0 : index
    %466 = vector.load %arg3[%c2_383, %c1_384, %c3_385, %c0_386] : memref<4x4x4x32xf32, #tpu.memory_space<vmem>>, vector<1x1x1x32xf32>
    %467 = vector.shape_cast %466 : vector<1x1x1x32xf32> to vector<1x32xf32>
    %c2_387 = arith.constant 2 : index
    %c1_388 = arith.constant 1 : index
    %c3_389 = arith.constant 3 : index
    %c0_390 = arith.constant 0 : index
    %468 = vector.load %arg4[%c2_387, %c1_388, %c3_389, %c0_390] : memref<4x4x4x32xf32, #tpu.memory_space<vmem>>, vector<1x1x1x32xf32>
    %469 = vector.shape_cast %468 : vector<1x1x1x32xf32> to vector<1x32xf32>
    %470 = vector.broadcast %467 : vector<1x32xf32> to vector<8x32xf32>
    %471 = arith.mulf %9, %470 : vector<8x32xf32>
    %472 = arith.addf %465, %471 : vector<8x32xf32>
    %473 = vector.broadcast %469 : vector<1x32xf32> to vector<8x32xf32>
    %474 = arith.mulf %57, %473 : vector<8x32xf32>
    %475 = arith.addf %472, %474 : vector<8x32xf32>
    %c2_391 = arith.constant 2 : index
    %c1_392 = arith.constant 1 : index
    %c1_393 = arith.constant 1 : index
    %c0_394 = arith.constant 0 : index
    %476 = vector.load %arg3[%c2_391, %c1_392, %c1_393, %c0_394] : memref<4x4x4x32xf32, #tpu.memory_space<vmem>>, vector<1x1x1x32xf32>
    %477 = vector.shape_cast %476 : vector<1x1x1x32xf32> to vector<1x32xf32>
    %c2_395 = arith.constant 2 : index
    %c1_396 = arith.constant 1 : index
    %c1_397 = arith.constant 1 : index
    %c0_398 = arith.constant 0 : index
    %478 = vector.load %arg4[%c2_395, %c1_396, %c1_397, %c0_398] : memref<4x4x4x32xf32, #tpu.memory_space<vmem>>, vector<1x1x1x32xf32>
    %479 = vector.shape_cast %478 : vector<1x1x1x32xf32> to vector<1x32xf32>
    %480 = vector.broadcast %477 : vector<1x32xf32> to vector<8x32xf32>
    %481 = arith.mulf %25, %480 : vector<8x32xf32>
    %482 = arith.addf %475, %481 : vector<8x32xf32>
    %483 = vector.broadcast %479 : vector<1x32xf32> to vector<8x32xf32>
    %484 = arith.mulf %73, %483 : vector<8x32xf32>
    %485 = arith.addf %482, %484 : vector<8x32xf32>
    %c2_399 = arith.constant 2 : index
    %c2_400 = arith.constant 2 : index
    %c3_401 = arith.constant 3 : index
    %c0_402 = arith.constant 0 : index
    %486 = vector.load %arg3[%c2_399, %c2_400, %c3_401, %c0_402] : memref<4x4x4x32xf32, #tpu.memory_space<vmem>>, vector<1x1x1x32xf32>
    %487 = vector.shape_cast %486 : vector<1x1x1x32xf32> to vector<1x32xf32>
    %c2_403 = arith.constant 2 : index
    %c2_404 = arith.constant 2 : index
    %c3_405 = arith.constant 3 : index
    %c0_406 = arith.constant 0 : index
    %488 = vector.load %arg4[%c2_403, %c2_404, %c3_405, %c0_406] : memref<4x4x4x32xf32, #tpu.memory_space<vmem>>, vector<1x1x1x32xf32>
    %489 = vector.shape_cast %488 : vector<1x1x1x32xf32> to vector<1x32xf32>
    %490 = vector.broadcast %487 : vector<1x32xf32> to vector<8x32xf32>
    %491 = arith.mulf %13, %490 : vector<8x32xf32>
    %492 = arith.addf %485, %491 : vector<8x32xf32>
    %493 = vector.broadcast %489 : vector<1x32xf32> to vector<8x32xf32>
    %494 = arith.mulf %61, %493 : vector<8x32xf32>
    %495 = arith.addf %492, %494 : vector<8x32xf32>
    %c2_407 = arith.constant 2 : index
    %c2_408 = arith.constant 2 : index
    %c1_409 = arith.constant 1 : index
    %c0_410 = arith.constant 0 : index
    %496 = vector.load %arg3[%c2_407, %c2_408, %c1_409, %c0_410] : memref<4x4x4x32xf32, #tpu.memory_space<vmem>>, vector<1x1x1x32xf32>
    %497 = vector.shape_cast %496 : vector<1x1x1x32xf32> to vector<1x32xf32>
    %c2_411 = arith.constant 2 : index
    %c2_412 = arith.constant 2 : index
    %c1_413 = arith.constant 1 : index
    %c0_414 = arith.constant 0 : index
    %498 = vector.load %arg4[%c2_411, %c2_412, %c1_413, %c0_414] : memref<4x4x4x32xf32, #tpu.memory_space<vmem>>, vector<1x1x1x32xf32>
    %499 = vector.shape_cast %498 : vector<1x1x1x32xf32> to vector<1x32xf32>
    %500 = vector.broadcast %497 : vector<1x32xf32> to vector<8x32xf32>
    %501 = arith.mulf %29, %500 : vector<8x32xf32>
    %502 = arith.addf %495, %501 : vector<8x32xf32>
    %503 = vector.broadcast %499 : vector<1x32xf32> to vector<8x32xf32>
    %504 = arith.mulf %77, %503 : vector<8x32xf32>
    %505 = arith.addf %502, %504 : vector<8x32xf32>
    %c2_415 = arith.constant 2 : index
    %c3_416 = arith.constant 3 : index
    %c3_417 = arith.constant 3 : index
    %c0_418 = arith.constant 0 : index
    %506 = vector.load %arg3[%c2_415, %c3_416, %c3_417, %c0_418] : memref<4x4x4x32xf32, #tpu.memory_space<vmem>>, vector<1x1x1x32xf32>
    %507 = vector.shape_cast %506 : vector<1x1x1x32xf32> to vector<1x32xf32>
    %c2_419 = arith.constant 2 : index
    %c3_420 = arith.constant 3 : index
    %c3_421 = arith.constant 3 : index
    %c0_422 = arith.constant 0 : index
    %508 = vector.load %arg4[%c2_419, %c3_420, %c3_421, %c0_422] : memref<4x4x4x32xf32, #tpu.memory_space<vmem>>, vector<1x1x1x32xf32>
    %509 = vector.shape_cast %508 : vector<1x1x1x32xf32> to vector<1x32xf32>
    %510 = vector.broadcast %507 : vector<1x32xf32> to vector<8x32xf32>
    %511 = arith.mulf %17, %510 : vector<8x32xf32>
    %512 = arith.addf %505, %511 : vector<8x32xf32>
    %513 = vector.broadcast %509 : vector<1x32xf32> to vector<8x32xf32>
    %514 = arith.mulf %65, %513 : vector<8x32xf32>
    %515 = arith.addf %512, %514 : vector<8x32xf32>
    %c2_423 = arith.constant 2 : index
    %c3_424 = arith.constant 3 : index
    %c1_425 = arith.constant 1 : index
    %c0_426 = arith.constant 0 : index
    %516 = vector.load %arg3[%c2_423, %c3_424, %c1_425, %c0_426] : memref<4x4x4x32xf32, #tpu.memory_space<vmem>>, vector<1x1x1x32xf32>
    %517 = vector.shape_cast %516 : vector<1x1x1x32xf32> to vector<1x32xf32>
    %c2_427 = arith.constant 2 : index
    %c3_428 = arith.constant 3 : index
    %c1_429 = arith.constant 1 : index
    %c0_430 = arith.constant 0 : index
    %518 = vector.load %arg4[%c2_427, %c3_428, %c1_429, %c0_430] : memref<4x4x4x32xf32, #tpu.memory_space<vmem>>, vector<1x1x1x32xf32>
    %519 = vector.shape_cast %518 : vector<1x1x1x32xf32> to vector<1x32xf32>
    %520 = vector.broadcast %517 : vector<1x32xf32> to vector<8x32xf32>
    %521 = arith.mulf %33, %520 : vector<8x32xf32>
    %522 = arith.addf %515, %521 : vector<8x32xf32>
    %523 = vector.broadcast %519 : vector<1x32xf32> to vector<8x32xf32>
    %524 = arith.mulf %81, %523 : vector<8x32xf32>
    %525 = arith.addf %522, %524 : vector<8x32xf32>
    %526 = vector.broadcast %444 : f32 to vector<8x32xf32>
    %527 = arith.addf %525, %526 : vector<8x32xf32>
    %c0_431 = arith.constant 0 : index
    %c2_432 = arith.constant 2 : index
    %c0_433 = arith.constant 0 : index
    %c0_434 = arith.constant 0 : index
    %528 = vector.load %arg6[%c0_431, %c2_432, %c0_433, %c0_434] : memref<1x4x8x64xf32, #tpu.memory_space<vmem>>, vector<1x1x8x32xf32>
    %529 = vector.shape_cast %528 : vector<1x1x8x32xf32> to vector<8x32xf32>
    %530 = vector.shape_cast %527 : vector<8x32xf32> to vector<1x1x8x32xf32>
    tpu.vector_store %arg6[%c0_431, %c2_432, %c0_433, %c0_434], %530 {strides = array<i32>} : memref<1x4x8x64xf32, #tpu.memory_space<vmem>>, vector<1x1x8x32xf32>,
    %cst_435 = arith.constant 0.000000e+00 : f32
    %531 = vector.broadcast %cst_435 : f32 to vector<8x32xf32>
    %c2_436 = arith.constant 2 : index
    %c0_437 = arith.constant 0 : index
    %c2_438 = arith.constant 2 : index
    %c0_439 = arith.constant 0 : index
    %532 = vector.load %arg3[%c2_436, %c0_437, %c2_438, %c0_439] : memref<4x4x4x32xf32, #tpu.memory_space<vmem>>, vector<1x1x1x32xf32>
    %533 = vector.shape_cast %532 : vector<1x1x1x32xf32> to vector<1x32xf32>
    %c2_440 = arith.constant 2 : index
    %c0_441 = arith.constant 0 : index
    %c2_442 = arith.constant 2 : index
    %c0_443 = arith.constant 0 : index
    %534 = vector.load %arg4[%c2_440, %c0_441, %c2_442, %c0_443] : memref<4x4x4x32xf32, #tpu.memory_space<vmem>>, vector<1x1x1x32xf32>
    %535 = vector.shape_cast %534 : vector<1x1x1x32xf32> to vector<1x32xf32>
    %536 = vector.broadcast %533 : vector<1x32xf32> to vector<8x32xf32>
    %537 = arith.mulf %21, %536 : vector<8x32xf32>
    %538 = arith.addf %531, %537 : vector<8x32xf32>
    %539 = vector.broadcast %535 : vector<1x32xf32> to vector<8x32xf32>
    %540 = arith.mulf %69, %539 : vector<8x32xf32>
    %541 = arith.addf %538, %540 : vector<8x32xf32>
    %c2_444 = arith.constant 2 : index
    %c0_445 = arith.constant 0 : index
    %c0_446 = arith.constant 0 : index
    %c0_447 = arith.constant 0 : index
    %542 = vector.load %arg3[%c2_444, %c0_445, %c0_446, %c0_447] : memref<4x4x4x32xf32, #tpu.memory_space<vmem>>, vector<1x1x1x32xf32>
    %543 = vector.shape_cast %542 : vector<1x1x1x32xf32> to vector<1x32xf32>
    %c2_448 = arith.constant 2 : index
    %c0_449 = arith.constant 0 : index
    %c0_450 = arith.constant 0 : index
    %c0_451 = arith.constant 0 : index
    %544 = vector.load %arg4[%c2_448, %c0_449, %c0_450, %c0_451] : memref<4x4x4x32xf32, #tpu.memory_space<vmem>>, vector<1x1x1x32xf32>
    %545 = vector.shape_cast %544 : vector<1x1x1x32xf32> to vector<1x32xf32>
    %546 = vector.broadcast %543 : vector<1x32xf32> to vector<8x32xf32>
    %547 = arith.mulf %37, %546 : vector<8x32xf32>
    %548 = arith.addf %541, %547 : vector<8x32xf32>
    %549 = vector.broadcast %545 : vector<1x32xf32> to vector<8x32xf32>
    %550 = arith.mulf %85, %549 : vector<8x32xf32>
    %551 = arith.addf %548, %550 : vector<8x32xf32>
    %c2_452 = arith.constant 2 : index
    %c1_453 = arith.constant 1 : index
    %c2_454 = arith.constant 2 : index
    %c0_455 = arith.constant 0 : index
    %552 = vector.load %arg3[%c2_452, %c1_453, %c2_454, %c0_455] : memref<4x4x4x32xf32, #tpu.memory_space<vmem>>, vector<1x1x1x32xf32>
    %553 = vector.shape_cast %552 : vector<1x1x1x32xf32> to vector<1x32xf32>
    %c2_456 = arith.constant 2 : index
    %c1_457 = arith.constant 1 : index
    %c2_458 = arith.constant 2 : index
    %c0_459 = arith.constant 0 : index
    %554 = vector.load %arg4[%c2_456, %c1_457, %c2_458, %c0_459] : memref<4x4x4x32xf32, #tpu.memory_space<vmem>>, vector<1x1x1x32xf32>
    %555 = vector.shape_cast %554 : vector<1x1x1x32xf32> to vector<1x32xf32>
    %556 = vector.broadcast %553 : vector<1x32xf32> to vector<8x32xf32>
    %557 = arith.mulf %25, %556 : vector<8x32xf32>
    %558 = arith.addf %551, %557 : vector<8x32xf32>
    %559 = vector.broadcast %555 : vector<1x32xf32> to vector<8x32xf32>
    %560 = arith.mulf %73, %559 : vector<8x32xf32>
    %561 = arith.addf %558, %560 : vector<8x32xf32>
    %c2_460 = arith.constant 2 : index
    %c1_461 = arith.constant 1 : index
    %c0_462 = arith.constant 0 : index
    %c0_463 = arith.constant 0 : index
    %562 = vector.load %arg3[%c2_460, %c1_461, %c0_462, %c0_463] : memref<4x4x4x32xf32, #tpu.memory_space<vmem>>, vector<1x1x1x32xf32>
    %563 = vector.shape_cast %562 : vector<1x1x1x32xf32> to vector<1x32xf32>
    %c2_464 = arith.constant 2 : index
    %c1_465 = arith.constant 1 : index
    %c0_466 = arith.constant 0 : index
    %c0_467 = arith.constant 0 : index
    %564 = vector.load %arg4[%c2_464, %c1_465, %c0_466, %c0_467] : memref<4x4x4x32xf32, #tpu.memory_space<vmem>>, vector<1x1x1x32xf32>
    %565 = vector.shape_cast %564 : vector<1x1x1x32xf32> to vector<1x32xf32>
    %566 = vector.broadcast %563 : vector<1x32xf32> to vector<8x32xf32>
    %567 = arith.mulf %41, %566 : vector<8x32xf32>
    %568 = arith.addf %561, %567 : vector<8x32xf32>
    %569 = vector.broadcast %565 : vector<1x32xf32> to vector<8x32xf32>
    %570 = arith.mulf %89, %569 : vector<8x32xf32>
    %571 = arith.addf %568, %570 : vector<8x32xf32>
    %c2_468 = arith.constant 2 : index
    %c2_469 = arith.constant 2 : index
    %c2_470 = arith.constant 2 : index
    %c0_471 = arith.constant 0 : index
    %572 = vector.load %arg3[%c2_468, %c2_469, %c2_470, %c0_471] : memref<4x4x4x32xf32, #tpu.memory_space<vmem>>, vector<1x1x1x32xf32>
    %573 = vector.shape_cast %572 : vector<1x1x1x32xf32> to vector<1x32xf32>
    %c2_472 = arith.constant 2 : index
    %c2_473 = arith.constant 2 : index
    %c2_474 = arith.constant 2 : index
    %c0_475 = arith.constant 0 : index
    %574 = vector.load %arg4[%c2_472, %c2_473, %c2_474, %c0_475] : memref<4x4x4x32xf32, #tpu.memory_space<vmem>>, vector<1x1x1x32xf32>
    %575 = vector.shape_cast %574 : vector<1x1x1x32xf32> to vector<1x32xf32>
    %576 = vector.broadcast %573 : vector<1x32xf32> to vector<8x32xf32>
    %577 = arith.mulf %29, %576 : vector<8x32xf32>
    %578 = arith.addf %571, %577 : vector<8x32xf32>
    %579 = vector.broadcast %575 : vector<1x32xf32> to vector<8x32xf32>
    %580 = arith.mulf %77, %579 : vector<8x32xf32>
    %581 = arith.addf %578, %580 : vector<8x32xf32>
    %c2_476 = arith.constant 2 : index
    %c2_477 = arith.constant 2 : index
    %c0_478 = arith.constant 0 : index
    %c0_479 = arith.constant 0 : index
    %582 = vector.load %arg3[%c2_476, %c2_477, %c0_478, %c0_479] : memref<4x4x4x32xf32, #tpu.memory_space<vmem>>, vector<1x1x1x32xf32>
    %583 = vector.shape_cast %582 : vector<1x1x1x32xf32> to vector<1x32xf32>
    %c2_480 = arith.constant 2 : index
    %c2_481 = arith.constant 2 : index
    %c0_482 = arith.constant 0 : index
    %c0_483 = arith.constant 0 : index
    %584 = vector.load %arg4[%c2_480, %c2_481, %c0_482, %c0_483] : memref<4x4x4x32xf32, #tpu.memory_space<vmem>>, vector<1x1x1x32xf32>
    %585 = vector.shape_cast %584 : vector<1x1x1x32xf32> to vector<1x32xf32>
    %586 = vector.broadcast %583 : vector<1x32xf32> to vector<8x32xf32>
    %587 = arith.mulf %45, %586 : vector<8x32xf32>
    %588 = arith.addf %581, %587 : vector<8x32xf32>
    %589 = vector.broadcast %585 : vector<1x32xf32> to vector<8x32xf32>
    %590 = arith.mulf %93, %589 : vector<8x32xf32>
    %591 = arith.addf %588, %590 : vector<8x32xf32>
    %c2_484 = arith.constant 2 : index
    %c3_485 = arith.constant 3 : index
    %c2_486 = arith.constant 2 : index
    %c0_487 = arith.constant 0 : index
    %592 = vector.load %arg3[%c2_484, %c3_485, %c2_486, %c0_487] : memref<4x4x4x32xf32, #tpu.memory_space<vmem>>, vector<1x1x1x32xf32>
    %593 = vector.shape_cast %592 : vector<1x1x1x32xf32> to vector<1x32xf32>
    %c2_488 = arith.constant 2 : index
    %c3_489 = arith.constant 3 : index
    %c2_490 = arith.constant 2 : index
    %c0_491 = arith.constant 0 : index
    %594 = vector.load %arg4[%c2_488, %c3_489, %c2_490, %c0_491] : memref<4x4x4x32xf32, #tpu.memory_space<vmem>>, vector<1x1x1x32xf32>
    %595 = vector.shape_cast %594 : vector<1x1x1x32xf32> to vector<1x32xf32>
    %596 = vector.broadcast %593 : vector<1x32xf32> to vector<8x32xf32>
    %597 = arith.mulf %33, %596 : vector<8x32xf32>
    %598 = arith.addf %591, %597 : vector<8x32xf32>
    %599 = vector.broadcast %595 : vector<1x32xf32> to vector<8x32xf32>
    %600 = arith.mulf %81, %599 : vector<8x32xf32>
    %601 = arith.addf %598, %600 : vector<8x32xf32>
    %c2_492 = arith.constant 2 : index
    %c3_493 = arith.constant 3 : index
    %c0_494 = arith.constant 0 : index
    %c0_495 = arith.constant 0 : index
    %602 = vector.load %arg3[%c2_492, %c3_493, %c0_494, %c0_495] : memref<4x4x4x32xf32, #tpu.memory_space<vmem>>, vector<1x1x1x32xf32>
    %603 = vector.shape_cast %602 : vector<1x1x1x32xf32> to vector<1x32xf32>
    %c2_496 = arith.constant 2 : index
    %c3_497 = arith.constant 3 : index
    %c0_498 = arith.constant 0 : index
    %c0_499 = arith.constant 0 : index
    %604 = vector.load %arg4[%c2_496, %c3_497, %c0_498, %c0_499] : memref<4x4x4x32xf32, #tpu.memory_space<vmem>>, vector<1x1x1x32xf32>
    %605 = vector.shape_cast %604 : vector<1x1x1x32xf32> to vector<1x32xf32>
    %606 = vector.broadcast %603 : vector<1x32xf32> to vector<8x32xf32>
    %607 = arith.mulf %49, %606 : vector<8x32xf32>
    %608 = arith.addf %601, %607 : vector<8x32xf32>
    %609 = vector.broadcast %605 : vector<1x32xf32> to vector<8x32xf32>
    %610 = arith.mulf %97, %609 : vector<8x32xf32>
    %611 = arith.addf %608, %610 : vector<8x32xf32>
    %612 = vector.broadcast %444 : f32 to vector<8x32xf32>
    %613 = arith.addf %611, %612 : vector<8x32xf32>
    %c0_500 = arith.constant 0 : index
    %c2_501 = arith.constant 2 : index
    %c0_502 = arith.constant 0 : index
    %c32_503 = arith.constant 32 : index
    %614 = vector.load %arg6[%c0_500, %c2_501, %c0_502, %c32_503] : memref<1x4x8x64xf32, #tpu.memory_space<vmem>>, vector<1x1x8x32xf32>
    %615 = vector.shape_cast %614 : vector<1x1x8x32xf32> to vector<8x32xf32>
    %616 = vector.shape_cast %613 : vector<8x32xf32> to vector<1x1x8x32xf32>
    tpu.vector_store %arg6[%c0_500, %c2_501, %c0_502, %c32_503], %616 {strides = array<i32>} : memref<1x4x8x64xf32, #tpu.memory_space<vmem>>, vector<1x1x8x32xf32>,
    %c3_504 = arith.constant 3 : index
    %617 = memref.load %arg5[%c3_504] : memref<4xf32, #tpu.memory_space<smem>>
    %cst_505 = arith.constant 0.000000e+00 : f32
    %618 = vector.broadcast %cst_505 : f32 to vector<8x32xf32>
    %c3_506 = arith.constant 3 : index
    %c0_507 = arith.constant 0 : index
    %c3_508 = arith.constant 3 : index
    %c0_509 = arith.constant 0 : index
    %619 = vector.load %arg3[%c3_506, %c0_507, %c3_508, %c0_509] : memref<4x4x4x32xf32, #tpu.memory_space<vmem>>, vector<1x1x1x32xf32>
    %620 = vector.shape_cast %619 : vector<1x1x1x32xf32> to vector<1x32xf32>
    %c3_510 = arith.constant 3 : index
    %c0_511 = arith.constant 0 : index
    %c3_512 = arith.constant 3 : index
    %c0_513 = arith.constant 0 : index
    %621 = vector.load %arg4[%c3_510, %c0_511, %c3_512, %c0_513] : memref<4x4x4x32xf32, #tpu.memory_space<vmem>>, vector<1x1x1x32xf32>
    %622 = vector.shape_cast %621 : vector<1x1x1x32xf32> to vector<1x32xf32>
    %623 = vector.broadcast %620 : vector<1x32xf32> to vector<8x32xf32>
    %624 = arith.mulf %5, %623 : vector<8x32xf32>
    %625 = arith.addf %618, %624 : vector<8x32xf32>
    %626 = vector.broadcast %622 : vector<1x32xf32> to vector<8x32xf32>
    %627 = arith.mulf %53, %626 : vector<8x32xf32>
    %628 = arith.addf %625, %627 : vector<8x32xf32>
    %c3_514 = arith.constant 3 : index
    %c0_515 = arith.constant 0 : index
    %c1_516 = arith.constant 1 : index
    %c0_517 = arith.constant 0 : index
    %629 = vector.load %arg3[%c3_514, %c0_515, %c1_516, %c0_517] : memref<4x4x4x32xf32, #tpu.memory_space<vmem>>, vector<1x1x1x32xf32>
    %630 = vector.shape_cast %629 : vector<1x1x1x32xf32> to vector<1x32xf32>
    %c3_518 = arith.constant 3 : index
    %c0_519 = arith.constant 0 : index
    %c1_520 = arith.constant 1 : index
    %c0_521 = arith.constant 0 : index
    %631 = vector.load %arg4[%c3_518, %c0_519, %c1_520, %c0_521] : memref<4x4x4x32xf32, #tpu.memory_space<vmem>>, vector<1x1x1x32xf32>
    %632 = vector.shape_cast %631 : vector<1x1x1x32xf32> to vector<1x32xf32>
    %633 = vector.broadcast %630 : vector<1x32xf32> to vector<8x32xf32>
    %634 = arith.mulf %21, %633 : vector<8x32xf32>
    %635 = arith.addf %628, %634 : vector<8x32xf32>
    %636 = vector.broadcast %632 : vector<1x32xf32> to vector<8x32xf32>
    %637 = arith.mulf %69, %636 : vector<8x32xf32>
    %638 = arith.addf %635, %637 : vector<8x32xf32>
    %c3_522 = arith.constant 3 : index
    %c1_523 = arith.constant 1 : index
    %c3_524 = arith.constant 3 : index
    %c0_525 = arith.constant 0 : index
    %639 = vector.load %arg3[%c3_522, %c1_523, %c3_524, %c0_525] : memref<4x4x4x32xf32, #tpu.memory_space<vmem>>, vector<1x1x1x32xf32>
    %640 = vector.shape_cast %639 : vector<1x1x1x32xf32> to vector<1x32xf32>
    %c3_526 = arith.constant 3 : index
    %c1_527 = arith.constant 1 : index
    %c3_528 = arith.constant 3 : index
    %c0_529 = arith.constant 0 : index
    %641 = vector.load %arg4[%c3_526, %c1_527, %c3_528, %c0_529] : memref<4x4x4x32xf32, #tpu.memory_space<vmem>>, vector<1x1x1x32xf32>
    %642 = vector.shape_cast %641 : vector<1x1x1x32xf32> to vector<1x32xf32>
    %643 = vector.broadcast %640 : vector<1x32xf32> to vector<8x32xf32>
    %644 = arith.mulf %9, %643 : vector<8x32xf32>
    %645 = arith.addf %638, %644 : vector<8x32xf32>
    %646 = vector.broadcast %642 : vector<1x32xf32> to vector<8x32xf32>
    %647 = arith.mulf %57, %646 : vector<8x32xf32>
    %648 = arith.addf %645, %647 : vector<8x32xf32>
    %c3_530 = arith.constant 3 : index
    %c1_531 = arith.constant 1 : index
    %c1_532 = arith.constant 1 : index
    %c0_533 = arith.constant 0 : index
    %649 = vector.load %arg3[%c3_530, %c1_531, %c1_532, %c0_533] : memref<4x4x4x32xf32, #tpu.memory_space<vmem>>, vector<1x1x1x32xf32>
    %650 = vector.shape_cast %649 : vector<1x1x1x32xf32> to vector<1x32xf32>
    %c3_534 = arith.constant 3 : index
    %c1_535 = arith.constant 1 : index
    %c1_536 = arith.constant 1 : index
    %c0_537 = arith.constant 0 : index
    %651 = vector.load %arg4[%c3_534, %c1_535, %c1_536, %c0_537] : memref<4x4x4x32xf32, #tpu.memory_space<vmem>>, vector<1x1x1x32xf32>
    %652 = vector.shape_cast %651 : vector<1x1x1x32xf32> to vector<1x32xf32>
    %653 = vector.broadcast %650 : vector<1x32xf32> to vector<8x32xf32>
    %654 = arith.mulf %25, %653 : vector<8x32xf32>
    %655 = arith.addf %648, %654 : vector<8x32xf32>
    %656 = vector.broadcast %652 : vector<1x32xf32> to vector<8x32xf32>
    %657 = arith.mulf %73, %656 : vector<8x32xf32>
    %658 = arith.addf %655, %657 : vector<8x32xf32>
    %c3_538 = arith.constant 3 : index
    %c2_539 = arith.constant 2 : index
    %c3_540 = arith.constant 3 : index
    %c0_541 = arith.constant 0 : index
    %659 = vector.load %arg3[%c3_538, %c2_539, %c3_540, %c0_541] : memref<4x4x4x32xf32, #tpu.memory_space<vmem>>, vector<1x1x1x32xf32>
    %660 = vector.shape_cast %659 : vector<1x1x1x32xf32> to vector<1x32xf32>
    %c3_542 = arith.constant 3 : index
    %c2_543 = arith.constant 2 : index
    %c3_544 = arith.constant 3 : index
    %c0_545 = arith.constant 0 : index
    %661 = vector.load %arg4[%c3_542, %c2_543, %c3_544, %c0_545] : memref<4x4x4x32xf32, #tpu.memory_space<vmem>>, vector<1x1x1x32xf32>
    %662 = vector.shape_cast %661 : vector<1x1x1x32xf32> to vector<1x32xf32>
    %663 = vector.broadcast %660 : vector<1x32xf32> to vector<8x32xf32>
    %664 = arith.mulf %13, %663 : vector<8x32xf32>
    %665 = arith.addf %658, %664 : vector<8x32xf32>
    %666 = vector.broadcast %662 : vector<1x32xf32> to vector<8x32xf32>
    %667 = arith.mulf %61, %666 : vector<8x32xf32>
    %668 = arith.addf %665, %667 : vector<8x32xf32>
    %c3_546 = arith.constant 3 : index
    %c2_547 = arith.constant 2 : index
    %c1_548 = arith.constant 1 : index
    %c0_549 = arith.constant 0 : index
    %669 = vector.load %arg3[%c3_546, %c2_547, %c1_548, %c0_549] : memref<4x4x4x32xf32, #tpu.memory_space<vmem>>, vector<1x1x1x32xf32>
    %670 = vector.shape_cast %669 : vector<1x1x1x32xf32> to vector<1x32xf32>
    %c3_550 = arith.constant 3 : index
    %c2_551 = arith.constant 2 : index
    %c1_552 = arith.constant 1 : index
    %c0_553 = arith.constant 0 : index
    %671 = vector.load %arg4[%c3_550, %c2_551, %c1_552, %c0_553] : memref<4x4x4x32xf32, #tpu.memory_space<vmem>>, vector<1x1x1x32xf32>
    %672 = vector.shape_cast %671 : vector<1x1x1x32xf32> to vector<1x32xf32>
    %673 = vector.broadcast %670 : vector<1x32xf32> to vector<8x32xf32>
    %674 = arith.mulf %29, %673 : vector<8x32xf32>
    %675 = arith.addf %668, %674 : vector<8x32xf32>
    %676 = vector.broadcast %672 : vector<1x32xf32> to vector<8x32xf32>
    %677 = arith.mulf %77, %676 : vector<8x32xf32>
    %678 = arith.addf %675, %677 : vector<8x32xf32>
    %c3_554 = arith.constant 3 : index
    %c3_555 = arith.constant 3 : index
    %c3_556 = arith.constant 3 : index
    %c0_557 = arith.constant 0 : index
    %679 = vector.load %arg3[%c3_554, %c3_555, %c3_556, %c0_557] : memref<4x4x4x32xf32, #tpu.memory_space<vmem>>, vector<1x1x1x32xf32>
    %680 = vector.shape_cast %679 : vector<1x1x1x32xf32> to vector<1x32xf32>
    %c3_558 = arith.constant 3 : index
    %c3_559 = arith.constant 3 : index
    %c3_560 = arith.constant 3 : index
    %c0_561 = arith.constant 0 : index
    %681 = vector.load %arg4[%c3_558, %c3_559, %c3_560, %c0_561] : memref<4x4x4x32xf32, #tpu.memory_space<vmem>>, vector<1x1x1x32xf32>
    %682 = vector.shape_cast %681 : vector<1x1x1x32xf32> to vector<1x32xf32>
    %683 = vector.broadcast %680 : vector<1x32xf32> to vector<8x32xf32>
    %684 = arith.mulf %17, %683 : vector<8x32xf32>
    %685 = arith.addf %678, %684 : vector<8x32xf32>
    %686 = vector.broadcast %682 : vector<1x32xf32> to vector<8x32xf32>
    %687 = arith.mulf %65, %686 : vector<8x32xf32>
    %688 = arith.addf %685, %687 : vector<8x32xf32>
    %c3_562 = arith.constant 3 : index
    %c3_563 = arith.constant 3 : index
    %c1_564 = arith.constant 1 : index
    %c0_565 = arith.constant 0 : index
    %689 = vector.load %arg3[%c3_562, %c3_563, %c1_564, %c0_565] : memref<4x4x4x32xf32, #tpu.memory_space<vmem>>, vector<1x1x1x32xf32>
    %690 = vector.shape_cast %689 : vector<1x1x1x32xf32> to vector<1x32xf32>
    %c3_566 = arith.constant 3 : index
    %c3_567 = arith.constant 3 : index
    %c1_568 = arith.constant 1 : index
    %c0_569 = arith.constant 0 : index
    %691 = vector.load %arg4[%c3_566, %c3_567, %c1_568, %c0_569] : memref<4x4x4x32xf32, #tpu.memory_space<vmem>>, vector<1x1x1x32xf32>
    %692 = vector.shape_cast %691 : vector<1x1x1x32xf32> to vector<1x32xf32>
    %693 = vector.broadcast %690 : vector<1x32xf32> to vector<8x32xf32>
    %694 = arith.mulf %33, %693 : vector<8x32xf32>
    %695 = arith.addf %688, %694 : vector<8x32xf32>
    %696 = vector.broadcast %692 : vector<1x32xf32> to vector<8x32xf32>
    %697 = arith.mulf %81, %696 : vector<8x32xf32>
    %698 = arith.addf %695, %697 : vector<8x32xf32>
    %699 = vector.broadcast %617 : f32 to vector<8x32xf32>
    %700 = arith.addf %698, %699 : vector<8x32xf32>
    %c0_570 = arith.constant 0 : index
    %c3_571 = arith.constant 3 : index
    %c0_572 = arith.constant 0 : index
    %c0_573 = arith.constant 0 : index
    %701 = vector.load %arg6[%c0_570, %c3_571, %c0_572, %c0_573] : memref<1x4x8x64xf32, #tpu.memory_space<vmem>>, vector<1x1x8x32xf32>
    %702 = vector.shape_cast %701 : vector<1x1x8x32xf32> to vector<8x32xf32>
    %703 = vector.shape_cast %700 : vector<8x32xf32> to vector<1x1x8x32xf32>
    tpu.vector_store %arg6[%c0_570, %c3_571, %c0_572, %c0_573], %703 {strides = array<i32>} : memref<1x4x8x64xf32, #tpu.memory_space<vmem>>, vector<1x1x8x32xf32>,
    %cst_574 = arith.constant 0.000000e+00 : f32
    %704 = vector.broadcast %cst_574 : f32 to vector<8x32xf32>
    %c3_575 = arith.constant 3 : index
    %c0_576 = arith.constant 0 : index
    %c2_577 = arith.constant 2 : index
    %c0_578 = arith.constant 0 : index
    %705 = vector.load %arg3[%c3_575, %c0_576, %c2_577, %c0_578] : memref<4x4x4x32xf32, #tpu.memory_space<vmem>>, vector<1x1x1x32xf32>
    %706 = vector.shape_cast %705 : vector<1x1x1x32xf32> to vector<1x32xf32>
    %c3_579 = arith.constant 3 : index
    %c0_580 = arith.constant 0 : index
    %c2_581 = arith.constant 2 : index
    %c0_582 = arith.constant 0 : index
    %707 = vector.load %arg4[%c3_579, %c0_580, %c2_581, %c0_582] : memref<4x4x4x32xf32, #tpu.memory_space<vmem>>, vector<1x1x1x32xf32>
    %708 = vector.shape_cast %707 : vector<1x1x1x32xf32> to vector<1x32xf32>
    %709 = vector.broadcast %706 : vector<1x32xf32> to vector<8x32xf32>
    %710 = arith.mulf %21, %709 : vector<8x32xf32>
    %711 = arith.addf %704, %710 : vector<8x32xf32>
    %712 = vector.broadcast %708 : vector<1x32xf32> to vector<8x32xf32>
    %713 = arith.mulf %69, %712 : vector<8x32xf32>
    %714 = arith.addf %711, %713 : vector<8x32xf32>
    %c3_583 = arith.constant 3 : index
    %c0_584 = arith.constant 0 : index
    %c0_585 = arith.constant 0 : index
    %c0_586 = arith.constant 0 : index
    %715 = vector.load %arg3[%c3_583, %c0_584, %c0_585, %c0_586] : memref<4x4x4x32xf32, #tpu.memory_space<vmem>>, vector<1x1x1x32xf32>
    %716 = vector.shape_cast %715 : vector<1x1x1x32xf32> to vector<1x32xf32>
    %c3_587 = arith.constant 3 : index
    %c0_588 = arith.constant 0 : index
    %c0_589 = arith.constant 0 : index
    %c0_590 = arith.constant 0 : index
    %717 = vector.load %arg4[%c3_587, %c0_588, %c0_589, %c0_590] : memref<4x4x4x32xf32, #tpu.memory_space<vmem>>, vector<1x1x1x32xf32>
    %718 = vector.shape_cast %717 : vector<1x1x1x32xf32> to vector<1x32xf32>
    %719 = vector.broadcast %716 : vector<1x32xf32> to vector<8x32xf32>
    %720 = arith.mulf %37, %719 : vector<8x32xf32>
    %721 = arith.addf %714, %720 : vector<8x32xf32>
    %722 = vector.broadcast %718 : vector<1x32xf32> to vector<8x32xf32>
    %723 = arith.mulf %85, %722 : vector<8x32xf32>
    %724 = arith.addf %721, %723 : vector<8x32xf32>
    %c3_591 = arith.constant 3 : index
    %c1_592 = arith.constant 1 : index
    %c2_593 = arith.constant 2 : index
    %c0_594 = arith.constant 0 : index
    %725 = vector.load %arg3[%c3_591, %c1_592, %c2_593, %c0_594] : memref<4x4x4x32xf32, #tpu.memory_space<vmem>>, vector<1x1x1x32xf32>
    %726 = vector.shape_cast %725 : vector<1x1x1x32xf32> to vector<1x32xf32>
    %c3_595 = arith.constant 3 : index
    %c1_596 = arith.constant 1 : index
    %c2_597 = arith.constant 2 : index
    %c0_598 = arith.constant 0 : index
    %727 = vector.load %arg4[%c3_595, %c1_596, %c2_597, %c0_598] : memref<4x4x4x32xf32, #tpu.memory_space<vmem>>, vector<1x1x1x32xf32>
    %728 = vector.shape_cast %727 : vector<1x1x1x32xf32> to vector<1x32xf32>
    %729 = vector.broadcast %726 : vector<1x32xf32> to vector<8x32xf32>
    %730 = arith.mulf %25, %729 : vector<8x32xf32>
    %731 = arith.addf %724, %730 : vector<8x32xf32>
    %732 = vector.broadcast %728 : vector<1x32xf32> to vector<8x32xf32>
    %733 = arith.mulf %73, %732 : vector<8x32xf32>
    %734 = arith.addf %731, %733 : vector<8x32xf32>
    %c3_599 = arith.constant 3 : index
    %c1_600 = arith.constant 1 : index
    %c0_601 = arith.constant 0 : index
    %c0_602 = arith.constant 0 : index
    %735 = vector.load %arg3[%c3_599, %c1_600, %c0_601, %c0_602] : memref<4x4x4x32xf32, #tpu.memory_space<vmem>>, vector<1x1x1x32xf32>
    %736 = vector.shape_cast %735 : vector<1x1x1x32xf32> to vector<1x32xf32>
    %c3_603 = arith.constant 3 : index
    %c1_604 = arith.constant 1 : index
    %c0_605 = arith.constant 0 : index
    %c0_606 = arith.constant 0 : index
    %737 = vector.load %arg4[%c3_603, %c1_604, %c0_605, %c0_606] : memref<4x4x4x32xf32, #tpu.memory_space<vmem>>, vector<1x1x1x32xf32>
    %738 = vector.shape_cast %737 : vector<1x1x1x32xf32> to vector<1x32xf32>
    %739 = vector.broadcast %736 : vector<1x32xf32> to vector<8x32xf32>
    %740 = arith.mulf %41, %739 : vector<8x32xf32>
    %741 = arith.addf %734, %740 : vector<8x32xf32>
    %742 = vector.broadcast %738 : vector<1x32xf32> to vector<8x32xf32>
    %743 = arith.mulf %89, %742 : vector<8x32xf32>
    %744 = arith.addf %741, %743 : vector<8x32xf32>
    %c3_607 = arith.constant 3 : index
    %c2_608 = arith.constant 2 : index
    %c2_609 = arith.constant 2 : index
    %c0_610 = arith.constant 0 : index
    %745 = vector.load %arg3[%c3_607, %c2_608, %c2_609, %c0_610] : memref<4x4x4x32xf32, #tpu.memory_space<vmem>>, vector<1x1x1x32xf32>
    %746 = vector.shape_cast %745 : vector<1x1x1x32xf32> to vector<1x32xf32>
    %c3_611 = arith.constant 3 : index
    %c2_612 = arith.constant 2 : index
    %c2_613 = arith.constant 2 : index
    %c0_614 = arith.constant 0 : index
    %747 = vector.load %arg4[%c3_611, %c2_612, %c2_613, %c0_614] : memref<4x4x4x32xf32, #tpu.memory_space<vmem>>, vector<1x1x1x32xf32>
    %748 = vector.shape_cast %747 : vector<1x1x1x32xf32> to vector<1x32xf32>
    %749 = vector.broadcast %746 : vector<1x32xf32> to vector<8x32xf32>
    %750 = arith.mulf %29, %749 : vector<8x32xf32>
    %751 = arith.addf %744, %750 : vector<8x32xf32>
    %752 = vector.broadcast %748 : vector<1x32xf32> to vector<8x32xf32>
    %753 = arith.mulf %77, %752 : vector<8x32xf32>
    %754 = arith.addf %751, %753 : vector<8x32xf32>
    %c3_615 = arith.constant 3 : index
    %c2_616 = arith.constant 2 : index
    %c0_617 = arith.constant 0 : index
    %c0_618 = arith.constant 0 : index
    %755 = vector.load %arg3[%c3_615, %c2_616, %c0_617, %c0_618] : memref<4x4x4x32xf32, #tpu.memory_space<vmem>>, vector<1x1x1x32xf32>
    %756 = vector.shape_cast %755 : vector<1x1x1x32xf32> to vector<1x32xf32>
    %c3_619 = arith.constant 3 : index
    %c2_620 = arith.constant 2 : index
    %c0_621 = arith.constant 0 : index
    %c0_622 = arith.constant 0 : index
    %757 = vector.load %arg4[%c3_619, %c2_620, %c0_621, %c0_622] : memref<4x4x4x32xf32, #tpu.memory_space<vmem>>, vector<1x1x1x32xf32>
    %758 = vector.shape_cast %757 : vector<1x1x1x32xf32> to vector<1x32xf32>
    %759 = vector.broadcast %756 : vector<1x32xf32> to vector<8x32xf32>
    %760 = arith.mulf %45, %759 : vector<8x32xf32>
    %761 = arith.addf %754, %760 : vector<8x32xf32>
    %762 = vector.broadcast %758 : vector<1x32xf32> to vector<8x32xf32>
    %763 = arith.mulf %93, %762 : vector<8x32xf32>
    %764 = arith.addf %761, %763 : vector<8x32xf32>
    %c3_623 = arith.constant 3 : index
    %c3_624 = arith.constant 3 : index
    %c2_625 = arith.constant 2 : index
    %c0_626 = arith.constant 0 : index
    %765 = vector.load %arg3[%c3_623, %c3_624, %c2_625, %c0_626] : memref<4x4x4x32xf32, #tpu.memory_space<vmem>>, vector<1x1x1x32xf32>
    %766 = vector.shape_cast %765 : vector<1x1x1x32xf32> to vector<1x32xf32>
    %c3_627 = arith.constant 3 : index
    %c3_628 = arith.constant 3 : index
    %c2_629 = arith.constant 2 : index
    %c0_630 = arith.constant 0 : index
    %767 = vector.load %arg4[%c3_627, %c3_628, %c2_629, %c0_630] : memref<4x4x4x32xf32, #tpu.memory_space<vmem>>, vector<1x1x1x32xf32>
    %768 = vector.shape_cast %767 : vector<1x1x1x32xf32> to vector<1x32xf32>
    %769 = vector.broadcast %766 : vector<1x32xf32> to vector<8x32xf32>
    %770 = arith.mulf %33, %769 : vector<8x32xf32>
    %771 = arith.addf %764, %770 : vector<8x32xf32>
    %772 = vector.broadcast %768 : vector<1x32xf32> to vector<8x32xf32>
    %773 = arith.mulf %81, %772 : vector<8x32xf32>
    %774 = arith.addf %771, %773 : vector<8x32xf32>
    %c3_631 = arith.constant 3 : index
    %c3_632 = arith.constant 3 : index
    %c0_633 = arith.constant 0 : index
    %c0_634 = arith.constant 0 : index
    %775 = vector.load %arg3[%c3_631, %c3_632, %c0_633, %c0_634] : memref<4x4x4x32xf32, #tpu.memory_space<vmem>>, vector<1x1x1x32xf32>
    %776 = vector.shape_cast %775 : vector<1x1x1x32xf32> to vector<1x32xf32>
    %c3_635 = arith.constant 3 : index
    %c3_636 = arith.constant 3 : index
    %c0_637 = arith.constant 0 : index
    %c0_638 = arith.constant 0 : index
    %777 = vector.load %arg4[%c3_635, %c3_636, %c0_637, %c0_638] : memref<4x4x4x32xf32, #tpu.memory_space<vmem>>, vector<1x1x1x32xf32>
    %778 = vector.shape_cast %777 : vector<1x1x1x32xf32> to vector<1x32xf32>
    %779 = vector.broadcast %776 : vector<1x32xf32> to vector<8x32xf32>
    %780 = arith.mulf %49, %779 : vector<8x32xf32>
    %781 = arith.addf %774, %780 : vector<8x32xf32>
    %782 = vector.broadcast %778 : vector<1x32xf32> to vector<8x32xf32>
    %783 = arith.mulf %97, %782 : vector<8x32xf32>
    %784 = arith.addf %781, %783 : vector<8x32xf32>
    %785 = vector.broadcast %617 : f32 to vector<8x32xf32>
    %786 = arith.addf %784, %785 : vector<8x32xf32>
    %c0_639 = arith.constant 0 : index
    %c3_640 = arith.constant 3 : index
    %c0_641 = arith.constant 0 : index
    %c32_642 = arith.constant 32 : index
    %787 = vector.load %arg6[%c0_639, %c3_640, %c0_641, %c32_642] : memref<1x4x8x64xf32, #tpu.memory_space<vmem>>, vector<1x1x8x32xf32>
    %788 = vector.shape_cast %787 : vector<1x1x8x32xf32> to vector<8x32xf32>
    %789 = vector.shape_cast %786 : vector<8x32xf32> to vector<1x1x8x32xf32>
    tpu.vector_store %arg6[%c0_639, %c3_640, %c0_641, %c32_642], %789 {strides = array<i32>} : memref<1x4x8x64xf32, #tpu.memory_space<vmem>>, vector<1x1x8x32xf32>,
    return
  }
  func.func @transform_0(%arg0: i32, %arg1: i32) -> (i32, i32, i32, i32) {
    %c0_i32 = arith.constant 0 : i32
    %c0_i32_0 = arith.constant 0 : i32
    %c0_i32_1 = arith.constant 0 : i32
    %c0_i32_2 = arith.constant 0 : i32
    return %arg0, %c0_i32, %c0_i32_0, %c0_i32_1 : i32, i32, i32, i32
  }
  func.func @transform_1(%arg0: i32, %arg1: i32) -> (i32, i32, i32, i32) {
    %c0_i32 = arith.constant 0 : i32
    %c0_i32_0 = arith.constant 0 : i32
    %c0_i32_1 = arith.constant 0 : i32
    %c0_i32_2 = arith.constant 0 : i32
    %c0_i32_3 = arith.constant 0 : i32
    return %c0_i32, %c0_i32_0, %c0_i32_1, %c0_i32_2 : i32, i32, i32, i32
  }
  func.func @transform_2(%arg0: i32, %arg1: i32) -> (i32, i32, i32, i32) {
    %c0_i32 = arith.constant 0 : i32
    %c0_i32_0 = arith.constant 0 : i32
    %c0_i32_1 = arith.constant 0 : i32
    %c0_i32_2 = arith.constant 0 : i32
    %c0_i32_3 = arith.constant 0 : i32
    return %c0_i32, %c0_i32_0, %c0_i32_1, %c0_i32_2 : i32, i32, i32, i32
  }
  func.func @transform_3(%arg0: i32, %arg1: i32) -> i32 {
    %c0_i32 = arith.constant 0 : i32
    %c0_i32_0 = arith.constant 0 : i32
    return %c0_i32 : i32
  }
  func.func @transform_4(%arg0: i32, %arg1: i32) -> (i32, i32, i32, i32) {
    %c0_i32 = arith.constant 0 : i32
    %c0_i32_0 = arith.constant 0 : i32
    %c0_i32_1 = arith.constant 0 : i32
    return %arg0, %c0_i32, %arg1, %c0_i32_0 : i32, i32, i32, i32
  }
}

</mosaic_0001>

<llo_original>
// kernel: tpu_custom_call.1
$region0: #{tpu_custom_call.1}
  #allocation0 [shape = 'u32[]', space=smem, size = 0x4, offset = 0x4, fixed_abs, tag = 'smem constant byte address 0x4 - core index']
  #allocation1 [shape = 'u32[72,128]{1,0:T(1,128)}', space=vmem, size = 0x9000, scoped, tag = 'internal scratch']
  %s0 = inlined_call_operand.vmem [shape: f32[2,4,18,36], index: 0, kind: input, shape index: {}]
  %s1 = inlined_call_operand.vmem [shape: f32[4,4,4,32], index: 1, kind: input, shape index: {}]
  %s2 = inlined_call_operand.vmem [shape: f32[4,4,4,32], index: 2, kind: input, shape index: {}]
  %s3 = inlined_call_operand.vmem [shape: f32[4], index: 3, kind: input, shape index: {}]
  %s4 = inlined_call_operand.hbm [shape: f32[2,4,16,64], index: 4, kind: output, shape index: {}]
  %s5 = sld [smem:[#allocation0]]
  $region53: #{tpu_custom_call.1} parent=0
    _
  %s7 = ssub.s32 1, %s5
  %s8 = scalar_select 0, %s7, %s5
  $region1: #{tpu_custom_call.1} parent=0
    #allocation2 [shape = 'u8[512]{0}', space=smem, size = 0x200, scoped, tag = 'input window, operand 3, single buffered']
    #allocation3 [shape = 's32[2]{0}', space=sflag, size = 0x8, scoped, tag = 'scoped memory for tpu_custom_call.1']
    #allocation4 [shape = 's32[2]{0}', space=sflag, size = 0x8, scoped, tag = 'scoped memory for tpu_custom_call.1']
    #allocation5 [shape = 'u8[32768]{0}', space=vmem, size = 0x8000, scoped, tag = 'output window, operand 0']
    %9 = vsyncpa [#allocation4], 0
    %10 = vsyncpa [#allocation3], 0
    %s11 = scalar_lea.sflag [#allocation3], 1
    %12 = vsyncpa %s11, 0
    loop: start=0, step=1, limit=6
    $region2: #{tpu_custom_call.1} parent=1 // loop_pre_header
      _
    $region3: #{tpu_custom_call.1} parent=1 // loop_header
      %s14 = sphi 0, %s18
      %p15 = scmp.ge.s32.totalorder %s14, 6
      %s21 = sphi 0, %s33
      %s22 = sphi 0, %s29
      %s23 = sphi 0, %s21
      %s24 = sphi 0, %s22
      %s25 = sphi 0, %s23
      %s26 = sphi 0, %s24
      %s36 = sphi 0, %s38
      %s39 = sphi 0, %s36
      %s40 = sphi 0, %s39
      %s56 = sphi 0, %s40
      %s60 = sphi 0, %s60
      %s62 = sphi 0, %s60
      %s63 = sphi 0, %s62
      %s77 = sphi 0, %s63
      %s81 = sphi 0, %s81
      %s83 = sphi 0, %s81
      %s84 = sphi 0, %s83
      %s98 = sphi 0, %s84
      %s102 = sphi 0, %s102
      %s104 = sphi 0, %s102
      %s105 = sphi 0, %s104
      %s119 = sphi 0, %s105
      %s127 = sphi 0, %s129
      %s130 = sphi 0, %s127
      %s131 = sphi 0, %s130
      %s147 = sphi 0, %s131
    $region4: #{tpu_custom_call.1} parent=1 // loop_header_branch
      %17 = sbr.rel (%p15) target = $region8
    $region5: #{tpu_custom_call.1} parent=1 // loop_body
      %s19 = ssub.s32 %s14, 1
      %s20 = ssub.s32 %s14, 2
      %s27 = sadd.s32 1, %s22
      %p28 = scmp.ge.s32.totalorder %s27, 2
      %s29 = scalar_select %p28, 0, %s27
      %s30 = sadd.s32 1, %s21
      %s31 = scalar_select %p28, %s30, %s21
      %p32 = scmp.ge.s32.totalorder %s31, 2
      %s33 = scalar_select %p32, 0, %s31
      %s34 = ssub.s32 %s21, %s33
      %p35 = scmp.eq.s32.totalorder %s34, 0
      %s37 = sadd.s32 %s36, 1
      %s38 = scalar_select %p35, %s36, %s37
      %p41 = pneg %p35
      %p42 = scmp.eq.s32.totalorder %s14, 3
      %p43 = por %p41, %p42
      %p44 = scmp.ne.s32.totalorder %s36, %s39
      %p45 = scmp.eq.s32.totalorder %s14, 0
      %p46 = por %p44, %p45
      %p47 = scmp.ne.s32.totalorder %s36, %s39
      %p48 = scmp.eq.s32.totalorder %s19, 3
      %p49 = por %p47, %p48
      %p50 = scmp.ne.s32.totalorder %s39, %s40
      %p51 = scmp.eq.s32.totalorder %s19, 0
      %p52 = por %p50, %p51
      %p53 = scmp.ne.s32.totalorder %s39, %s40
      %p54 = scmp.eq.s32.totalorder %s20, 3
      %p55 = por %p53, %p54
      %p57 = scmp.ne.s32.totalorder %s40, %s56
      %p58 = scmp.eq.s32.totalorder %s20, 0
      %p59 = por %p57, %p58
      %s61 = sadd.s32 %s60, 1
      %p64 = scmp.eq.s32.totalorder %s14, 3
      %p65 = scmp.ne.s32.totalorder %s60, %s62
      %p66 = scmp.eq.s32.totalorder %s14, 0
      %p67 = por %p65, %p66
      %p68 = scmp.ne.s32.totalorder %s60, %s62
      %p69 = scmp.eq.s32.totalorder %s19, 3
      %p70 = por %p68, %p69
      %p71 = scmp.ne.s32.totalorder %s62, %s63
      %p72 = scmp.eq.s32.totalorder %s19, 0
      %p73 = por %p71, %p72
      %p74 = scmp.ne.s32.totalorder %s62, %s63
      %p75 = scmp.eq.s32.totalorder %s20, 3
      %p76 = por %p74, %p75
      %p78 = scmp.ne.s32.totalorder %s63, %s77
      %p79 = scmp.eq.s32.totalorder %s20, 0
      %p80 = por %p78, %p79
      %s82 = sadd.s32 %s81, 1
      %p85 = scmp.eq.s32.totalorder %s14, 3
      %p86 = scmp.ne.s32.totalorder %s81, %s83
      %p87 = scmp.eq.s32.totalorder %s14, 0
      %p88 = por %p86, %p87
      %p89 = scmp.ne.s32.totalorder %s81, %s83
      %p90 = scmp.eq.s32.totalorder %s19, 3
      %p91 = por %p89, %p90
      %p92 = scmp.ne.s32.totalorder %s83, %s84
      %p93 = scmp.eq.s32.totalorder %s19, 0
      %p94 = por %p92, %p93
      %p95 = scmp.ne.s32.totalorder %s83, %s84
      %p96 = scmp.eq.s32.totalorder %s20, 3
      %p97 = por %p95, %p96
      %p99 = scmp.ne.s32.totalorder %s84, %s98
      %p100 = scmp.eq.s32.totalorder %s20, 0
      %p101 = por %p99, %p100
      %s103 = sadd.s32 %s102, 1
      %p106 = scmp.eq.s32.totalorder %s14, 3
      %p107 = scmp.ne.s32.totalorder %s102, %s104
      %p108 = scmp.eq.s32.totalorder %s14, 0
      %p109 = por %p107, %p108
      %p110 = scmp.ne.s32.totalorder %s102, %s104
      %p111 = scmp.eq.s32.totalorder %s19, 3
      %p112 = por %p110, %p111
      %p113 = scmp.ne.s32.totalorder %s104, %s105
      %p114 = scmp.eq.s32.totalorder %s19, 0
      %p115 = por %p113, %p114
      %p116 = scmp.ne.s32.totalorder %s104, %s105
      %p117 = scmp.eq.s32.totalorder %s20, 3
      %p118 = por %p116, %p117
      %p120 = scmp.ne.s32.totalorder %s105, %s119
      %p121 = scmp.eq.s32.totalorder %s20, 0
      %p122 = por %p120, %p121
      %s123 = ssub.s32 %s21, %s33
      %s124 = ssub.s32 %s22, %s29
      %s125 = sor.u32 %s123, %s124
      %p126 = scmp.eq.s32.totalorder %s125, 0
      %s128 = sadd.s32 %s127, 1
      %s129 = scalar_select %p126, %s127, %s128
      %p132 = pneg %p126
      %p133 = scmp.eq.s32.totalorder %s14, 3
      %p134 = por %p132, %p133
      %p135 = scmp.ne.s32.totalorder %s127, %s130
      %p136 = scmp.eq.s32.totalorder %s14, 0
      %p137 = por %p135, %p136
      %p138 = scmp.ne.s32.totalorder %s127, %s130
      %p139 = scmp.eq.s32.totalorder %s19, 3
      %p140 = por %p138, %p139
      %p141 = scmp.ne.s32.totalorder %s130, %s131
      %p142 = scmp.eq.s32.totalorder %s19, 0
      %p143 = por %p141, %p142
      %p144 = scmp.ne.s32.totalorder %s130, %s131
      %p145 = scmp.eq.s32.totalorder %s20, 3
      %p146 = por %p144, %p145
      %p148 = scmp.ne.s32.totalorder %s131, %s147
      %p149 = scmp.eq.s32.totalorder %s20, 0
      %p150 = por %p148, %p149
      %p151 = scmp.le.s32.totalorder 1, %s14
      %p152 = scmp.lt.s32.totalorder %s14, 5
      %p153 = pnand %p151, %p152
      %p154 = pneg %p153
      // Predicated region
      $region9: #{tpu_custom_call.1} parent=5 // pred_check
        _
      $region10: #{tpu_custom_call.1} parent=5 // pred_check_branch
        %156 = sbr.rel (%p153) target = $region12
      $region11: #{tpu_custom_call.1} parent=5 // pred_region
        %s157 = ssub.s32 %s14, 1
        // Predicated region
        $region13: #{tpu_custom_call.1} parent=11 // pred_check
          %p158 = pneg %p73
        $region14: #{tpu_custom_call.1} parent=11 // pred_check_branch
          %160 = sbr.rel (%p158) target = $region16
        $region15: #{tpu_custom_call.1} parent=11 // pred_region
          _
        $region16: #{tpu_custom_call.1} parent=11 // pred_fallthru
          _
        // Predicated region
        $region17: #{tpu_custom_call.1} parent=11 // pred_check
          %p161 = pneg %p94
        $region18: #{tpu_custom_call.1} parent=11 // pred_check_branch
          %163 = sbr.rel (%p161) target = $region20
        $region19: #{tpu_custom_call.1} parent=11 // pred_region
          _
        $region20: #{tpu_custom_call.1} parent=11 // pred_fallthru
          _
        // Predicated region
        $region21: #{tpu_custom_call.1} parent=11 // pred_check
          %p164 = pneg %p115
        $region22: #{tpu_custom_call.1} parent=11 // pred_check_branch
          %166 = sbr.rel (%p164) target = $region24
        $region23: #{tpu_custom_call.1} parent=11 // pred_region
          %168 = vsyncadd [#allocation4], 0
          %s170 = sshll.u32 %s3, 4
          %s171 = int_to_ptr.vmem [resolvable:$true] %s170
          %173 = dma.vmem_to_smem %s171, 16, [#allocation2], [#allocation4]
        $region24: #{tpu_custom_call.1} parent=11 // pred_fallthru
          _
      $region12: #{tpu_custom_call.1} parent=5 // pred_fallthru
        _
      %p174 = scmp.lt.s32.totalorder %s14, 4
      // Predicated region
      $region25: #{tpu_custom_call.1} parent=5 // pred_check
        %p175 = pneg %p174
      $region26: #{tpu_custom_call.1} parent=5 // pred_check_branch
        %177 = sbr.rel (%p175) target = $region28
      $region27: #{tpu_custom_call.1} parent=5 // pred_region
        // Predicated region
        $region29: #{tpu_custom_call.1} parent=27 // pred_check
          %p178 = pneg %p46
        $region30: #{tpu_custom_call.1} parent=27 // pred_check_branch
          %180 = sbr.rel (%p178) target = $region32
        $region31: #{tpu_custom_call.1} parent=27 // pred_region
          %p181 = scmp.lt.s32.totalorder %s21, 1
          %s182 = scalar_select %p181, %s21, 1
          %s183 = smul.addr %s182, 12
          %s184 = smul.addr %s183, 8
          %s185 = scalar_lea.vmem %s0, %s184
        $region32: #{tpu_custom_call.1} parent=27 // pred_fallthru
          _
      $region28: #{tpu_custom_call.1} parent=5 // pred_fallthru
        _
      %p186 = scmp.le.s32.totalorder 1, %s14
      %p187 = scmp.lt.s32.totalorder %s14, 5
      %p188 = pnand %p186, %p187
      %p189 = pneg %p188
      // Predicated region
      $region33: #{tpu_custom_call.1} parent=5 // pred_check
        _
      $region34: #{tpu_custom_call.1} parent=5 // pred_check_branch
        %191 = sbr.rel (%p188) target = $region36
      $region35: #{tpu_custom_call.1} parent=5 // pred_region
        %s192 = ssub.s32 %s14, 1
        // Predicated region
        $region37: #{tpu_custom_call.1} parent=35 // pred_check
          %p193 = pneg %p115
        $region38: #{tpu_custom_call.1} parent=35 // pred_check_branch
          %195 = sbr.rel (%p193) target = $region40
        $region39: #{tpu_custom_call.1} parent=35 // pred_region
          %197 = dma.done [#allocation4], 16
        $region40: #{tpu_custom_call.1} parent=35 // pred_fallthru
          _
        %198 = sfence
        %p199 = scmp.lt.s32.totalorder %s23, 1
        %s200 = scalar_select %p199, %s23, 1
        %s201 = smul.addr %s200, 12
        %s202 = smul.addr %s201, 8
        %s203 = scalar_lea.vmem %s0, %s202
        %p204 = pneg %p52
        %p205 = pneg %p49
        %p206 = pneg %p73
        %p207 = pneg %p70
        %p208 = pneg %p94
        %p209 = pneg %p91
        %p210 = pneg %p115
        %p211 = pneg %p112
        %p212 = pneg %p143
        %p213 = pneg %p140
        %s214 = sand.u32 %s130, 1
        %s215 = scalar_lea.sflag [#allocation3], %s214
        %s216 = sand.u32 %s130, 1
        %s217 = smul.addr %s216, 32
        %s218 = scalar_lea.vmem [#allocation5], %s217
        %p219 = scmp.lt.s32.totalorder %s23, 1
        %s220 = scalar_select %p219, %s23, 1
        %s221 = smul.addr %s220, 12
        %s222 = smul.addr %s221, 8
        %s223 = scalar_lea.vmem %s0, %s222
        %s224 = smul.u32 %s24, 8
        %s225 = scalar_lea.vmem %s223, %s224
        %v226 = vld [vmem:[%s225] sm:$0xff]
        %s227 = sadd.s32 %s224, 24
        %s228 = scalar_lea.vmem %s223, %s227
        %v229 = vld [vmem:[%s228] sm:$0xff]
        %s230 = sadd.s32 %s224, 48
        %s231 = scalar_lea.vmem %s223, %s230
        %v232 = vld [vmem:[%s231] sm:$0xff]
        %s233 = sadd.s32 %s224, 72
        %s234 = scalar_lea.vmem %s223, %s233
        %v235 = vld [vmem:[%s234] sm:$0xff]
        %s236 = sadd.s32 %s224, 1
        %s237 = scalar_lea.vmem %s223, %s236
        %v238 = vld [vmem:[%s237] sm:$0xff]
        %s239 = sadd.s32 %s236, 24
        %s240 = scalar_lea.vmem %s223, %s239
        %v241 = vld [vmem:[%s240] sm:$0xff]
        %s242 = sadd.s32 %s236, 48
        %s243 = scalar_lea.vmem %s223, %s242
        %v244 = vld [vmem:[%s243] sm:$0xff]
        %s245 = sadd.s32 %s236, 72
        %s246 = scalar_lea.vmem %s223, %s245
        %v247 = vld [vmem:[%s246] sm:$0xff]
        %s248 = sadd.s32 %s224, 2
        %s249 = scalar_lea.vmem %s223, %s248
        %v250 = vld [vmem:[%s249] sm:$0xff]
        %s251 = sadd.s32 %s248, 24
        %s252 = scalar_lea.vmem %s223, %s251
        %v253 = vld [vmem:[%s252] sm:$0xff]
        %s254 = sadd.s32 %s248, 48
        %s255 = scalar_lea.vmem %s223, %s254
        %v256 = vld [vmem:[%s255] sm:$0xff]
        %s257 = sadd.s32 %s248, 72
        %s258 = scalar_lea.vmem %s223, %s257
        %v259 = vld [vmem:[%s258] sm:$0xff]
        %s260 = sld [smem:[#allocation2]]
        %v261 = vld [vmem:[%s1 + $0x3] sm:$0x1]
        %v262 = vld [vmem:[%s2 + $0x3] sm:$0x1]
        %v263 = vperm.slane %v261, 0
        %265 = vrot.lane.b32.xlu0 %v263, 1
        %v266 = vpop.permute.xlu0 %265
        %v268 = vmul.f32 %v226, %v266
        %v269 = vadd.f32 %v268, 0.0
        %v270 = vperm.slane %v262, 0
        %272 = vrot.lane.b32.xlu0 %v270, 3
        %v273 = vpop.permute.xlu0 %272
        %v275 = vmul.f32 %v226, %v273
        %277 = vrot.lane.b32.xlu0 %v275, 126
        %v278 = vpop.permute.xlu0 %277
        %v280 = vadd.f32 %v269, %v278
        %v281 = vld [vmem:[%s1 + $0x1] sm:$0x1]
        %v282 = vld [vmem:[%s2 + $0x1] sm:$0x1]
        %v283 = vperm.slane %v281, 0
        %285 = vrot.lane.b32.xlu0 %v283, 1
        %v286 = vpop.permute.xlu0 %285
        %v288 = vmul.f32 %v238, %v286
        %v289 = vadd.f32 %v280, %v288
        %v290 = vperm.slane %v282, 0
        %292 = vrot.lane.b32.xlu0 %v290, 3
        %v293 = vpop.permute.xlu0 %292
        %v295 = vmul.f32 %v238, %v293
        %297 = vrot.lane.b32.xlu0 %v295, 126
        %v298 = vpop.permute.xlu0 %297
        %v300 = vadd.f32 %v289, %v298
        %s301 = scalar_lea.vmem %s1, 4
        %v302 = vld [vmem:[%s301 + $0x3] sm:$0x1]
        %s303 = scalar_lea.vmem %s2, 4
        %v304 = vld [vmem:[%s303 + $0x3] sm:$0x1]
        %v305 = vperm.slane %v302, 0
        %307 = vrot.lane.b32.xlu0 %v305, 1
        %v308 = vpop.permute.xlu0 %307
        %v310 = vmul.f32 %v229, %v308
        %v311 = vadd.f32 %v300, %v310
        %v312 = vperm.slane %v304, 0
        %314 = vrot.lane.b32.xlu0 %v312, 3
        %v315 = vpop.permute.xlu0 %314
        %v317 = vmul.f32 %v229, %v315
        %319 = vrot.lane.b32.xlu0 %v317, 126
        %v320 = vpop.permute.xlu0 %319
        %v322 = vadd.f32 %v311, %v320
        %v323 = vld [vmem:[%s301 + $0x1] sm:$0x1]
        %v324 = vld [vmem:[%s303 + $0x1] sm:$0x1]
        %v325 = vperm.slane %v323, 0
        %327 = vrot.lane.b32.xlu0 %v325, 1
        %v328 = vpop.permute.xlu0 %327
        %v330 = vmul.f32 %v241, %v328
        %v331 = vadd.f32 %v322, %v330
        %v332 = vperm.slane %v324, 0
        %334 = vrot.lane.b32.xlu0 %v332, 3
        %v335 = vpop.permute.xlu0 %334
        %v337 = vmul.f32 %v241, %v335
        %339 = vrot.lane.b32.xlu0 %v337, 126
        %v340 = vpop.permute.xlu0 %339
        %v342 = vadd.f32 %v331, %v340
        %s343 = scalar_lea.vmem %s1, 8
        %v344 = vld [vmem:[%s343 + $0x3] sm:$0x1]
        %s345 = scalar_lea.vmem %s2, 8
        %v346 = vld [vmem:[%s345 + $0x3] sm:$0x1]
        %v347 = vperm.slane %v344, 0
        %349 = vrot.lane.b32.xlu0 %v347, 1
        %v350 = vpop.permute.xlu0 %349
        %v352 = vmul.f32 %v232, %v350
        %v353 = vadd.f32 %v342, %v352
        %v354 = vperm.slane %v346, 0
        %356 = vrot.lane.b32.xlu0 %v354, 3
        %v357 = vpop.permute.xlu0 %356
        %v359 = vmul.f32 %v232, %v357
        %361 = vrot.lane.b32.xlu0 %v359, 126
        %v362 = vpop.permute.xlu0 %361
        %v364 = vadd.f32 %v353, %v362
        %v365 = vld [vmem:[%s343 + $0x1] sm:$0x1]
        %v366 = vld [vmem:[%s345 + $0x1] sm:$0x1]
        %v367 = vperm.slane %v365, 0
        %369 = vrot.lane.b32.xlu0 %v367, 1
        %v370 = vpop.permute.xlu0 %369
        %v372 = vmul.f32 %v244, %v370
        %v373 = vadd.f32 %v364, %v372
        %v374 = vperm.slane %v366, 0
        %376 = vrot.lane.b32.xlu0 %v374, 3
        %v377 = vpop.permute.xlu0 %376
        %v379 = vmul.f32 %v244, %v377
        %381 = vrot.lane.b32.xlu0 %v379, 126
        %v382 = vpop.permute.xlu0 %381
        %v384 = vadd.f32 %v373, %v382
        %s385 = scalar_lea.vmem %s1, 12
        %v386 = vld [vmem:[%s385 + $0x3] sm:$0x1]
        %s387 = scalar_lea.vmem %s2, 12
        %v388 = vld [vmem:[%s387 + $0x3] sm:$0x1]
        %v389 = vperm.slane %v386, 0
        %391 = vrot.lane.b32.xlu0 %v389, 1
        %v392 = vpop.permute.xlu0 %391
        %v394 = vmul.f32 %v235, %v392
        %v395 = vadd.f32 %v384, %v394
        %v396 = vperm.slane %v388, 0
        %398 = vrot.lane.b32.xlu0 %v396, 3
        %v399 = vpop.permute.xlu0 %398
        %v401 = vmul.f32 %v235, %v399
        %403 = vrot.lane.b32.xlu0 %v401, 126
        %v404 = vpop.permute.xlu0 %403
        %v406 = vadd.f32 %v395, %v404
        %v407 = vld [vmem:[%s385 + $0x1] sm:$0x1]
        %v408 = vld [vmem:[%s387 + $0x1] sm:$0x1]
        %v409 = vperm.slane %v407, 0
        %411 = vrot.lane.b32.xlu0 %v409, 1
        %v412 = vpop.permute.xlu0 %411
        %v414 = vmul.f32 %v247, %v412
        %v415 = vadd.f32 %v406, %v414
        %v416 = vperm.slane %v408, 0
        %418 = vrot.lane.b32.xlu0 %v416, 3
        %v419 = vpop.permute.xlu0 %418
        %v421 = vmul.f32 %v247, %v419
        %423 = vrot.lane.b32.xlu0 %v421, 126
        %v424 = vpop.permute.xlu0 %423
        %v426 = vadd.f32 %v415, %v424
        %v427 = vstv %s260
        %v428 = vadd.f32 %v426, %v427
        %430 = vrot.lane.b32.xlu0 %v428, 127
        %v431 = vpop.permute.xlu0 %430
        %vm433 = vcmask 261120
        %434 = vst.msk [vmem:[%s218] sm:$0xff] %vm433, %v431
        %v435 = vld [vmem:[%s1 + $0x2] sm:$0x1]
        %v436 = vld [vmem:[%s2 + $0x2] sm:$0x1]
        %v437 = vperm.slane %v435, 0
        %439 = vrot.lane.b32.xlu0 %v437, 1
        %v440 = vpop.permute.xlu0 %439
        %v442 = vmul.f32 %v238, %v440
        %v443 = vadd.f32 %v442, 0.0
        %v444 = vperm.slane %v436, 0
        %446 = vrot.lane.b32.xlu0 %v444, 3
        %v447 = vpop.permute.xlu0 %446
        %v449 = vmul.f32 %v238, %v447
        %451 = vrot.lane.b32.xlu0 %v449, 126
        %v452 = vpop.permute.xlu0 %451
        %v454 = vadd.f32 %v443, %v452
        %v455 = vld [vmem:[%s1] sm:$0x1]
        %v456 = vld [vmem:[%s2] sm:$0x1]
        %v457 = vperm.slane %v455, 0
        %459 = vrot.lane.b32.xlu0 %v457, 1
        %v460 = vpop.permute.xlu0 %459
        %v462 = vmul.f32 %v250, %v460
        %v463 = vadd.f32 %v454, %v462
        %v464 = vperm.slane %v456, 0
        %466 = vrot.lane.b32.xlu0 %v464, 3
        %v467 = vpop.permute.xlu0 %466
        %v469 = vmul.f32 %v250, %v467
        %471 = vrot.lane.b32.xlu0 %v469, 126
        %v472 = vpop.permute.xlu0 %471
        %v474 = vadd.f32 %v463, %v472
        %v475 = vld [vmem:[%s301 + $0x2] sm:$0x1]
        %v476 = vld [vmem:[%s303 + $0x2] sm:$0x1]
        %v477 = vperm.slane %v475, 0
        %479 = vrot.lane.b32.xlu0 %v477, 1
        %v480 = vpop.permute.xlu0 %479
        %v482 = vmul.f32 %v241, %v480
        %v483 = vadd.f32 %v474, %v482
        %v484 = vperm.slane %v476, 0
        %486 = vrot.lane.b32.xlu0 %v484, 3
        %v487 = vpop.permute.xlu0 %486
        %v489 = vmul.f32 %v241, %v487
        %491 = vrot.lane.b32.xlu0 %v489, 126
        %v492 = vpop.permute.xlu0 %491
        %v494 = vadd.f32 %v483, %v492
        %v495 = vld [vmem:[%s301] sm:$0x1]
        %v496 = vld [vmem:[%s303] sm:$0x1]
        %v497 = vperm.slane %v495, 0
        %499 = vrot.lane.b32.xlu0 %v497, 1
        %v500 = vpop.permute.xlu0 %499
        %v502 = vmul.f32 %v253, %v500
        %v503 = vadd.f32 %v494, %v502
        %v504 = vperm.slane %v496, 0
        %506 = vrot.lane.b32.xlu0 %v504, 3
        %v507 = vpop.permute.xlu0 %506
        %v509 = vmul.f32 %v253, %v507
        %511 = vrot.lane.b32.xlu0 %v509, 126
        %v512 = vpop.permute.xlu0 %511
        %v514 = vadd.f32 %v503, %v512
        %v515 = vld [vmem:[%s343 + $0x2] sm:$0x1]
        %v516 = vld [vmem:[%s345 + $0x2] sm:$0x1]
        %v517 = vperm.slane %v515, 0
        %519 = vrot.lane.b32.xlu0 %v517, 1
        %v520 = vpop.permute.xlu0 %519
        %v522 = vmul.f32 %v244, %v520
        %v523 = vadd.f32 %v514, %v522
        %v524 = vperm.slane %v516, 0
        %526 = vrot.lane.b32.xlu0 %v524, 3
        %v527 = vpop.permute.xlu0 %526
        %v529 = vmul.f32 %v244, %v527
        %531 = vrot.lane.b32.xlu0 %v529, 126
        %v532 = vpop.permute.xlu0 %531
        %v534 = vadd.f32 %v523, %v532
        %v535 = vld [vmem:[%s343] sm:$0x1]
        %v536 = vld [vmem:[%s345] sm:$0x1]
        %v537 = vperm.slane %v535, 0
        %539 = vrot.lane.b32.xlu0 %v537, 1
        %v540 = vpop.permute.xlu0 %539
        %v542 = vmul.f32 %v256, %v540
        %v543 = vadd.f32 %v534, %v542
        %v544 = vperm.slane %v536, 0
        %546 = vrot.lane.b32.xlu0 %v544, 3
        %v547 = vpop.permute.xlu0 %546
        %v549 = vmul.f32 %v256, %v547
        %551 = vrot.lane.b32.xlu0 %v549, 126
        %v552 = vpop.permute.xlu0 %551
        %v554 = vadd.f32 %v543, %v552
        %v555 = vld [vmem:[%s385 + $0x2] sm:$0x1]
        %v556 = vld [vmem:[%s387 + $0x2] sm:$0x1]
        %v557 = vperm.slane %v555, 0
        %559 = vrot.lane.b32.xlu0 %v557, 1
        %v560 = vpop.permute.xlu0 %559
        %v562 = vmul.f32 %v247, %v560
        %v563 = vadd.f32 %v554, %v562
        %v564 = vperm.slane %v556, 0
        %566 = vrot.lane.b32.xlu0 %v564, 3
        %v567 = vpop.permute.xlu0 %566
        %v569 = vmul.f32 %v247, %v567
        %571 = vrot.lane.b32.xlu0 %v569, 126
        %v572 = vpop.permute.xlu0 %571
        %v574 = vadd.f32 %v563, %v572
        %v575 = vld [vmem:[%s385] sm:$0x1]
        %v576 = vld [vmem:[%s387] sm:$0x1]
        %v577 = vperm.slane %v575, 0
        %579 = vrot.lane.b32.xlu0 %v577, 1
        %v580 = vpop.permute.xlu0 %579
        %v582 = vmul.f32 %v259, %v580
        %v583 = vadd.f32 %v574, %v582
        %v584 = vperm.slane %v576, 0
        %586 = vrot.lane.b32.xlu0 %v584, 3
        %v587 = vpop.permute.xlu0 %586
        %v589 = vmul.f32 %v259, %v587
        %591 = vrot.lane.b32.xlu0 %v589, 126
        %v592 = vpop.permute.xlu0 %591
        %v594 = vadd.f32 %v583, %v592
        %v595 = vadd.f32 %v594, %v427
        %597 = vrot.lane.b32.xlu0 %v595, 31
        %v598 = vpop.permute.xlu0 %597
        %vm600 = vcmask 523520
        %601 = vst.msk [vmem:[%s218] sm:$0xff] %vm600, %v598
        %s602 = sld [smem:[#allocation2 + $0x1]]
        %s603 = scalar_lea.vmem %s1, 16
        %v604 = vld [vmem:[%s603 + $0x3] sm:$0x1]
        %s605 = scalar_lea.vmem %s2, 16
        %v606 = vld [vmem:[%s605 + $0x3] sm:$0x1]
        %v607 = vperm.slane %v604, 0
        %609 = vrot.lane.b32.xlu0 %v607, 1
        %v610 = vpop.permute.xlu0 %609
        %v612 = vmul.f32 %v226, %v610
        %v613 = vadd.f32 %v612, 0.0
        %v614 = vperm.slane %v606, 0
        %616 = vrot.lane.b32.xlu0 %v614, 3
        %v617 = vpop.permute.xlu0 %616
        %v619 = vmul.f32 %v226, %v617
        %621 = vrot.lane.b32.xlu0 %v619, 126
        %v622 = vpop.permute.xlu0 %621
        %v624 = vadd.f32 %v613, %v622
        %v625 = vld [vmem:[%s603 + $0x1] sm:$0x1]
        %v626 = vld [vmem:[%s605 + $0x1] sm:$0x1]
        %v627 = vperm.slane %v625, 0
        %629 = vrot.lane.b32.xlu0 %v627, 1
        %v630 = vpop.permute.xlu0 %629
        %v632 = vmul.f32 %v238, %v630
        %v633 = vadd.f32 %v624, %v632
        %v634 = vperm.slane %v626, 0
        %636 = vrot.lane.b32.xlu0 %v634, 3
        %v637 = vpop.permute.xlu0 %636
        %v639 = vmul.f32 %v238, %v637
        %641 = vrot.lane.b32.xlu0 %v639, 126
        %v642 = vpop.permute.xlu0 %641
        %v644 = vadd.f32 %v633, %v642
        %s645 = scalar_lea.vmem %s1, 20
        %v646 = vld [vmem:[%s645 + $0x3] sm:$0x1]
        %s647 = scalar_lea.vmem %s2, 20
        %v648 = vld [vmem:[%s647 + $0x3] sm:$0x1]
        %v649 = vperm.slane %v646, 0
        %651 = vrot.lane.b32.xlu0 %v649, 1
        %v652 = vpop.permute.xlu0 %651
        %v654 = vmul.f32 %v229, %v652
        %v655 = vadd.f32 %v644, %v654
        %v656 = vperm.slane %v648, 0
        %658 = vrot.lane.b32.xlu0 %v656, 3
        %v659 = vpop.permute.xlu0 %658
        %v661 = vmul.f32 %v229, %v659
        %663 = vrot.lane.b32.xlu0 %v661, 126
        %v664 = vpop.permute.xlu0 %663
        %v666 = vadd.f32 %v655, %v664
        %v667 = vld [vmem:[%s645 + $0x1] sm:$0x1]
        %v668 = vld [vmem:[%s647 + $0x1] sm:$0x1]
        %v669 = vperm.slane %v667, 0
        %671 = vrot.lane.b32.xlu0 %v669, 1
        %v672 = vpop.permute.xlu0 %671
        %v674 = vmul.f32 %v241, %v672
        %v675 = vadd.f32 %v666, %v674
        %v676 = vperm.slane %v668, 0
        %678 = vrot.lane.b32.xlu0 %v676, 3
        %v679 = vpop.permute.xlu0 %678
        %v681 = vmul.f32 %v241, %v679
        %683 = vrot.lane.b32.xlu0 %v681, 126
        %v684 = vpop.permute.xlu0 %683
        %v686 = vadd.f32 %v675, %v684
        %s687 = scalar_lea.vmem %s1, 24
        %v688 = vld [vmem:[%s687 + $0x3] sm:$0x1]
        %s689 = scalar_lea.vmem %s2, 24
        %v690 = vld [vmem:[%s689 + $0x3] sm:$0x1]
        %v691 = vperm.slane %v688, 0
        %693 = vrot.lane.b32.xlu0 %v691, 1
        %v694 = vpop.permute.xlu0 %693
        %v696 = vmul.f32 %v232, %v694
        %v697 = vadd.f32 %v686, %v696
        %v698 = vperm.slane %v690, 0
        %700 = vrot.lane.b32.xlu0 %v698, 3
        %v701 = vpop.permute.xlu0 %700
        %v703 = vmul.f32 %v232, %v701
        %705 = vrot.lane.b32.xlu0 %v703, 126
        %v706 = vpop.permute.xlu0 %705
        %v708 = vadd.f32 %v697, %v706
        %v709 = vld [vmem:[%s687 + $0x1] sm:$0x1]
        %v710 = vld [vmem:[%s689 + $0x1] sm:$0x1]
        %v711 = vperm.slane %v709, 0
        %713 = vrot.lane.b32.xlu0 %v711, 1
        %v714 = vpop.permute.xlu0 %713
        %v716 = vmul.f32 %v244, %v714
        %v717 = vadd.f32 %v708, %v716
        %v718 = vperm.slane %v710, 0
        %720 = vrot.lane.b32.xlu0 %v718, 3
        %v721 = vpop.permute.xlu0 %720
        %v723 = vmul.f32 %v244, %v721
        %725 = vrot.lane.b32.xlu0 %v723, 126
        %v726 = vpop.permute.xlu0 %725
        %v728 = vadd.f32 %v717, %v726
        %s729 = scalar_lea.vmem %s1, 28
        %v730 = vld [vmem:[%s729 + $0x3] sm:$0x1]
        %s731 = scalar_lea.vmem %s2, 28
        %v732 = vld [vmem:[%s731 + $0x3] sm:$0x1]
        %v733 = vperm.slane %v730, 0
        %735 = vrot.lane.b32.xlu0 %v733, 1
        %v736 = vpop.permute.xlu0 %735
        %v738 = vmul.f32 %v235, %v736
        %v739 = vadd.f32 %v728, %v738
        %v740 = vperm.slane %v732, 0
        %742 = vrot.lane.b32.xlu0 %v740, 3
        %v743 = vpop.permute.xlu0 %742
        %v745 = vmul.f32 %v235, %v743
        %747 = vrot.lane.b32.xlu0 %v745, 126
        %v748 = vpop.permute.xlu0 %747
        %v750 = vadd.f32 %v739, %v748
        %v751 = vld [vmem:[%s729 + $0x1] sm:$0x1]
        %v752 = vld [vmem:[%s731 + $0x1] sm:$0x1]
        %v753 = vperm.slane %v751, 0
        %755 = vrot.lane.b32.xlu0 %v753, 1
        %v756 = vpop.permute.xlu0 %755
        %v758 = vmul.f32 %v247, %v756
        %v759 = vadd.f32 %v750, %v758
        %v760 = vperm.slane %v752, 0
        %762 = vrot.lane.b32.xlu0 %v760, 3
        %v763 = vpop.permute.xlu0 %762
        %v765 = vmul.f32 %v247, %v763
        %767 = vrot.lane.b32.xlu0 %v765, 126
        %v768 = vpop.permute.xlu0 %767
        %v770 = vadd.f32 %v759, %v768
        %v771 = vstv %s602
        %v772 = vadd.f32 %v770, %v771
        %774 = vrot.lane.b32.xlu0 %v772, 127
        %v775 = vpop.permute.xlu0 %774
        %s777 = scalar_lea.vmem %s218, 8 [#allocation5]
        %778 = vst.msk [vmem:[%s777] sm:$0xff] %vm433, %v775
        %v779 = vld [vmem:[%s603 + $0x2] sm:$0x1]
        %v780 = vld [vmem:[%s605 + $0x2] sm:$0x1]
        %v781 = vperm.slane %v779, 0
        %783 = vrot.lane.b32.xlu0 %v781, 1
        %v784 = vpop.permute.xlu0 %783
        %v786 = vmul.f32 %v238, %v784
        %v787 = vadd.f32 %v786, 0.0
        %v788 = vperm.slane %v780, 0
        %790 = vrot.lane.b32.xlu0 %v788, 3
        %v791 = vpop.permute.xlu0 %790
        %v793 = vmul.f32 %v238, %v791
        %795 = vrot.lane.b32.xlu0 %v793, 126
        %v796 = vpop.permute.xlu0 %795
        %v798 = vadd.f32 %v787, %v796
        %v799 = vld [vmem:[%s603] sm:$0x1]
        %v800 = vld [vmem:[%s605] sm:$0x1]
        %v801 = vperm.slane %v799, 0
        %803 = vrot.lane.b32.xlu0 %v801, 1
        %v804 = vpop.permute.xlu0 %803
        %v806 = vmul.f32 %v250, %v804
        %v807 = vadd.f32 %v798, %v806
        %v808 = vperm.slane %v800, 0
        %810 = vrot.lane.b32.xlu0 %v808, 3
        %v811 = vpop.permute.xlu0 %810
        %v813 = vmul.f32 %v250, %v811
        %815 = vrot.lane.b32.xlu0 %v813, 126
        %v816 = vpop.permute.xlu0 %815
        %v818 = vadd.f32 %v807, %v816
        %v819 = vld [vmem:[%s645 + $0x2] sm:$0x1]
        %v820 = vld [vmem:[%s647 + $0x2] sm:$0x1]
        %v821 = vperm.slane %v819, 0
        %823 = vrot.lane.b32.xlu0 %v821, 1
        %v824 = vpop.permute.xlu0 %823
        %v826 = vmul.f32 %v241, %v824
        %v827 = vadd.f32 %v818, %v826
        %v828 = vperm.slane %v820, 0
        %830 = vrot.lane.b32.xlu0 %v828, 3
        %v831 = vpop.permute.xlu0 %830
        %v833 = vmul.f32 %v241, %v831
        %835 = vrot.lane.b32.xlu0 %v833, 126
        %v836 = vpop.permute.xlu0 %835
        %v838 = vadd.f32 %v827, %v836
        %v839 = vld [vmem:[%s645] sm:$0x1]
        %v840 = vld [vmem:[%s647] sm:$0x1]
        %v841 = vperm.slane %v839, 0
        %843 = vrot.lane.b32.xlu0 %v841, 1
        %v844 = vpop.permute.xlu0 %843
        %v846 = vmul.f32 %v253, %v844
        %v847 = vadd.f32 %v838, %v846
        %v848 = vperm.slane %v840, 0
        %850 = vrot.lane.b32.xlu0 %v848, 3
        %v851 = vpop.permute.xlu0 %850
        %v853 = vmul.f32 %v253, %v851
        %855 = vrot.lane.b32.xlu0 %v853, 126
        %v856 = vpop.permute.xlu0 %855
        %v858 = vadd.f32 %v847, %v856
        %v859 = vld [vmem:[%s687 + $0x2] sm:$0x1]
        %v860 = vld [vmem:[%s689 + $0x2] sm:$0x1]
        %v861 = vperm.slane %v859, 0
        %863 = vrot.lane.b32.xlu0 %v861, 1
        %v864 = vpop.permute.xlu0 %863
        %v866 = vmul.f32 %v244, %v864
        %v867 = vadd.f32 %v858, %v866
        %v868 = vperm.slane %v860, 0
        %870 = vrot.lane.b32.xlu0 %v868, 3
        %v871 = vpop.permute.xlu0 %870
        %v873 = vmul.f32 %v244, %v871
        %875 = vrot.lane.b32.xlu0 %v873, 126
        %v876 = vpop.permute.xlu0 %875
        %v878 = vadd.f32 %v867, %v876
        %v879 = vld [vmem:[%s687] sm:$0x1]
        %v880 = vld [vmem:[%s689] sm:$0x1]
        %v881 = vperm.slane %v879, 0
        %883 = vrot.lane.b32.xlu0 %v881, 1
        %v884 = vpop.permute.xlu0 %883
        %v886 = vmul.f32 %v256, %v884
        %v887 = vadd.f32 %v878, %v886
        %v888 = vperm.slane %v880, 0
        %890 = vrot.lane.b32.xlu0 %v888, 3
        %v891 = vpop.permute.xlu0 %890
        %v893 = vmul.f32 %v256, %v891
        %895 = vrot.lane.b32.xlu0 %v893, 126
        %v896 = vpop.permute.xlu0 %895
        %v898 = vadd.f32 %v887, %v896
        %v899 = vld [vmem:[%s729 + $0x2] sm:$0x1]
        %v900 = vld [vmem:[%s731 + $0x2] sm:$0x1]
        %v901 = vperm.slane %v899, 0
        %903 = vrot.lane.b32.xlu0 %v901, 1
        %v904 = vpop.permute.xlu0 %903
        %v906 = vmul.f32 %v247, %v904
        %v907 = vadd.f32 %v898, %v906
        %v908 = vperm.slane %v900, 0
        %910 = vrot.lane.b32.xlu0 %v908, 3
        %v911 = vpop.permute.xlu0 %910
        %v913 = vmul.f32 %v247, %v911
        %915 = vrot.lane.b32.xlu0 %v913, 126
        %v916 = vpop.permute.xlu0 %915
        %v918 = vadd.f32 %v907, %v916
        %v919 = vld [vmem:[%s729] sm:$0x1]
        %v920 = vld [vmem:[%s731] sm:$0x1]
        %v921 = vperm.slane %v919, 0
        %923 = vrot.lane.b32.xlu0 %v921, 1
        %v924 = vpop.permute.xlu0 %923
        %v926 = vmul.f32 %v259, %v924
        %v927 = vadd.f32 %v918, %v926
        %v928 = vperm.slane %v920, 0
        %930 = vrot.lane.b32.xlu0 %v928, 3
        %v931 = vpop.permute.xlu0 %930
        %v933 = vmul.f32 %v259, %v931
        %935 = vrot.lane.b32.xlu0 %v933, 126
        %v936 = vpop.permute.xlu0 %935
        %v938 = vadd.f32 %v927, %v936
        %v939 = vadd.f32 %v938, %v771
        %941 = vrot.lane.b32.xlu0 %v939, 31
        %v942 = vpop.permute.xlu0 %941
        %944 = vst.msk [vmem:[%s777] sm:$0xff] %vm600, %v942
        %s945 = sld [smem:[#allocation2 + $0x2]]
        %s946 = scalar_lea.vmem %s1, 32
        %v947 = vld [vmem:[%s946 + $0x3] sm:$0x1]
        %s948 = scalar_lea.vmem %s2, 32
        %v949 = vld [vmem:[%s948 + $0x3] sm:$0x1]
        %v950 = vperm.slane %v947, 0
        %952 = vrot.lane.b32.xlu0 %v950, 1
        %v953 = vpop.permute.xlu0 %952
        %v955 = vmul.f32 %v226, %v953
        %v956 = vadd.f32 %v955, 0.0
        %v957 = vperm.slane %v949, 0
        %959 = vrot.lane.b32.xlu0 %v957, 3
        %v960 = vpop.permute.xlu0 %959
        %v962 = vmul.f32 %v226, %v960
        %964 = vrot.lane.b32.xlu0 %v962, 126
        %v965 = vpop.permute.xlu0 %964
        %v967 = vadd.f32 %v956, %v965
        %v968 = vld [vmem:[%s946 + $0x1] sm:$0x1]
        %v969 = vld [vmem:[%s948 + $0x1] sm:$0x1]
        %v970 = vperm.slane %v968, 0
        %972 = vrot.lane.b32.xlu0 %v970, 1
        %v973 = vpop.permute.xlu0 %972
        %v975 = vmul.f32 %v238, %v973
        %v976 = vadd.f32 %v967, %v975
        %v977 = vperm.slane %v969, 0
        %979 = vrot.lane.b32.xlu0 %v977, 3
        %v980 = vpop.permute.xlu0 %979
        %v982 = vmul.f32 %v238, %v980
        %984 = vrot.lane.b32.xlu0 %v982, 126
        %v985 = vpop.permute.xlu0 %984
        %v987 = vadd.f32 %v976, %v985
        %s988 = scalar_lea.vmem %s1, 36
        %v989 = vld [vmem:[%s988 + $0x3] sm:$0x1]
        %s990 = scalar_lea.vmem %s2, 36
        %v991 = vld [vmem:[%s990 + $0x3] sm:$0x1]
        %v992 = vperm.slane %v989, 0
        %994 = vrot.lane.b32.xlu0 %v992, 1
        %v995 = vpop.permute.xlu0 %994
        %v997 = vmul.f32 %v229, %v995
        %v998 = vadd.f32 %v987, %v997
        %v999 = vperm.slane %v991, 0
        %1001 = vrot.lane.b32.xlu0 %v999, 3
        %v1002 = vpop.permute.xlu0 %1001
        %v1004 = vmul.f32 %v229, %v1002
        %1006 = vrot.lane.b32.xlu0 %v1004, 126
        %v1007 = vpop.permute.xlu0 %1006
        %v1009 = vadd.f32 %v998, %v1007
        %v1010 = vld [vmem:[%s988 + $0x1] sm:$0x1]
        %v1011 = vld [vmem:[%s990 + $0x1] sm:$0x1]
        %v1012 = vperm.slane %v1010, 0
        %1014 = vrot.lane.b32.xlu0 %v1012, 1
        %v1015 = vpop.permute.xlu0 %1014
        %v1017 = vmul.f32 %v241, %v1015
        %v1018 = vadd.f32 %v1009, %v1017
        %v1019 = vperm.slane %v1011, 0
        %1021 = vrot.lane.b32.xlu0 %v1019, 3
        %v1022 = vpop.permute.xlu0 %1021
        %v1024 = vmul.f32 %v241, %v1022
        %1026 = vrot.lane.b32.xlu0 %v1024, 126
        %v1027 = vpop.permute.xlu0 %1026
        %v1029 = vadd.f32 %v1018, %v1027
        %s1030 = scalar_lea.vmem %s1, 40
        %v1031 = vld [vmem:[%s1030 + $0x3] sm:$0x1]
        %s1032 = scalar_lea.vmem %s2, 40
        %v1033 = vld [vmem:[%s1032 + $0x3] sm:$0x1]
        %v1034 = vperm.slane %v1031, 0
        %1036 = vrot.lane.b32.xlu0 %v1034, 1
        %v1037 = vpop.permute.xlu0 %1036
        %v1039 = vmul.f32 %v232, %v1037
        %v1040 = vadd.f32 %v1029, %v1039
        %v1041 = vperm.slane %v1033, 0
        %1043 = vrot.lane.b32.xlu0 %v1041, 3
        %v1044 = vpop.permute.xlu0 %1043
        %v1046 = vmul.f32 %v232, %v1044
        %1048 = vrot.lane.b32.xlu0 %v1046, 126
        %v1049 = vpop.permute.xlu0 %1048
        %v1051 = vadd.f32 %v1040, %v1049
        %v1052 = vld [vmem:[%s1030 + $0x1] sm:$0x1]
        %v1053 = vld [vmem:[%s1032 + $0x1] sm:$0x1]
        %v1054 = vperm.slane %v1052, 0
        %1056 = vrot.lane.b32.xlu0 %v1054, 1
        %v1057 = vpop.permute.xlu0 %1056
        %v1059 = vmul.f32 %v244, %v1057
        %v1060 = vadd.f32 %v1051, %v1059
        %v1061 = vperm.slane %v1053, 0
        %1063 = vrot.lane.b32.xlu0 %v1061, 3
        %v1064 = vpop.permute.xlu0 %1063
        %v1066 = vmul.f32 %v244, %v1064
        %1068 = vrot.lane.b32.xlu0 %v1066, 126
        %v1069 = vpop.permute.xlu0 %1068
        %v1071 = vadd.f32 %v1060, %v1069
        %s1072 = scalar_lea.vmem %s1, 44
        %v1073 = vld [vmem:[%s1072 + $0x3] sm:$0x1]
        %s1074 = scalar_lea.vmem %s2, 44
        %v1075 = vld [vmem:[%s1074 + $0x3] sm:$0x1]
        %v1076 = vperm.slane %v1073, 0
        %1078 = vrot.lane.b32.xlu0 %v1076, 1
        %v1079 = vpop.permute.xlu0 %1078
        %v1081 = vmul.f32 %v235, %v1079
        %v1082 = vadd.f32 %v1071, %v1081
        %v1083 = vperm.slane %v1075, 0
        %1085 = vrot.lane.b32.xlu0 %v1083, 3
        %v1086 = vpop.permute.xlu0 %1085
        %v1088 = vmul.f32 %v235, %v1086
        %1090 = vrot.lane.b32.xlu0 %v1088, 126
        %v1091 = vpop.permute.xlu0 %1090
        %v1093 = vadd.f32 %v1082, %v1091
        %v1094 = vld [vmem:[%s1072 + $0x1] sm:$0x1]
        %v1095 = vld [vmem:[%s1074 + $0x1] sm:$0x1]
        %v1096 = vperm.slane %v1094, 0
        %1098 = vrot.lane.b32.xlu0 %v1096, 1
        %v1099 = vpop.permute.xlu0 %1098
        %v1101 = vmul.f32 %v247, %v1099
        %v1102 = vadd.f32 %v1093, %v1101
        %v1103 = vperm.slane %v1095, 0
        %1105 = vrot.lane.b32.xlu0 %v1103, 3
        %v1106 = vpop.permute.xlu0 %1105
        %v1108 = vmul.f32 %v247, %v1106
        %1110 = vrot.lane.b32.xlu0 %v1108, 126
        %v1111 = vpop.permute.xlu0 %1110
        %v1113 = vadd.f32 %v1102, %v1111
        %v1114 = vstv %s945
        %v1115 = vadd.f32 %v1113, %v1114
        %1117 = vrot.lane.b32.xlu0 %v1115, 127
        %v1118 = vpop.permute.xlu0 %1117
        %s1120 = scalar_lea.vmem %s218, 16 [#allocation5]
        %1121 = vst.msk [vmem:[%s1120] sm:$0xff] %vm433, %v1118
        %v1122 = vld [vmem:[%s946 + $0x2] sm:$0x1]
        %v1123 = vld [vmem:[%s948 + $0x2] sm:$0x1]
        %v1124 = vperm.slane %v1122, 0
        %1126 = vrot.lane.b32.xlu0 %v1124, 1
        %v1127 = vpop.permute.xlu0 %1126
        %v1129 = vmul.f32 %v238, %v1127
        %v1130 = vadd.f32 %v1129, 0.0
        %v1131 = vperm.slane %v1123, 0
        %1133 = vrot.lane.b32.xlu0 %v1131, 3
        %v1134 = vpop.permute.xlu0 %1133
        %v1136 = vmul.f32 %v238, %v1134
        %1138 = vrot.lane.b32.xlu0 %v1136, 126
        %v1139 = vpop.permute.xlu0 %1138
        %v1141 = vadd.f32 %v1130, %v1139
        %v1142 = vld [vmem:[%s946] sm:$0x1]
        %v1143 = vld [vmem:[%s948] sm:$0x1]
        %v1144 = vperm.slane %v1142, 0
        %1146 = vrot.lane.b32.xlu0 %v1144, 1
        %v1147 = vpop.permute.xlu0 %1146
        %v1149 = vmul.f32 %v250, %v1147
        %v1150 = vadd.f32 %v1141, %v1149
        %v1151 = vperm.slane %v1143, 0
        %1153 = vrot.lane.b32.xlu0 %v1151, 3
        %v1154 = vpop.permute.xlu0 %1153
        %v1156 = vmul.f32 %v250, %v1154
        %1158 = vrot.lane.b32.xlu0 %v1156, 126
        %v1159 = vpop.permute.xlu0 %1158
        %v1161 = vadd.f32 %v1150, %v1159
        %v1162 = vld [vmem:[%s988 + $0x2] sm:$0x1]
        %v1163 = vld [vmem:[%s990 + $0x2] sm:$0x1]
        %v1164 = vperm.slane %v1162, 0
        %1166 = vrot.lane.b32.xlu0 %v1164, 1
        %v1167 = vpop.permute.xlu0 %1166
        %v1169 = vmul.f32 %v241, %v1167
        %v1170 = vadd.f32 %v1161, %v1169
        %v1171 = vperm.slane %v1163, 0
        %1173 = vrot.lane.b32.xlu0 %v1171, 3
        %v1174 = vpop.permute.xlu0 %1173
        %v1176 = vmul.f32 %v241, %v1174
        %1178 = vrot.lane.b32.xlu0 %v1176, 126
        %v1179 = vpop.permute.xlu0 %1178
        %v1181 = vadd.f32 %v1170, %v1179
        %v1182 = vld [vmem:[%s988] sm:$0x1]
        %v1183 = vld [vmem:[%s990] sm:$0x1]
        %v1184 = vperm.slane %v1182, 0
        %1186 = vrot.lane.b32.xlu0 %v1184, 1
        %v1187 = vpop.permute.xlu0 %1186
        %v1189 = vmul.f32 %v253, %v1187
        %v1190 = vadd.f32 %v1181, %v1189
        %v1191 = vperm.slane %v1183, 0
        %1193 = vrot.lane.b32.xlu0 %v1191, 3
        %v1194 = vpop.permute.xlu0 %1193
        %v1196 = vmul.f32 %v253, %v1194
        %1198 = vrot.lane.b32.xlu0 %v1196, 126
        %v1199 = vpop.permute.xlu0 %1198
        %v1201 = vadd.f32 %v1190, %v1199
        %v1202 = vld [vmem:[%s1030 + $0x2] sm:$0x1]
        %v1203 = vld [vmem:[%s1032 + $0x2] sm:$0x1]
        %v1204 = vperm.slane %v1202, 0
        %1206 = vrot.lane.b32.xlu0 %v1204, 1
        %v1207 = vpop.permute.xlu0 %1206
        %v1209 = vmul.f32 %v244, %v1207
        %v1210 = vadd.f32 %v1201, %v1209
        %v1211 = vperm.slane %v1203, 0
        %1213 = vrot.lane.b32.xlu0 %v1211, 3
        %v1214 = vpop.permute.xlu0 %1213
        %v1216 = vmul.f32 %v244, %v1214
        %1218 = vrot.lane.b32.xlu0 %v1216, 126
        %v1219 = vpop.permute.xlu0 %1218
        %v1221 = vadd.f32 %v1210, %v1219
        %v1222 = vld [vmem:[%s1030] sm:$0x1]
        %v1223 = vld [vmem:[%s1032] sm:$0x1]
        %v1224 = vperm.slane %v1222, 0
        %1226 = vrot.lane.b32.xlu0 %v1224, 1
        %v1227 = vpop.permute.xlu0 %1226
        %v1229 = vmul.f32 %v256, %v1227
        %v1230 = vadd.f32 %v1221, %v1229
        %v1231 = vperm.slane %v1223, 0
        %1233 = vrot.lane.b32.xlu0 %v1231, 3
        %v1234 = vpop.permute.xlu0 %1233
        %v1236 = vmul.f32 %v256, %v1234
        %1238 = vrot.lane.b32.xlu0 %v1236, 126
        %v1239 = vpop.permute.xlu0 %1238
        %v1241 = vadd.f32 %v1230, %v1239
        %v1242 = vld [vmem:[%s1072 + $0x2] sm:$0x1]
        %v1243 = vld [vmem:[%s1074 + $0x2] sm:$0x1]
        %v1244 = vperm.slane %v1242, 0
        %1246 = vrot.lane.b32.xlu0 %v1244, 1
        %v1247 = vpop.permute.xlu0 %1246
        %v1249 = vmul.f32 %v247, %v1247
        %v1250 = vadd.f32 %v1241, %v1249
        %v1251 = vperm.slane %v1243, 0
        %1253 = vrot.lane.b32.xlu0 %v1251, 3
        %v1254 = vpop.permute.xlu0 %1253
        %v1256 = vmul.f32 %v247, %v1254
        %1258 = vrot.lane.b32.xlu0 %v1256, 126
        %v1259 = vpop.permute.xlu0 %1258
        %v1261 = vadd.f32 %v1250, %v1259
        %v1262 = vld [vmem:[%s1072] sm:$0x1]
        %v1263 = vld [vmem:[%s1074] sm:$0x1]
        %v1264 = vperm.slane %v1262, 0
        %1266 = vrot.lane.b32.xlu0 %v1264, 1
        %v1267 = vpop.permute.xlu0 %1266
        %v1269 = vmul.f32 %v259, %v1267
        %v1270 = vadd.f32 %v1261, %v1269
        %v1271 = vperm.slane %v1263, 0
        %1273 = vrot.lane.b32.xlu0 %v1271, 3
        %v1274 = vpop.permute.xlu0 %1273
        %v1276 = vmul.f32 %v259, %v1274
        %1278 = vrot.lane.b32.xlu0 %v1276, 126
        %v1279 = vpop.permute.xlu0 %1278
        %v1281 = vadd.f32 %v1270, %v1279
        %v1282 = vadd.f32 %v1281, %v1114
        %1284 = vrot.lane.b32.xlu0 %v1282, 31
        %v1285 = vpop.permute.xlu0 %1284
        %1287 = vst.msk [vmem:[%s1120] sm:$0xff] %vm600, %v1285
        %s1288 = sld [smem:[#allocation2 + $0x3]]
        %s1289 = scalar_lea.vmem %s1, 48
        %v1290 = vld [vmem:[%s1289 + $0x3] sm:$0x1]
        %s1291 = scalar_lea.vmem %s2, 48
        %v1292 = vld [vmem:[%s1291 + $0x3] sm:$0x1]
        %v1293 = vperm.slane %v1290, 0
        %1295 = vrot.lane.b32.xlu0 %v1293, 1
        %v1296 = vpop.permute.xlu0 %1295
        %v1298 = vmul.f32 %v226, %v1296
        %v1299 = vadd.f32 %v1298, 0.0
        %v1300 = vperm.slane %v1292, 0
        %1302 = vrot.lane.b32.xlu0 %v1300, 3
        %v1303 = vpop.permute.xlu0 %1302
        %v1305 = vmul.f32 %v226, %v1303
        %1307 = vrot.lane.b32.xlu0 %v1305, 126
        %v1308 = vpop.permute.xlu0 %1307
        %v1310 = vadd.f32 %v1299, %v1308
        %v1311 = vld [vmem:[%s1289 + $0x1] sm:$0x1]
        %v1312 = vld [vmem:[%s1291 + $0x1] sm:$0x1]
        %v1313 = vperm.slane %v1311, 0
        %1315 = vrot.lane.b32.xlu0 %v1313, 1
        %v1316 = vpop.permute.xlu0 %1315
        %v1318 = vmul.f32 %v238, %v1316
        %v1319 = vadd.f32 %v1310, %v1318
        %v1320 = vperm.slane %v1312, 0
        %1322 = vrot.lane.b32.xlu0 %v1320, 3
        %v1323 = vpop.permute.xlu0 %1322
        %v1325 = vmul.f32 %v238, %v1323
        %1327 = vrot.lane.b32.xlu0 %v1325, 126
        %v1328 = vpop.permute.xlu0 %1327
        %v1330 = vadd.f32 %v1319, %v1328
        %s1331 = scalar_lea.vmem %s1, 52
        %v1332 = vld [vmem:[%s1331 + $0x3] sm:$0x1]
        %s1333 = scalar_lea.vmem %s2, 52
        %v1334 = vld [vmem:[%s1333 + $0x3] sm:$0x1]
        %v1335 = vperm.slane %v1332, 0
        %1337 = vrot.lane.b32.xlu0 %v1335, 1
        %v1338 = vpop.permute.xlu0 %1337
        %v1340 = vmul.f32 %v229, %v1338
        %v1341 = vadd.f32 %v1330, %v1340
        %v1342 = vperm.slane %v1334, 0
        %1344 = vrot.lane.b32.xlu0 %v1342, 3
        %v1345 = vpop.permute.xlu0 %1344
        %v1347 = vmul.f32 %v229, %v1345
        %1349 = vrot.lane.b32.xlu0 %v1347, 126
        %v1350 = vpop.permute.xlu0 %1349
        %v1352 = vadd.f32 %v1341, %v1350
        %v1353 = vld [vmem:[%s1331 + $0x1] sm:$0x1]
        %v1354 = vld [vmem:[%s1333 + $0x1] sm:$0x1]
        %v1355 = vperm.slane %v1353, 0
        %1357 = vrot.lane.b32.xlu0 %v1355, 1
        %v1358 = vpop.permute.xlu0 %1357
        %v1360 = vmul.f32 %v241, %v1358
        %v1361 = vadd.f32 %v1352, %v1360
        %v1362 = vperm.slane %v1354, 0
        %1364 = vrot.lane.b32.xlu0 %v1362, 3
        %v1365 = vpop.permute.xlu0 %1364
        %v1367 = vmul.f32 %v241, %v1365
        %1369 = vrot.lane.b32.xlu0 %v1367, 126
        %v1370 = vpop.permute.xlu0 %1369
        %v1372 = vadd.f32 %v1361, %v1370
        %s1373 = scalar_lea.vmem %s1, 56
        %v1374 = vld [vmem:[%s1373 + $0x3] sm:$0x1]
        %s1375 = scalar_lea.vmem %s2, 56
        %v1376 = vld [vmem:[%s1375 + $0x3] sm:$0x1]
        %v1377 = vperm.slane %v1374, 0
        %1379 = vrot.lane.b32.xlu0 %v1377, 1
        %v1380 = vpop.permute.xlu0 %1379
        %v1382 = vmul.f32 %v232, %v1380
        %v1383 = vadd.f32 %v1372, %v1382
        %v1384 = vperm.slane %v1376, 0
        %1386 = vrot.lane.b32.xlu0 %v1384, 3
        %v1387 = vpop.permute.xlu0 %1386
        %v1389 = vmul.f32 %v232, %v1387
        %1391 = vrot.lane.b32.xlu0 %v1389, 126
        %v1392 = vpop.permute.xlu0 %1391
        %v1394 = vadd.f32 %v1383, %v1392
        %v1395 = vld [vmem:[%s1373 + $0x1] sm:$0x1]
        %v1396 = vld [vmem:[%s1375 + $0x1] sm:$0x1]
        %v1397 = vperm.slane %v1395, 0
        %1399 = vrot.lane.b32.xlu0 %v1397, 1
        %v1400 = vpop.permute.xlu0 %1399
        %v1402 = vmul.f32 %v244, %v1400
        %v1403 = vadd.f32 %v1394, %v1402
        %v1404 = vperm.slane %v1396, 0
        %1406 = vrot.lane.b32.xlu0 %v1404, 3
        %v1407 = vpop.permute.xlu0 %1406
        %v1409 = vmul.f32 %v244, %v1407
        %1411 = vrot.lane.b32.xlu0 %v1409, 126
        %v1412 = vpop.permute.xlu0 %1411
        %v1414 = vadd.f32 %v1403, %v1412
        %s1415 = scalar_lea.vmem %s1, 60
        %v1416 = vld [vmem:[%s1415 + $0x3] sm:$0x1]
        %s1417 = scalar_lea.vmem %s2, 60
        %v1418 = vld [vmem:[%s1417 + $0x3] sm:$0x1]
        %v1419 = vperm.slane %v1416, 0
        %1421 = vrot.lane.b32.xlu0 %v1419, 1
        %v1422 = vpop.permute.xlu0 %1421
        %v1424 = vmul.f32 %v235, %v1422
        %v1425 = vadd.f32 %v1414, %v1424
        %v1426 = vperm.slane %v1418, 0
        %1428 = vrot.lane.b32.xlu0 %v1426, 3
        %v1429 = vpop.permute.xlu0 %1428
        %v1431 = vmul.f32 %v235, %v1429
        %1433 = vrot.lane.b32.xlu0 %v1431, 126
        %v1434 = vpop.permute.xlu0 %1433
        %v1436 = vadd.f32 %v1425, %v1434
        %v1437 = vld [vmem:[%s1415 + $0x1] sm:$0x1]
        %v1438 = vld [vmem:[%s1417 + $0x1] sm:$0x1]
        %v1439 = vperm.slane %v1437, 0
        %1441 = vrot.lane.b32.xlu0 %v1439, 1
        %v1442 = vpop.permute.xlu0 %1441
        %v1444 = vmul.f32 %v247, %v1442
        %v1445 = vadd.f32 %v1436, %v1444
        %v1446 = vperm.slane %v1438, 0
        %1448 = vrot.lane.b32.xlu0 %v1446, 3
        %v1449 = vpop.permute.xlu0 %1448
        %v1451 = vmul.f32 %v247, %v1449
        %1453 = vrot.lane.b32.xlu0 %v1451, 126
        %v1454 = vpop.permute.xlu0 %1453
        %v1456 = vadd.f32 %v1445, %v1454
        %v1457 = vstv %s1288
        %v1458 = vadd.f32 %v1456, %v1457
        %1460 = vrot.lane.b32.xlu0 %v1458, 127
        %v1461 = vpop.permute.xlu0 %1460
        %s1463 = scalar_lea.vmem %s218, 24 [#allocation5]
        %1464 = vst.msk [vmem:[%s1463] sm:$0xff] %vm433, %v1461
        %v1465 = vld [vmem:[%s1289 + $0x2] sm:$0x1]
        %v1466 = vld [vmem:[%s1291 + $0x2] sm:$0x1]
        %v1467 = vperm.slane %v1465, 0
        %1469 = vrot.lane.b32.xlu0 %v1467, 1
        %v1470 = vpop.permute.xlu0 %1469
        %v1472 = vmul.f32 %v238, %v1470
        %v1473 = vadd.f32 %v1472, 0.0
        %v1474 = vperm.slane %v1466, 0
        %1476 = vrot.lane.b32.xlu0 %v1474, 3
        %v1477 = vpop.permute.xlu0 %1476
        %v1479 = vmul.f32 %v238, %v1477
        %1481 = vrot.lane.b32.xlu0 %v1479, 126
        %v1482 = vpop.permute.xlu0 %1481
        %v1484 = vadd.f32 %v1473, %v1482
        %v1485 = vld [vmem:[%s1289] sm:$0x1]
        %v1486 = vld [vmem:[%s1291] sm:$0x1]
        %v1487 = vperm.slane %v1485, 0
        %1489 = vrot.lane.b32.xlu0 %v1487, 1
        %v1490 = vpop.permute.xlu0 %1489
        %v1492 = vmul.f32 %v250, %v1490
        %v1493 = vadd.f32 %v1484, %v1492
        %v1494 = vperm.slane %v1486, 0
        %1496 = vrot.lane.b32.xlu0 %v1494, 3
        %v1497 = vpop.permute.xlu0 %1496
        %v1499 = vmul.f32 %v250, %v1497
        %1501 = vrot.lane.b32.xlu0 %v1499, 126
        %v1502 = vpop.permute.xlu0 %1501
        %v1504 = vadd.f32 %v1493, %v1502
        %v1505 = vld [vmem:[%s1331 + $0x2] sm:$0x1]
        %v1506 = vld [vmem:[%s1333 + $0x2] sm:$0x1]
        %v1507 = vperm.slane %v1505, 0
        %1509 = vrot.lane.b32.xlu0 %v1507, 1
        %v1510 = vpop.permute.xlu0 %1509
        %v1512 = vmul.f32 %v241, %v1510
        %v1513 = vadd.f32 %v1504, %v1512
        %v1514 = vperm.slane %v1506, 0
        %1516 = vrot.lane.b32.xlu0 %v1514, 3
        %v1517 = vpop.permute.xlu0 %1516
        %v1519 = vmul.f32 %v241, %v1517
        %1521 = vrot.lane.b32.xlu0 %v1519, 126
        %v1522 = vpop.permute.xlu0 %1521
        %v1524 = vadd.f32 %v1513, %v1522
        %v1525 = vld [vmem:[%s1331] sm:$0x1]
        %v1526 = vld [vmem:[%s1333] sm:$0x1]
        %v1527 = vperm.slane %v1525, 0
        %1529 = vrot.lane.b32.xlu0 %v1527, 1
        %v1530 = vpop.permute.xlu0 %1529
        %v1532 = vmul.f32 %v253, %v1530
        %v1533 = vadd.f32 %v1524, %v1532
        %v1534 = vperm.slane %v1526, 0
        %1536 = vrot.lane.b32.xlu0 %v1534, 3
        %v1537 = vpop.permute.xlu0 %1536
        %v1539 = vmul.f32 %v253, %v1537
        %1541 = vrot.lane.b32.xlu0 %v1539, 126
        %v1542 = vpop.permute.xlu0 %1541
        %v1544 = vadd.f32 %v1533, %v1542
        %v1545 = vld [vmem:[%s1373 + $0x2] sm:$0x1]
        %v1546 = vld [vmem:[%s1375 + $0x2] sm:$0x1]
        %v1547 = vperm.slane %v1545, 0
        %1549 = vrot.lane.b32.xlu0 %v1547, 1
        %v1550 = vpop.permute.xlu0 %1549
        %v1552 = vmul.f32 %v244, %v1550
        %v1553 = vadd.f32 %v1544, %v1552
        %v1554 = vperm.slane %v1546, 0
        %1556 = vrot.lane.b32.xlu0 %v1554, 3
        %v1557 = vpop.permute.xlu0 %1556
        %v1559 = vmul.f32 %v244, %v1557
        %1561 = vrot.lane.b32.xlu0 %v1559, 126
        %v1562 = vpop.permute.xlu0 %1561
        %v1564 = vadd.f32 %v1553, %v1562
        %v1565 = vld [vmem:[%s1373] sm:$0x1]
        %v1566 = vld [vmem:[%s1375] sm:$0x1]
        %v1567 = vperm.slane %v1565, 0
        %1569 = vrot.lane.b32.xlu0 %v1567, 1
        %v1570 = vpop.permute.xlu0 %1569
        %v1572 = vmul.f32 %v256, %v1570
        %v1573 = vadd.f32 %v1564, %v1572
        %v1574 = vperm.slane %v1566, 0
        %1576 = vrot.lane.b32.xlu0 %v1574, 3
        %v1577 = vpop.permute.xlu0 %1576
        %v1579 = vmul.f32 %v256, %v1577
        %1581 = vrot.lane.b32.xlu0 %v1579, 126
        %v1582 = vpop.permute.xlu0 %1581
        %v1584 = vadd.f32 %v1573, %v1582
        %v1585 = vld [vmem:[%s1415 + $0x2] sm:$0x1]
        %v1586 = vld [vmem:[%s1417 + $0x2] sm:$0x1]
        %v1587 = vperm.slane %v1585, 0
        %1589 = vrot.lane.b32.xlu0 %v1587, 1
        %v1590 = vpop.permute.xlu0 %1589
        %v1592 = vmul.f32 %v247, %v1590
        %v1593 = vadd.f32 %v1584, %v1592
        %v1594 = vperm.slane %v1586, 0
        %1596 = vrot.lane.b32.xlu0 %v1594, 3
        %v1597 = vpop.permute.xlu0 %1596
        %v1599 = vmul.f32 %v247, %v1597
        %1601 = vrot.lane.b32.xlu0 %v1599, 126
        %v1602 = vpop.permute.xlu0 %1601
        %v1604 = vadd.f32 %v1593, %v1602
        %v1605 = vld [vmem:[%s1415] sm:$0x1]
        %v1606 = vld [vmem:[%s1417] sm:$0x1]
        %v1607 = vperm.slane %v1605, 0
        %1609 = vrot.lane.b32.xlu0 %v1607, 1
        %v1610 = vpop.permute.xlu0 %1609
        %v1612 = vmul.f32 %v259, %v1610
        %v1613 = vadd.f32 %v1604, %v1612
        %v1614 = vperm.slane %v1606, 0
        %1616 = vrot.lane.b32.xlu0 %v1614, 3
        %v1617 = vpop.permute.xlu0 %1616
        %v1619 = vmul.f32 %v259, %v1617
        %1621 = vrot.lane.b32.xlu0 %v1619, 126
        %v1622 = vpop.permute.xlu0 %1621
        %v1624 = vadd.f32 %v1613, %v1622
        %v1625 = vadd.f32 %v1624, %v1457
        %1627 = vrot.lane.b32.xlu0 %v1625, 31
        %v1628 = vpop.permute.xlu0 %1627
        %1630 = vst.msk [vmem:[%s1463] sm:$0xff] %vm600, %v1628
        %s1631 = sand.u32 %s130, 1
        %s1632 = scalar_lea.sflag [#allocation3], %s1631
        %s1633 = sand.u32 %s130, 1
        %s1634 = smul.addr %s1633, 32
        %s1635 = scalar_lea.vmem [#allocation5], %s1634
        // Predicated region
        $region41: #{tpu_custom_call.1} parent=35 // pred_check
          %p1636 = pneg %p140
        $region42: #{tpu_custom_call.1} parent=35 // pred_check_branch
          %1638 = sbr.rel (%p1636) target = $region44
        $region43: #{tpu_custom_call.1} parent=35 // pred_region
          %1640 = vsyncadd %s1632, 0
          %s1641 = smul.addr %s23, 8
          %s1642 = sadd.s32 %s24, %s1641
          %s1643 = smul.addr %s1642, 8
          %s1644 = scalar_lea.hbm %s4, %s1643
          %s1645 = sshll.u32 %s1635, 4
          %s1646 = int_to_ptr.vmem [resolvable:$true] %s1645
          %s1647 = sshll.u32 %s1644, 4
          %s1648 = int_to_ptr.hbm [resolvable:$true] %s1647
          %1653 = dma.vmem_to_hbm [thread:$0]  %s1646, 512, %s1648, %s1632, 128, 256, 8
        $region44: #{tpu_custom_call.1} parent=35 // pred_fallthru
          _
      $region36: #{tpu_custom_call.1} parent=5 // pred_fallthru
        _
      %p1654 = scmp.le.s32.totalorder 2, %s14
      // Predicated region
      $region45: #{tpu_custom_call.1} parent=5 // pred_check
        %p1655 = pneg %p1654
      $region46: #{tpu_custom_call.1} parent=5 // pred_check_branch
        %1657 = sbr.rel (%p1655) target = $region48
      $region47: #{tpu_custom_call.1} parent=5 // pred_region
        %s1658 = ssub.s32 %s14, 2
        // Predicated region
        $region49: #{tpu_custom_call.1} parent=47 // pred_check
          %p1659 = pneg %p146
        $region50: #{tpu_custom_call.1} parent=47 // pred_check_branch
          %1661 = sbr.rel (%p1659) target = $region52
        $region51: #{tpu_custom_call.1} parent=47 // pred_region
          %s1662 = sand.u32 %s131, 1
          %s1663 = scalar_lea.sflag [#allocation3], %s1662
          %s1664 = sand.u32 %s131, 1
          %s1665 = smul.addr %s1664, 32
          %s1666 = scalar_lea.vmem [#allocation5], %s1665
          %1668 = dma.done %s1663, 512
        $region52: #{tpu_custom_call.1} parent=47 // pred_fallthru
          _
      $region48: #{tpu_custom_call.1} parent=5 // pred_fallthru
        _
    $region6: #{tpu_custom_call.1} parent=1 // loop_footer
      %s18 = sadd.s32 1, %s14
    $region7: #{tpu_custom_call.1} parent=1 // loop_footer_branch
      %13 = sbr.rel target = $region3
    $region8: #{tpu_custom_call.1} parent=1 // loop_exit
      _
    %1669 = vsyncpa [#allocation3], 1
    %s1670 = scalar_lea.sflag [#allocation3], 1
    %1671 = vsyncpa %s1670, 1
    %1672 = vsyncpa [#allocation4], 1
    %s1673 = scalar_lea.sflag [#allocation4], 1
    %1674 = vsyncpa %s1673, 1

</llo_original>
